<compile_context>
chip_gen: v5e
topology: v5e:2x2
jax: 0.10.0
libtpu: 0.0.40
codegen_flags: <defaults>
</compile_context>

<pallas_src>
import functools

import jax
import jax.numpy as jnp
from jax.experimental import pallas as pl
from jax.experimental.pallas import tpu as pltpu

BN_EPS = 1e-5
_LANE = 128
_VMEM_TILE_BUDGET = 24 * 1024 * 1024   # double-buffered working-set budget
_VMEM_LIMIT = 48 * 1024 * 1024         # explicit scoped-VMEM limit (all gens)


def _round_up(x, m):
    return (x + m - 1) // m * m


def _pick_tile_m(m, k_dim, c2p, in_bytes):
    """Largest TILE_M (multiple of 128) whose double-buffered tiles fit VMEM."""
    tile = 128
    for cand in (2048, 1024, 512, 256, 128):
        need = 2 * cand * (k_dim * in_bytes + c2p * 4) + k_dim * c2p * in_bytes
        if need <= _VMEM_TILE_BUDGET:
            tile = cand
            break
    return min(tile, _round_up(m, _LANE))


def _conv_stats_kernel(x_ref, w_ref, y_ref, stats_ref):
    """Pass 1: y = x @ w on the MXU; accumulate per-channel sum / sum-of-squares."""
    i = pl.program_id(0)

    prec = (jax.lax.Precision.HIGHEST
            if x_ref.dtype == jnp.float32 else jax.lax.Precision.DEFAULT)
    y = jnp.dot(x_ref[...], w_ref[...],
                preferred_element_type=jnp.float32, precision=prec)
    y_ref[...] = y

    # Per-channel reductions on the MXU (ones-row matmuls) instead of the XLU.
    ones = jnp.ones((1, y.shape[0]), jnp.float32)
    s_tile = jnp.dot(ones, y, preferred_element_type=jnp.float32,
                     precision=jax.lax.Precision.HIGHEST)       # (1, C2p)
    sq_tile = jnp.dot(ones, y * y, preferred_element_type=jnp.float32,
                      precision=jax.lax.Precision.HIGHEST)      # (1, C2p)

    @pl.when(i == 0)
    def _():
        stats_ref[...] = jnp.zeros_like(stats_ref)

    stats_ref[0:1, :] = stats_ref[0:1, :] + s_tile
    stats_ref[1:2, :] = stats_ref[1:2, :] + sq_tile


def _bn_relu_kernel(y_ref, stats_ref, g_ref, b_ref, o_ref, *, m_valid):
    """Pass 2: (y - mean) * rsqrt(var + eps) * gamma + beta, then ReLU."""
    inv_m = 1.0 / m_valid
    mean = stats_ref[0:1, :] * inv_m
    ex2 = stats_ref[1:2, :] * inv_m
    var = jnp.maximum(ex2 - mean * mean, 0.0)   # guard tiny negative rounding
    scale = g_ref[...] * jax.lax.rsqrt(var + BN_EPS)
    shift = b_ref[...] - mean * scale
    o_ref[...] = jnp.maximum(y_ref[...] * scale + shift, 0.0).astype(o_ref.dtype)


@functools.partial(jax.jit,
                   static_argnames=("k", "s", "p", "d", "g", "compute_dtype"))
def dilation_conv_module_forward(x_nchw, conv_w, gamma, beta, *, k, s=1, p=0,
                                 d=1, g=1, compute_dtype=jnp.bfloat16):
    """Forward pass of DilationConvModule (Conv2d -> train-mode BN -> ReLU).

    x_nchw : (N, C1, H, W) f32      conv_w : (C2, C1, k, k) f32 (PyTorch OIHW)
    gamma, beta : (C2,) f32         returns: (N, C2, Ho, Wo) f32
    """
    if g != 1:
        # TODO(synk): grouped convolution (g > 1) not implemented.
        raise NotImplementedError("grouped conv (g > 1) is not supported")

    N, C1, H, W = x_nchw.shape
    C2 = conv_w.shape[0]
    Ho = (H + 2 * p - d * (k - 1) - 1) // s + 1
    Wo = (W + 2 * p - d * (k - 1) - 1) // s + 1
    M = N * Ho * Wo
    K = k * k * C1
    C2p = _round_up(C2, _LANE)

    # Layout glue (plain JAX): NCHW -> NHWC, spatial zero-padding.
    x_nhwc = jnp.transpose(x_nchw, (0, 2, 3, 1)).astype(jnp.float32)
    if p:
        x_nhwc = jnp.pad(x_nhwc, ((0, 0), (p, p), (p, p), (0, 0)))

    # Dilation/stride-aware patch extraction -> (M, K).  For k == 1 this is a
    # pure reshape (no blow-up), which is the common pointwise case.
    # TODO(synk): for k > 1 this still materializes a k*k-larger im2col matrix
    # in HBM; next step per review is in-kernel tap gathering via shifted
    # BlockSpec index_maps.
    taps = []
    for kh in range(k):
        for kw in range(k):
            taps.append(x_nhwc[:,
                               kh * d:kh * d + (Ho - 1) * s + 1:s,
                               kw * d:kw * d + (Wo - 1) * s + 1:s,
                               :])
    cols = taps[0] if k == 1 else jnp.concatenate(taps, axis=-1)
    x_mat = cols.reshape(M, K)

    # Conv weight (C2, C1, kh, kw) -> (kh, kw, C1, C2) -> (K, C2p), lane-dense.
    w_mat = jnp.transpose(conv_w, (2, 3, 1, 0)).reshape(K, C2).astype(jnp.float32)
    w_mat = jnp.pad(w_mat, ((0, 0), (0, C2p - C2)))
    g2 = jnp.pad(gamma.reshape(1, C2).astype(jnp.float32), ((0, 0), (0, C2p - C2)))
    b2 = jnp.pad(beta.reshape(1, C2).astype(jnp.float32), ((0, 0), (0, C2p - C2)))

    in_bytes = jnp.dtype(compute_dtype).itemsize
    tile_m = _pick_tile_m(M, K, C2p, in_bytes)
    Mp = _round_up(M, tile_m)
    if Mp != M:
        x_mat = jnp.pad(x_mat, ((0, Mp - M), (0, 0)))   # zero rows: no effect on sums
    x_mat = x_mat.astype(compute_dtype)
    w_mat = w_mat.astype(compute_dtype)

    grid = (Mp // tile_m,)

    # ---- Pass 1: tiled conv matmul + per-channel sum / sum-of-squares ----
    flops1 = 2 * Mp * K * C2p + 4 * Mp * C2p
    bytes1 = Mp * K * in_bytes + K * C2p * in_bytes + Mp * C2p * 4 + 2 * C2p * 4
    y_full, stats = pl.pallas_call(
        _conv_stats_kernel,
        out_shape=(jax.ShapeDtypeStruct((Mp, C2p), jnp.float32),
                   jax.ShapeDtypeStruct((2, C2p), jnp.float32)),
        grid=grid,
        in_specs=[
            pl.BlockSpec((tile_m, K), lambda i: (i, 0)),
            pl.BlockSpec((K, C2p), lambda i: (0, 0)),
        ],
        out_specs=[
            pl.BlockSpec((tile_m, C2p), lambda i: (i, 0)),
            pl.BlockSpec((2, C2p), lambda i: (0, 0)),     # resident accumulator
        ],
        compiler_params=pltpu.CompilerParams(
            dimension_semantics=("arbitrary",),
            vmem_limit_bytes=_VMEM_LIMIT),
        cost_estimate=pl.CostEstimate(
            flops=flops1, transcendentals=0, bytes_accessed=bytes1),
    )(x_mat, w_mat)

    # ---- Pass 2: normalize + affine + ReLU (parallel over M tiles) ----
    flops2 = 4 * Mp * C2p
    bytes2 = 2 * Mp * C2p * 4 + 4 * C2p * 4
    out_full = pl.pallas_call(
        functools.partial(_bn_relu_kernel, m_valid=float(M)),
        out_shape=jax.ShapeDtypeStruct((Mp, C2p), jnp.float32),
        grid=grid,
        in_specs=[
            pl.BlockSpec((tile_m, C2p), lambda i: (i, 0)),
            pl.BlockSpec((2, C2p), lambda i: (0, 0)),
            pl.BlockSpec((1, C2p), lambda i: (0, 0)),
            pl.BlockSpec((1, C2p), lambda i: (0, 0)),
        ],
        out_specs=pl.BlockSpec((tile_m, C2p), lambda i: (i, 0)),
        compiler_params=pltpu.CompilerParams(
            dimension_semantics=("parallel",),
            vmem_limit_bytes=_VMEM_LIMIT),
        cost_estimate=pl.CostEstimate(
            flops=flops2, transcendentals=C2p, bytes_accessed=bytes2),
    )(y_full, stats, g2, b2)

    # Drop M / C2 padding, back to NCHW.
    out = out_full[:M, :C2].reshape(N, Ho, Wo, C2)
    return jnp.transpose(out, (0, 3, 1, 2))


def _reference(x_nchw, conv_w, gamma, beta, k, s=1, p=0, d=1, g=1):
    """Pure-JAX reference matching PyTorch DilationConvModule.forward."""
    y = jax.lax.conv_general_dilated(
        x_nchw, conv_w, window_strides=(s, s), padding=[(p, p), (p, p)],
        rhs_dilation=(d, d), feature_group_count=g,
        dimension_numbers=("NCHW", "OIHW", "NCHW"))
    mean = jnp.mean(y, axis=(0, 2, 3), keepdims=True)
    var = jnp.mean((y - mean) ** 2, axis=(0, 2, 3), keepdims=True)
    y_hat = (y - mean) / jnp.sqrt(var + BN_EPS)
    out = y_hat * gamma.reshape(1, -1, 1, 1) + beta.reshape(1, -1, 1, 1)
    return jnp.maximum(out, 0.0)


if __name__ == "__main__":
    # Small deterministic example exercising the dilation path:
    # N=2, C1=4, H=W=16, C2=8, k=3, dilation=2, padding=2, stride=1.
    N, C1, H, W, C2 = 2, 4, 16, 16, 8
    k, s, p, d = 3, 1, 2, 2

    key = jax.random.PRNGKey(0)
    kx, kw = jax.random.split(key)
    x = jax.random.normal(kx, (N, C1, H, W), dtype=jnp.float32)

    fan_in = C1 * k * k
    bound = (1.0 / fan_in) ** 0.5
    conv_w = jax.random.uniform(kw, (C2, C1, k, k), minval=-bound,
                                maxval=bound, dtype=jnp.float32)
    gamma = jnp.ones((C2,), dtype=jnp.float32)   # BatchNorm2d default init
    beta = jnp.zeros((C2,), dtype=jnp.float32)

    ref = _reference(x, conv_w, gamma, beta, k, s, p, d)

    # f32 matmul path: tight check.
    out_f32 = dilation_conv_module_forward(
        x, conv_w, gamma, beta, k=k, s=s, p=p, d=d, compute_dtype=jnp.float32)
    jax.block_until_ready(out_f32)
    assert out_f32.shape == ref.shape
    assert jnp.allclose(out_f32, ref, atol=1e-4, rtol=1e-4)

    # bf16 matmul inputs (halves HBM read traffic): looser tolerance.
    out_bf16 = dilation_conv_module_forward(
        x, conv_w, gamma, beta, k=k, s=s, p=p, d=d, compute_dtype=jnp.bfloat16)
    jax.block_until_ready(out_bf16)
    assert jnp.allclose(out_bf16, ref, atol=5e-2, rtol=5e-2)

    # Pointwise (k=1) configuration exercises the zero-overhead reshape path.
    w1 = conv_w[:, :, :1, :1]
    out_k1 = dilation_conv_module_forward(
        x, w1, gamma, beta, k=1, compute_dtype=jnp.float32)
    jax.block_until_ready(out_k1)
    ref_k1 = _reference(x, w1, gamma, beta, 1)
    assert jnp.allclose(out_k1, ref_k1, atol=1e-4, rtol=1e-4)

    print("KERNEL_OK")
</pallas_src>

<mosaic_0001>
module attributes {stable_mosaic.version = 11 : i64} {
  func.func @_conv_stats_kernel(%arg0: i32, %arg1: memref<512x36xf32, #tpu.memory_space<vmem>>, %arg2: memref<36x128xf32, #tpu.memory_space<vmem>>, %arg3: memref<512x128xf32, #tpu.memory_space<vmem>>, %arg4: memref<2x128xf32, #tpu.memory_space<vmem>>) attributes {dimension_semantics = [#tpu.dimension_semantics<arbitrary>], iteration_bounds = array<i64: 1>, scalar_prefetch = 0 : i64, scratch_operands = 0 : i64, tpu.core_type = #tpu.core_type<tc>, window_params = [{transform_indices = @transform_0, window_bounds = array<i64: 512, 36>}, {pipeline_mode = #tpu.pipeline_mode<synchronous>, transform_indices = @transform_1, window_bounds = array<i64: 36, 128>}, {transform_indices = @transform_2, window_bounds = array<i64: 512, 128>}, {pipeline_mode = #tpu.pipeline_mode<synchronous>, transform_indices = @transform_3, window_bounds = array<i64: 2, 128>}]} {
    %c0 = arith.constant 0 : index
    %c0_0 = arith.constant 0 : index
    %0 = vector.load %arg1[%c0, %c0_0] : memref<512x36xf32, #tpu.memory_space<vmem>>, vector<512x36xf32>
    %c0_1 = arith.constant 0 : index
    %c0_2 = arith.constant 0 : index
    %1 = vector.load %arg2[%c0_1, %c0_2] : memref<36x128xf32, #tpu.memory_space<vmem>>, vector<36x128xf32>
    %cst = arith.constant dense<0.000000e+00> : vector<512x128xf32>
    %2 = tpu.matmul %0, %1, %cst {dimension_numbers = #tpu.dot_dimension_numbers<[1], [0], [0], [1], [0, 0, 1, 1], [], []>, precision = #tpu.contract_precision<fp32>} : vector<512x36xf32>, vector<36x128xf32>, vector<512x128xf32> -> vector<512x128xf32>
    %c0_3 = arith.constant 0 : index
    %c0_4 = arith.constant 0 : index
    %3 = vector.load %arg3[%c0_3, %c0_4] : memref<512x128xf32, #tpu.memory_space<vmem>>, vector<512x128xf32>
    tpu.vector_store %arg3[%c0_3, %c0_4], %2 {strides = array<i32>} : memref<512x128xf32, #tpu.memory_space<vmem>>, vector<512x128xf32>,
    %cst_5 = arith.constant 1.000000e+00 : f32
    %4 = vector.broadcast %cst_5 : f32 to vector<1x512xf32>
    %cst_6 = arith.constant dense<0.000000e+00> : vector<1x128xf32>
    %5 = tpu.matmul %4, %2, %cst_6 {dimension_numbers = #tpu.dot_dimension_numbers<[1], [0], [0], [1], [0, 0, 1, 1], [], []>, precision = #tpu.contract_precision<fp32>} : vector<1x512xf32>, vector<512x128xf32>, vector<1x128xf32> -> vector<1x128xf32>
    %6 = arith.mulf %2, %2 : vector<512x128xf32>
    %cst_7 = arith.constant dense<0.000000e+00> : vector<1x128xf32>
    %7 = tpu.matmul %4, %6, %cst_7 {dimension_numbers = #tpu.dot_dimension_numbers<[1], [0], [0], [1], [0, 0, 1, 1], [], []>, precision = #tpu.contract_precision<fp32>} : vector<1x512xf32>, vector<512x128xf32>, vector<1x128xf32> -> vector<1x128xf32>
    %c0_i32 = arith.constant 0 : i32
    %8 = arith.cmpi eq, %arg0, %c0_i32 : i32
    %9 = arith.extui %8 : i1 to i32
    %c0_i32_8 = arith.constant 0 : i32
    %10 = arith.cmpi ne, %9, %c0_i32_8 : i32
    scf.if %10 {
      %cst_16 = arith.constant 0.000000e+00 : f32
      %17 = vector.broadcast %cst_16 : f32 to vector<2x128xf32>
      %c0_17 = arith.constant 0 : index
      %c0_18 = arith.constant 0 : index
      %18 = vector.load %arg4[%c0_17, %c0_18] : memref<2x128xf32, #tpu.memory_space<vmem>>, vector<2x128xf32>
      tpu.vector_store %arg4[%c0_17, %c0_18], %17 {strides = array<i32>} : memref<2x128xf32, #tpu.memory_space<vmem>>, vector<2x128xf32>,
    } else {
    }
    %c0_9 = arith.constant 0 : index
    %c0_10 = arith.constant 0 : index
    %11 = vector.load %arg4[%c0_9, %c0_10] : memref<2x128xf32, #tpu.memory_space<vmem>>, vector<1x128xf32>
    %12 = arith.addf %11, %5 : vector<1x128xf32>
    %c0_11 = arith.constant 0 : index
    %c0_12 = arith.constant 0 : index
    %13 = vector.load %arg4[%c0_11, %c0_12] : memref<2x128xf32, #tpu.memory_space<vmem>>, vector<1x128xf32>
    tpu.vector_store %arg4[%c0_11, %c0_12], %12 {strides = array<i32>} : memref<2x128xf32, #tpu.memory_space<vmem>>, vector<1x128xf32>,
    %c1 = arith.constant 1 : index
    %c0_13 = arith.constant 0 : index
    %14 = vector.load %arg4[%c1, %c0_13] : memref<2x128xf32, #tpu.memory_space<vmem>>, vector<1x128xf32>
    %15 = arith.addf %14, %7 : vector<1x128xf32>
    %c1_14 = arith.constant 1 : index
    %c0_15 = arith.constant 0 : index
    %16 = vector.load %arg4[%c1_14, %c0_15] : memref<2x128xf32, #tpu.memory_space<vmem>>, vector<1x128xf32>
    tpu.vector_store %arg4[%c1_14, %c0_15], %15 {strides = array<i32>} : memref<2x128xf32, #tpu.memory_space<vmem>>, vector<1x128xf32>,
    return
  }
  func.func @transform_0(%arg0: i32) -> (i32, i32) {
    %c0_i32 = arith.constant 0 : i32
    %c0_i32_0 = arith.constant 0 : i32
    return %arg0, %c0_i32 : i32, i32
  }
  func.func @transform_1(%arg0: i32) -> (i32, i32) {
    %c0_i32 = arith.constant 0 : i32
    %c0_i32_0 = arith.constant 0 : i32
    %c0_i32_1 = arith.constant 0 : i32
    return %c0_i32, %c0_i32_0 : i32, i32
  }
  func.func @transform_2(%arg0: i32) -> (i32, i32) {
    %c0_i32 = arith.constant 0 : i32
    %c0_i32_0 = arith.constant 0 : i32
    return %arg0, %c0_i32 : i32, i32
  }
  func.func @transform_3(%arg0: i32) -> (i32, i32) {
    %c0_i32 = arith.constant 0 : i32
    %c0_i32_0 = arith.constant 0 : i32
    %c0_i32_1 = arith.constant 0 : i32
    return %c0_i32, %c0_i32_0 : i32, i32
  }
}

module attributes {stable_mosaic.version = 11 : i64} {
  func.func @_bn_relu_kernel(%arg0: i32, %arg1: memref<512x128xf32, #tpu.memory_space<vmem>>, %arg2: memref<2x128xf32, #tpu.memory_space<vmem>>, %arg3: memref<1x128xf32, #tpu.memory_space<vmem>>, %arg4: memref<1x128xf32, #tpu.memory_space<vmem>>, %arg5: memref<512x128xf32, #tpu.memory_space<vmem>>) attributes {dimension_semantics = [#tpu.dimension_semantics<parallel>], iteration_bounds = array<i64: 1>, scalar_prefetch = 0 : i64, scratch_operands = 0 : i64, tpu.core_type = #tpu.core_type<tc>, window_params = [{transform_indices = @transform_0, window_bounds = array<i64: 512, 128>}, {pipeline_mode = #tpu.pipeline_mode<synchronous>, transform_indices = @transform_1, window_bounds = array<i64: 2, 128>}, {pipeline_mode = #tpu.pipeline_mode<synchronous>, transform_indices = @transform_2, window_bounds = array<i64: 1, 128>}, {pipeline_mode = #tpu.pipeline_mode<synchronous>, transform_indices = @transform_3, window_bounds = array<i64: 1, 128>}, {transform_indices = @transform_4, window_bounds = array<i64: 512, 128>}]} {
    %c0 = arith.constant 0 : index
    %c0_0 = arith.constant 0 : index
    %0 = vector.load %arg2[%c0, %c0_0] : memref<2x128xf32, #tpu.memory_space<vmem>>, vector<1x128xf32>
    %cst = arith.constant 0.001953125 : f32
    %1 = vector.broadcast %cst : f32 to vector<1x128xf32>
    %2 = arith.mulf %0, %1 : vector<1x128xf32>
    %c1 = arith.constant 1 : index
    %c0_1 = arith.constant 0 : index
    %3 = vector.load %arg2[%c1, %c0_1] : memref<2x128xf32, #tpu.memory_space<vmem>>, vector<1x128xf32>
    %cst_2 = arith.constant 0.001953125 : f32
    %4 = vector.broadcast %cst_2 : f32 to vector<1x128xf32>
    %5 = arith.mulf %3, %4 : vector<1x128xf32>
    %6 = arith.mulf %2, %2 : vector<1x128xf32>
    %7 = arith.subf %5, %6 : vector<1x128xf32>
    %cst_3 = arith.constant 0.000000e+00 : f32
    %8 = vector.broadcast %cst_3 : f32 to vector<1x128xf32>
    %9 = arith.maximumf %7, %8 : vector<1x128xf32>
    %c0_4 = arith.constant 0 : index
    %c0_5 = arith.constant 0 : index
    %10 = vector.load %arg3[%c0_4, %c0_5] : memref<1x128xf32, #tpu.memory_space<vmem>>, vector<1x128xf32>
    %cst_6 = arith.constant 9.99999974E-6 : f32
    %11 = vector.broadcast %cst_6 : f32 to vector<1x128xf32>
    %12 = arith.addf %9, %11 : vector<1x128xf32>
    %13 = math.rsqrt %12 : vector<1x128xf32>
    %14 = arith.mulf %10, %13 : vector<1x128xf32>
    %c0_7 = arith.constant 0 : index
    %c0_8 = arith.constant 0 : index
    %15 = vector.load %arg4[%c0_7, %c0_8] : memref<1x128xf32, #tpu.memory_space<vmem>>, vector<1x128xf32>
    %16 = arith.mulf %2, %14 : vector<1x128xf32>
    %17 = arith.subf %15, %16 : vector<1x128xf32>
    %c0_9 = arith.constant 0 : index
    %c0_10 = arith.constant 0 : index
    %18 = vector.load %arg1[%c0_9, %c0_10] : memref<512x128xf32, #tpu.memory_space<vmem>>, vector<512x128xf32>
    %19 = vector.broadcast %14 : vector<1x128xf32> to vector<512x128xf32>
    %20 = arith.mulf %18, %19 : vector<512x128xf32>
    %21 = vector.broadcast %17 : vector<1x128xf32> to vector<512x128xf32>
    %22 = arith.addf %20, %21 : vector<512x128xf32>
    %cst_11 = arith.constant 0.000000e+00 : f32
    %23 = vector.broadcast %cst_11 : f32 to vector<512x128xf32>
    %24 = arith.maximumf %22, %23 : vector<512x128xf32>
    %c0_12 = arith.constant 0 : index
    %c0_13 = arith.constant 0 : index
    %25 = vector.load %arg5[%c0_12, %c0_13] : memref<512x128xf32, #tpu.memory_space<vmem>>, vector<512x128xf32>
    tpu.vector_store %arg5[%c0_12, %c0_13], %24 {strides = array<i32>} : memref<512x128xf32, #tpu.memory_space<vmem>>, vector<512x128xf32>,
    return
  }
  func.func @transform_0(%arg0: i32) -> (i32, i32) {
    %c0_i32 = arith.constant 0 : i32
    %c0_i32_0 = arith.constant 0 : i32
    return %arg0, %c0_i32 : i32, i32
  }
  func.func @transform_1(%arg0: i32) -> (i32, i32) {
    %c0_i32 = arith.constant 0 : i32
    %c0_i32_0 = arith.constant 0 : i32
    %c0_i32_1 = arith.constant 0 : i32
    return %c0_i32, %c0_i32_0 : i32, i32
  }
  func.func @transform_2(%arg0: i32) -> (i32, i32) {
    %c0_i32 = arith.constant 0 : i32
    %c0_i32_0 = arith.constant 0 : i32
    %c0_i32_1 = arith.constant 0 : i32
    return %c0_i32, %c0_i32_0 : i32, i32
  }
  func.func @transform_3(%arg0: i32) -> (i32, i32) {
    %c0_i32 = arith.constant 0 : i32
    %c0_i32_0 = arith.constant 0 : i32
    %c0_i32_1 = arith.constant 0 : i32
    return %c0_i32, %c0_i32_0 : i32, i32
  }
  func.func @transform_4(%arg0: i32) -> (i32, i32) {
    %c0_i32 = arith.constant 0 : i32
    %c0_i32_0 = arith.constant 0 : i32
    return %arg0, %c0_i32 : i32, i32
  }
}

</mosaic_0001>

<llo_original>
// kernel: dilation_conv_module_forward.3
$region0: #{dilation_conv_module_forward.3}
  #allocation0 [shape = 'u32[]', space=smem, size = 0x4, offset = 0x4, fixed_abs, tag = 'smem constant byte address 0x4 - core index']
  #allocation1 [shape = 'u32[72,128]{1,0:T(1,128)}', space=vmem, size = 0x9000, scoped, tag = 'internal scratch']
  %s0 = inlined_call_operand.vmem [shape: f32[512,128], index: 0, kind: input, shape index: {}]
  %s1 = inlined_call_operand.vmem [shape: f32[2,128], index: 1, kind: input, shape index: {}]
  %s2 = inlined_call_operand.vmem [shape: f32[1,128], index: 2, kind: input, shape index: {}]
  %s3 = inlined_call_operand.vmem [shape: f32[1,128], index: 3, kind: input, shape index: {}]
  %s4 = inlined_call_operand.vmem [shape: f32[512,128], index: 4, kind: output, shape index: {}]
  %s5 = sld [smem:[#allocation0]]
  $region26: #{dilation_conv_module_forward.3} parent=0
    _
  %s7 = ssub.s32 1, %s5
  %s8 = scalar_select 0, %s7, %s5
  // Predicated region
  $region2: #{dilation_conv_module_forward.3} parent=0 // pred_check
    _
  $region3: #{dilation_conv_module_forward.3} parent=0 // pred_check_branch
    %10 = sbr.rel (0) target = $region5
  $region4: #{dilation_conv_module_forward.3} parent=0 // pred_region
    _
  $region5: #{dilation_conv_module_forward.3} parent=0 // pred_fallthru
    _
  // Predicated region
  $region6: #{dilation_conv_module_forward.3} parent=0 // pred_check
    _
  $region7: #{dilation_conv_module_forward.3} parent=0 // pred_check_branch
    %12 = sbr.rel (0) target = $region9
  $region8: #{dilation_conv_module_forward.3} parent=0 // pred_region
    _
  $region9: #{dilation_conv_module_forward.3} parent=0 // pred_fallthru
    _
  // Predicated region
  $region10: #{dilation_conv_module_forward.3} parent=0 // pred_check
    _
  $region11: #{dilation_conv_module_forward.3} parent=0 // pred_check_branch
    %14 = sbr.rel (0) target = $region13
  $region12: #{dilation_conv_module_forward.3} parent=0 // pred_region
    _
  $region13: #{dilation_conv_module_forward.3} parent=0 // pred_fallthru
    _
  // Predicated region
  $region14: #{dilation_conv_module_forward.3} parent=0 // pred_check
    _
  $region15: #{dilation_conv_module_forward.3} parent=0 // pred_check_branch
    %16 = sbr.rel (0) target = $region17
  $region16: #{dilation_conv_module_forward.3} parent=0 // pred_region
    _
  $region17: #{dilation_conv_module_forward.3} parent=0 // pred_fallthru
    _
  %v17 = vld [vmem:[%s1] sm:$0x1]
  %v18 = vmul.f32 %v17, 0.001953125
  %v19 = vld [vmem:[%s1 + $0x1] sm:$0x1]
  %v20 = vmul.f32 %v19, 0.001953125
  %v21 = vmul.f32 %v18, %v18
  %v22 = vsub.f32 %v20, %v21
  %v23 = vmax.f32 %v22, 0.0
  %v24 = vld [vmem:[%s2] sm:$0x1]
  %v25 = vadd.f32 %v23, 1e-05
  %v26 = vrsqrt.pop %v25
  %v27 = vmul.f32 %v26, %v25
  %v28 = vmul.f32 %v27, %v26
  %v29 = vmul.f32 0.5, %v28
  %v30 = vsub.f32 1.5, %v29
  %v31 = vmul.f32 %v26, %v30
  %vm32 = vweird.f32 %v25
  %vm33 = vweird.f32 %v26
  %vm34 = vmor %vm32, %vm33
  %v35 = vsel %vm34, %v26, %v31
  %v36 = vmul.f32 %v24, %v35
  %v37 = vld [vmem:[%s3] sm:$0x1]
  %v38 = vmul.f32 %v18, %v36
  %v39 = vsub.f32 %v37, %v38
  %v40 = vld [vmem:[%s0] sm:$0xff]
  %v41 = vld [vmem:[%s0 + $0x8] sm:$0xff]
  %v42 = vld [vmem:[%s0 + $0x10] sm:$0xff]
  %v43 = vld [vmem:[%s0 + $0x18] sm:$0xff]
  %v44 = vld [vmem:[%s0 + $0x20] sm:$0xff]
  %v45 = vld [vmem:[%s0 + $0x28] sm:$0xff]
  %v46 = vld [vmem:[%s0 + $0x30] sm:$0xff]
  %v47 = vld [vmem:[%s0 + $0x38] sm:$0xff]
  %v48 = vld [vmem:[%s0 + $0x40] sm:$0xff]
  %v49 = vld [vmem:[%s0 + $0x48] sm:$0xff]
  %v50 = vld [vmem:[%s0 + $0x50] sm:$0xff]
  %v51 = vld [vmem:[%s0 + $0x58] sm:$0xff]
  %v52 = vld [vmem:[%s0 + $0x60] sm:$0xff]
  %v53 = vld [vmem:[%s0 + $0x68] sm:$0xff]
  %v54 = vld [vmem:[%s0 + $0x70] sm:$0xff]
  %v55 = vld [vmem:[%s0 + $0x78] sm:$0xff]
  %v56 = vld [vmem:[%s0 + $0x80] sm:$0xff]
  %v57 = vld [vmem:[%s0 + $0x88] sm:$0xff]
  %v58 = vld [vmem:[%s0 + $0x90] sm:$0xff]
  %v59 = vld [vmem:[%s0 + $0x98] sm:$0xff]
  %v60 = vld [vmem:[%s0 + $0xa0] sm:$0xff]
  %v61 = vld [vmem:[%s0 + $0xa8] sm:$0xff]
  %v62 = vld [vmem:[%s0 + $0xb0] sm:$0xff]
  %v63 = vld [vmem:[%s0 + $0xb8] sm:$0xff]
  %v64 = vld [vmem:[%s0 + $0xc0] sm:$0xff]
  %v65 = vld [vmem:[%s0 + $0xc8] sm:$0xff]
  %v66 = vld [vmem:[%s0 + $0xd0] sm:$0xff]
  %v67 = vld [vmem:[%s0 + $0xd8] sm:$0xff]
  %v68 = vld [vmem:[%s0 + $0xe0] sm:$0xff]
  %v69 = vld [vmem:[%s0 + $0xe8] sm:$0xff]
  %v70 = vld [vmem:[%s0 + $0xf0] sm:$0xff]
  %v71 = vld [vmem:[%s0 + $0xf8] sm:$0xff]
  %v72 = vld [vmem:[%s0 + $0x100] sm:$0xff]
  %v73 = vld [vmem:[%s0 + $0x108] sm:$0xff]
  %v74 = vld [vmem:[%s0 + $0x110] sm:$0xff]
  %v75 = vld [vmem:[%s0 + $0x118] sm:$0xff]
  %v76 = vld [vmem:[%s0 + $0x120] sm:$0xff]
  %v77 = vld [vmem:[%s0 + $0x128] sm:$0xff]
  %v78 = vld [vmem:[%s0 + $0x130] sm:$0xff]
  %v79 = vld [vmem:[%s0 + $0x138] sm:$0xff]
  %v80 = vld [vmem:[%s0 + $0x140] sm:$0xff]
  %v81 = vld [vmem:[%s0 + $0x148] sm:$0xff]
  %v82 = vld [vmem:[%s0 + $0x150] sm:$0xff]
  %v83 = vld [vmem:[%s0 + $0x158] sm:$0xff]
  %v84 = vld [vmem:[%s0 + $0x160] sm:$0xff]
  %v85 = vld [vmem:[%s0 + $0x168] sm:$0xff]
  %v86 = vld [vmem:[%s0 + $0x170] sm:$0xff]
  %v87 = vld [vmem:[%s0 + $0x178] sm:$0xff]
  %v88 = vld [vmem:[%s0 + $0x180] sm:$0xff]
  %v89 = vld [vmem:[%s0 + $0x188] sm:$0xff]
  %v90 = vld [vmem:[%s0 + $0x190] sm:$0xff]
  %v91 = vld [vmem:[%s0 + $0x198] sm:$0xff]
  %v92 = vld [vmem:[%s0 + $0x1a0] sm:$0xff]
  %v93 = vld [vmem:[%s0 + $0x1a8] sm:$0xff]
  %v94 = vld [vmem:[%s0 + $0x1b0] sm:$0xff]
  %v95 = vld [vmem:[%s0 + $0x1b8] sm:$0xff]
  %v96 = vld [vmem:[%s0 + $0x1c0] sm:$0xff]
  %v97 = vld [vmem:[%s0 + $0x1c8] sm:$0xff]
  %v98 = vld [vmem:[%s0 + $0x1d0] sm:$0xff]
  %v99 = vld [vmem:[%s0 + $0x1d8] sm:$0xff]
  %v100 = vld [vmem:[%s0 + $0x1e0] sm:$0xff]
  %v101 = vld [vmem:[%s0 + $0x1e8] sm:$0xff]
  %v102 = vld [vmem:[%s0 + $0x1f0] sm:$0xff]
  %v103 = vld [vmem:[%s0 + $0x1f8] sm:$0xff]
  %v105 = vperm.slane %v36, 0
  %v107 = vmul.f32 %v40, %v105
  %v108 = vmul.f32 %v41, %v105
  %v109 = vmul.f32 %v42, %v105
  %v110 = vmul.f32 %v43, %v105
  %v111 = vmul.f32 %v44, %v105
  %v112 = vmul.f32 %v45, %v105
  %v113 = vmul.f32 %v46, %v105
  %v114 = vmul.f32 %v47, %v105
  %v115 = vmul.f32 %v48, %v105
  %v116 = vmul.f32 %v49, %v105
  %v117 = vmul.f32 %v50, %v105
  %v118 = vmul.f32 %v51, %v105
  %v119 = vmul.f32 %v52, %v105
  %v120 = vmul.f32 %v53, %v105
  %v121 = vmul.f32 %v54, %v105
  %v122 = vmul.f32 %v55, %v105
  %v123 = vmul.f32 %v56, %v105
  %v124 = vmul.f32 %v57, %v105
  %v125 = vmul.f32 %v58, %v105
  %v126 = vmul.f32 %v59, %v105
  %v127 = vmul.f32 %v60, %v105
  %v128 = vmul.f32 %v61, %v105
  %v129 = vmul.f32 %v62, %v105
  %v130 = vmul.f32 %v63, %v105
  %v131 = vmul.f32 %v64, %v105
  %v132 = vmul.f32 %v65, %v105
  %v133 = vmul.f32 %v66, %v105
  %v134 = vmul.f32 %v67, %v105
  %v135 = vmul.f32 %v68, %v105
  %v136 = vmul.f32 %v69, %v105
  %v137 = vmul.f32 %v70, %v105
  %v138 = vmul.f32 %v71, %v105
  %v139 = vmul.f32 %v72, %v105
  %v140 = vmul.f32 %v73, %v105
  %v141 = vmul.f32 %v74, %v105
  %v142 = vmul.f32 %v75, %v105
  %v143 = vmul.f32 %v76, %v105
  %v144 = vmul.f32 %v77, %v105
  %v145 = vmul.f32 %v78, %v105
  %v146 = vmul.f32 %v79, %v105
  %v147 = vmul.f32 %v80, %v105
  %v148 = vmul.f32 %v81, %v105
  %v149 = vmul.f32 %v82, %v105
  %v150 = vmul.f32 %v83, %v105
  %v151 = vmul.f32 %v84, %v105
  %v152 = vmul.f32 %v85, %v105
  %v153 = vmul.f32 %v86, %v105
  %v154 = vmul.f32 %v87, %v105
  %v155 = vmul.f32 %v88, %v105
  %v156 = vmul.f32 %v89, %v105
  %v157 = vmul.f32 %v90, %v105
  %v158 = vmul.f32 %v91, %v105
  %v159 = vmul.f32 %v92, %v105
  %v160 = vmul.f32 %v93, %v105
  %v161 = vmul.f32 %v94, %v105
  %v162 = vmul.f32 %v95, %v105
  %v163 = vmul.f32 %v96, %v105
  %v164 = vmul.f32 %v97, %v105
  %v165 = vmul.f32 %v98, %v105
  %v166 = vmul.f32 %v99, %v105
  %v167 = vmul.f32 %v100, %v105
  %v168 = vmul.f32 %v101, %v105
  %v169 = vmul.f32 %v102, %v105
  %v170 = vmul.f32 %v103, %v105
  %v172 = vperm.slane %v39, 0
  %v174 = vadd.f32 %v107, %v172
  %v175 = vadd.f32 %v108, %v172
  %v176 = vadd.f32 %v109, %v172
  %v177 = vadd.f32 %v110, %v172
  %v178 = vadd.f32 %v111, %v172
  %v179 = vadd.f32 %v112, %v172
  %v180 = vadd.f32 %v113, %v172
  %v181 = vadd.f32 %v114, %v172
  %v182 = vadd.f32 %v115, %v172
  %v183 = vadd.f32 %v116, %v172
  %v184 = vadd.f32 %v117, %v172
  %v185 = vadd.f32 %v118, %v172
  %v186 = vadd.f32 %v119, %v172
  %v187 = vadd.f32 %v120, %v172
  %v188 = vadd.f32 %v121, %v172
  %v189 = vadd.f32 %v122, %v172
  %v190 = vadd.f32 %v123, %v172
  %v191 = vadd.f32 %v124, %v172
  %v192 = vadd.f32 %v125, %v172
  %v193 = vadd.f32 %v126, %v172
  %v194 = vadd.f32 %v127, %v172
  %v195 = vadd.f32 %v128, %v172
  %v196 = vadd.f32 %v129, %v172
  %v197 = vadd.f32 %v130, %v172
  %v198 = vadd.f32 %v131, %v172
  %v199 = vadd.f32 %v132, %v172
  %v200 = vadd.f32 %v133, %v172
  %v201 = vadd.f32 %v134, %v172
  %v202 = vadd.f32 %v135, %v172
  %v203 = vadd.f32 %v136, %v172
  %v204 = vadd.f32 %v137, %v172
  %v205 = vadd.f32 %v138, %v172
  %v206 = vadd.f32 %v139, %v172
  %v207 = vadd.f32 %v140, %v172
  %v208 = vadd.f32 %v141, %v172
  %v209 = vadd.f32 %v142, %v172
  %v210 = vadd.f32 %v143, %v172
  %v211 = vadd.f32 %v144, %v172
  %v212 = vadd.f32 %v145, %v172
  %v213 = vadd.f32 %v146, %v172
  %v214 = vadd.f32 %v147, %v172
  %v215 = vadd.f32 %v148, %v172
  %v216 = vadd.f32 %v149, %v172
  %v217 = vadd.f32 %v150, %v172
  %v218 = vadd.f32 %v151, %v172
  %v219 = vadd.f32 %v152, %v172
  %v220 = vadd.f32 %v153, %v172
  %v221 = vadd.f32 %v154, %v172
  %v222 = vadd.f32 %v155, %v172
  %v223 = vadd.f32 %v156, %v172
  %v224 = vadd.f32 %v157, %v172
  %v225 = vadd.f32 %v158, %v172
  %v226 = vadd.f32 %v159, %v172
  %v227 = vadd.f32 %v160, %v172
  %v228 = vadd.f32 %v161, %v172
  %v229 = vadd.f32 %v162, %v172
  %v230 = vadd.f32 %v163, %v172
  %v231 = vadd.f32 %v164, %v172
  %v232 = vadd.f32 %v165, %v172
  %v233 = vadd.f32 %v166, %v172
  %v234 = vadd.f32 %v167, %v172
  %v235 = vadd.f32 %v168, %v172
  %v236 = vadd.f32 %v169, %v172
  %v237 = vadd.f32 %v170, %v172
  %v238 = vmax.f32 %v174, 0.0
  %v239 = vmax.f32 %v175, 0.0
  %v240 = vmax.f32 %v176, 0.0
  %v241 = vmax.f32 %v177, 0.0
  %v242 = vmax.f32 %v178, 0.0
  %v243 = vmax.f32 %v179, 0.0
  %v244 = vmax.f32 %v180, 0.0
  %v245 = vmax.f32 %v181, 0.0
  %v246 = vmax.f32 %v182, 0.0
  %v247 = vmax.f32 %v183, 0.0
  %v248 = vmax.f32 %v184, 0.0
  %v249 = vmax.f32 %v185, 0.0
  %v250 = vmax.f32 %v186, 0.0
  %v251 = vmax.f32 %v187, 0.0
  %v252 = vmax.f32 %v188, 0.0
  %v253 = vmax.f32 %v189, 0.0
  %v254 = vmax.f32 %v190, 0.0
  %v255 = vmax.f32 %v191, 0.0
  %v256 = vmax.f32 %v192, 0.0
  %v257 = vmax.f32 %v193, 0.0
  %v258 = vmax.f32 %v194, 0.0
  %v259 = vmax.f32 %v195, 0.0
  %v260 = vmax.f32 %v196, 0.0
  %v261 = vmax.f32 %v197, 0.0
  %v262 = vmax.f32 %v198, 0.0
  %v263 = vmax.f32 %v199, 0.0
  %v264 = vmax.f32 %v200, 0.0
  %v265 = vmax.f32 %v201, 0.0
  %v266 = vmax.f32 %v202, 0.0
  %v267 = vmax.f32 %v203, 0.0
  %v268 = vmax.f32 %v204, 0.0
  %v269 = vmax.f32 %v205, 0.0
  %v270 = vmax.f32 %v206, 0.0
  %v271 = vmax.f32 %v207, 0.0
  %v272 = vmax.f32 %v208, 0.0
  %v273 = vmax.f32 %v209, 0.0
  %v274 = vmax.f32 %v210, 0.0
  %v275 = vmax.f32 %v211, 0.0
  %v276 = vmax.f32 %v212, 0.0
  %v277 = vmax.f32 %v213, 0.0
  %v278 = vmax.f32 %v214, 0.0
  %v279 = vmax.f32 %v215, 0.0
  %v280 = vmax.f32 %v216, 0.0
  %v281 = vmax.f32 %v217, 0.0
  %v282 = vmax.f32 %v218, 0.0
  %v283 = vmax.f32 %v219, 0.0
  %v284 = vmax.f32 %v220, 0.0
  %v285 = vmax.f32 %v221, 0.0
  %v286 = vmax.f32 %v222, 0.0
  %v287 = vmax.f32 %v223, 0.0
  %v288 = vmax.f32 %v224, 0.0
  %v289 = vmax.f32 %v225, 0.0
  %v290 = vmax.f32 %v226, 0.0
  %v291 = vmax.f32 %v227, 0.0
  %v292 = vmax.f32 %v228, 0.0
  %v293 = vmax.f32 %v229, 0.0
  %v294 = vmax.f32 %v230, 0.0
  %v295 = vmax.f32 %v231, 0.0
  %v296 = vmax.f32 %v232, 0.0
  %v297 = vmax.f32 %v233, 0.0
  %v298 = vmax.f32 %v234, 0.0
  %v299 = vmax.f32 %v235, 0.0
  %v300 = vmax.f32 %v236, 0.0
  %v301 = vmax.f32 %v237, 0.0
  %302 = vst [vmem:[%s4] sm:$0xff] %v238
  %303 = vst [vmem:[%s4 + $0x8] sm:$0xff] %v239
  %304 = vst [vmem:[%s4 + $0x10] sm:$0xff] %v240
  %305 = vst [vmem:[%s4 + $0x18] sm:$0xff] %v241
  %306 = vst [vmem:[%s4 + $0x20] sm:$0xff] %v242
  %307 = vst [vmem:[%s4 + $0x28] sm:$0xff] %v243
  %308 = vst [vmem:[%s4 + $0x30] sm:$0xff] %v244
  %309 = vst [vmem:[%s4 + $0x38] sm:$0xff] %v245
  %310 = vst [vmem:[%s4 + $0x40] sm:$0xff] %v246
  %311 = vst [vmem:[%s4 + $0x48] sm:$0xff] %v247
  %312 = vst [vmem:[%s4 + $0x50] sm:$0xff] %v248
  %313 = vst [vmem:[%s4 + $0x58] sm:$0xff] %v249
  %314 = vst [vmem:[%s4 + $0x60] sm:$0xff] %v250
  %315 = vst [vmem:[%s4 + $0x68] sm:$0xff] %v251
  %316 = vst [vmem:[%s4 + $0x70] sm:$0xff] %v252
  %317 = vst [vmem:[%s4 + $0x78] sm:$0xff] %v253
  %318 = vst [vmem:[%s4 + $0x80] sm:$0xff] %v254
  %319 = vst [vmem:[%s4 + $0x88] sm:$0xff] %v255
  %320 = vst [vmem:[%s4 + $0x90] sm:$0xff] %v256
  %321 = vst [vmem:[%s4 + $0x98] sm:$0xff] %v257
  %322 = vst [vmem:[%s4 + $0xa0] sm:$0xff] %v258
  %323 = vst [vmem:[%s4 + $0xa8] sm:$0xff] %v259
  %324 = vst [vmem:[%s4 + $0xb0] sm:$0xff] %v260
  %325 = vst [vmem:[%s4 + $0xb8] sm:$0xff] %v261
  %326 = vst [vmem:[%s4 + $0xc0] sm:$0xff] %v262
  %327 = vst [vmem:[%s4 + $0xc8] sm:$0xff] %v263
  %328 = vst [vmem:[%s4 + $0xd0] sm:$0xff] %v264
  %329 = vst [vmem:[%s4 + $0xd8] sm:$0xff] %v265
  %330 = vst [vmem:[%s4 + $0xe0] sm:$0xff] %v266
  %331 = vst [vmem:[%s4 + $0xe8] sm:$0xff] %v267
  %332 = vst [vmem:[%s4 + $0xf0] sm:$0xff] %v268
  %333 = vst [vmem:[%s4 + $0xf8] sm:$0xff] %v269
  %334 = vst [vmem:[%s4 + $0x100] sm:$0xff] %v270
  %335 = vst [vmem:[%s4 + $0x108] sm:$0xff] %v271
  %336 = vst [vmem:[%s4 + $0x110] sm:$0xff] %v272
  %337 = vst [vmem:[%s4 + $0x118] sm:$0xff] %v273
  %338 = vst [vmem:[%s4 + $0x120] sm:$0xff] %v274
  %339 = vst [vmem:[%s4 + $0x128] sm:$0xff] %v275
  %340 = vst [vmem:[%s4 + $0x130] sm:$0xff] %v276
  %341 = vst [vmem:[%s4 + $0x138] sm:$0xff] %v277
  %342 = vst [vmem:[%s4 + $0x140] sm:$0xff] %v278
  %343 = vst [vmem:[%s4 + $0x148] sm:$0xff] %v279
  %344 = vst [vmem:[%s4 + $0x150] sm:$0xff] %v280
  %345 = vst [vmem:[%s4 + $0x158] sm:$0xff] %v281
  %346 = vst [vmem:[%s4 + $0x160] sm:$0xff] %v282
  %347 = vst [vmem:[%s4 + $0x168] sm:$0xff] %v283
  %348 = vst [vmem:[%s4 + $0x170] sm:$0xff] %v284
  %349 = vst [vmem:[%s4 + $0x178] sm:$0xff] %v285
  %350 = vst [vmem:[%s4 + $0x180] sm:$0xff] %v286
  %351 = vst [vmem:[%s4 + $0x188] sm:$0xff] %v287
  %352 = vst [vmem:[%s4 + $0x190] sm:$0xff] %v288
  %353 = vst [vmem:[%s4 + $0x198] sm:$0xff] %v289
  %354 = vst [vmem:[%s4 + $0x1a0] sm:$0xff] %v290
  %355 = vst [vmem:[%s4 + $0x1a8] sm:$0xff] %v291
  %356 = vst [vmem:[%s4 + $0x1b0] sm:$0xff] %v292
  %357 = vst [vmem:[%s4 + $0x1b8] sm:$0xff] %v293
  %358 = vst [vmem:[%s4 + $0x1c0] sm:$0xff] %v294
  %359 = vst [vmem:[%s4 + $0x1c8] sm:$0xff] %v295
  %360 = vst [vmem:[%s4 + $0x1d0] sm:$0xff] %v296
  %361 = vst [vmem:[%s4 + $0x1d8] sm:$0xff] %v297
  %362 = vst [vmem:[%s4 + $0x1e0] sm:$0xff] %v298
  %363 = vst [vmem:[%s4 + $0x1e8] sm:$0xff] %v299
  %364 = vst [vmem:[%s4 + $0x1f0] sm:$0xff] %v300
  %365 = vst [vmem:[%s4 + $0x1f8] sm:$0xff] %v301
  // Predicated region
  $region18: #{dilation_conv_module_forward.3} parent=0 // pred_check
    _
  $region19: #{dilation_conv_module_forward.3} parent=0 // pred_check_branch
    %367 = sbr.rel (0) target = $region21
  $region20: #{dilation_conv_module_forward.3} parent=0 // pred_region
    _
  $region21: #{dilation_conv_module_forward.3} parent=0 // pred_fallthru
    _
  // Predicated region
  $region22: #{dilation_conv_module_forward.3} parent=0 // pred_check
    _
  $region23: #{dilation_conv_module_forward.3} parent=0 // pred_check_branch
    %369 = sbr.rel (0) target = $region25
  $region24: #{dilation_conv_module_forward.3} parent=0 // pred_region
    _
  $region25: #{dilation_conv_module_forward.3} parent=0 // pred_fallthru
    _

// kernel: dilation_conv_module_forward.2
$region0: #{dilation_conv_module_forward.2}
  #allocation0 [shape = 'u32[]', space=smem, size = 0x4, offset = 0x4, fixed_abs, tag = 'smem constant byte address 0x4 - core index']
  #allocation1 [shape = 'u32[72,128]{1,0:T(1,128)}', space=vmem, size = 0x9000, scoped, tag = 'internal scratch']
  %s0 = inlined_call_operand.vmem [shape: f32[512,36], index: 0, kind: input, shape index: {}]
  %s1 = inlined_call_operand.vmem [shape: f32[36,128], index: 1, kind: input, shape index: {}]
  %s2 = inlined_call_operand.vmem [shape: f32[512,128], index: 2, kind: output, shape index: {0}]
  %s3 = inlined_call_operand.vmem [shape: f32[2,128], index: 3, kind: output, shape index: {1}]
  %4 = xla_tuple %s2, %s3
  %s5 = sld [smem:[#allocation0]]
  $region30: #{dilation_conv_module_forward.2} parent=0
    _
  %s7 = ssub.s32 1, %s5
  %s8 = scalar_select 0, %s7, %s5
  // Predicated region
  $region2: #{dilation_conv_module_forward.2} parent=0 // pred_check
    _
  $region3: #{dilation_conv_module_forward.2} parent=0 // pred_check_branch
    %10 = sbr.rel (0) target = $region5
  $region4: #{dilation_conv_module_forward.2} parent=0 // pred_region
    _
  $region5: #{dilation_conv_module_forward.2} parent=0 // pred_fallthru
    _
  // Predicated region
  $region6: #{dilation_conv_module_forward.2} parent=0 // pred_check
    _
  $region7: #{dilation_conv_module_forward.2} parent=0 // pred_check_branch
    %12 = sbr.rel (0) target = $region9
  $region8: #{dilation_conv_module_forward.2} parent=0 // pred_region
    _
  $region9: #{dilation_conv_module_forward.2} parent=0 // pred_fallthru
    _
  %v13 = vld [vmem:[%s0] sm:$0xff]
  %v14 = vld [vmem:[%s0 + $0x8] sm:$0xff]
  %v15 = vld [vmem:[%s0 + $0x10] sm:$0xff]
  %v16 = vld [vmem:[%s0 + $0x18] sm:$0xff]
  %v17 = vld [vmem:[%s0 + $0x20] sm:$0xff]
  %v18 = vld [vmem:[%s0 + $0x28] sm:$0xff]
  %v19 = vld [vmem:[%s0 + $0x30] sm:$0xff]
  %v20 = vld [vmem:[%s0 + $0x38] sm:$0xff]
  %v21 = vld [vmem:[%s0 + $0x40] sm:$0xff]
  %v22 = vld [vmem:[%s0 + $0x48] sm:$0xff]
  %v23 = vld [vmem:[%s0 + $0x50] sm:$0xff]
  %v24 = vld [vmem:[%s0 + $0x58] sm:$0xff]
  %v25 = vld [vmem:[%s0 + $0x60] sm:$0xff]
  %v26 = vld [vmem:[%s0 + $0x68] sm:$0xff]
  %v27 = vld [vmem:[%s0 + $0x70] sm:$0xff]
  %v28 = vld [vmem:[%s0 + $0x78] sm:$0xff]
  %v29 = vld [vmem:[%s0 + $0x80] sm:$0xff]
  %v30 = vld [vmem:[%s0 + $0x88] sm:$0xff]
  %v31 = vld [vmem:[%s0 + $0x90] sm:$0xff]
  %v32 = vld [vmem:[%s0 + $0x98] sm:$0xff]
  %v33 = vld [vmem:[%s0 + $0xa0] sm:$0xff]
  %v34 = vld [vmem:[%s0 + $0xa8] sm:$0xff]
  %v35 = vld [vmem:[%s0 + $0xb0] sm:$0xff]
  %v36 = vld [vmem:[%s0 + $0xb8] sm:$0xff]
  %v37 = vld [vmem:[%s0 + $0xc0] sm:$0xff]
  %v38 = vld [vmem:[%s0 + $0xc8] sm:$0xff]
  %v39 = vld [vmem:[%s0 + $0xd0] sm:$0xff]
  %v40 = vld [vmem:[%s0 + $0xd8] sm:$0xff]
  %v41 = vld [vmem:[%s0 + $0xe0] sm:$0xff]
  %v42 = vld [vmem:[%s0 + $0xe8] sm:$0xff]
  %v43 = vld [vmem:[%s0 + $0xf0] sm:$0xff]
  %v44 = vld [vmem:[%s0 + $0xf8] sm:$0xff]
  %v45 = vld [vmem:[%s0 + $0x100] sm:$0xff]
  %v46 = vld [vmem:[%s0 + $0x108] sm:$0xff]
  %v47 = vld [vmem:[%s0 + $0x110] sm:$0xff]
  %v48 = vld [vmem:[%s0 + $0x118] sm:$0xff]
  %v49 = vld [vmem:[%s0 + $0x120] sm:$0xff]
  %v50 = vld [vmem:[%s0 + $0x128] sm:$0xff]
  %v51 = vld [vmem:[%s0 + $0x130] sm:$0xff]
  %v52 = vld [vmem:[%s0 + $0x138] sm:$0xff]
  %v53 = vld [vmem:[%s0 + $0x140] sm:$0xff]
  %v54 = vld [vmem:[%s0 + $0x148] sm:$0xff]
  %v55 = vld [vmem:[%s0 + $0x150] sm:$0xff]
  %v56 = vld [vmem:[%s0 + $0x158] sm:$0xff]
  %v57 = vld [vmem:[%s0 + $0x160] sm:$0xff]
  %v58 = vld [vmem:[%s0 + $0x168] sm:$0xff]
  %v59 = vld [vmem:[%s0 + $0x170] sm:$0xff]
  %v60 = vld [vmem:[%s0 + $0x178] sm:$0xff]
  %v61 = vld [vmem:[%s0 + $0x180] sm:$0xff]
  %v62 = vld [vmem:[%s0 + $0x188] sm:$0xff]
  %v63 = vld [vmem:[%s0 + $0x190] sm:$0xff]
  %v64 = vld [vmem:[%s0 + $0x198] sm:$0xff]
  %v65 = vld [vmem:[%s0 + $0x1a0] sm:$0xff]
  %v66 = vld [vmem:[%s0 + $0x1a8] sm:$0xff]
  %v67 = vld [vmem:[%s0 + $0x1b0] sm:$0xff]
  %v68 = vld [vmem:[%s0 + $0x1b8] sm:$0xff]
  %v69 = vld [vmem:[%s0 + $0x1c0] sm:$0xff]
  %v70 = vld [vmem:[%s0 + $0x1c8] sm:$0xff]
  %v71 = vld [vmem:[%s0 + $0x1d0] sm:$0xff]
  %v72 = vld [vmem:[%s0 + $0x1d8] sm:$0xff]
  %v73 = vld [vmem:[%s0 + $0x1e0] sm:$0xff]
  %v74 = vld [vmem:[%s0 + $0x1e8] sm:$0xff]
  %v75 = vld [vmem:[%s0 + $0x1f0] sm:$0xff]
  %v76 = vld [vmem:[%s0 + $0x1f8] sm:$0xff]
  %v77 = vld [vmem:[%s1] sm:$0xff]
  %v78 = vld [vmem:[%s1 + $0x8] sm:$0xff]
  %v79 = vld [vmem:[%s1 + $0x10] sm:$0xff]
  %v80 = vld [vmem:[%s1 + $0x18] sm:$0xff]
  %v81 = vld [vmem:[%s1 + $0x20] sm:$0xf]
  %vm82 = vcmask 293888
  %v84 = vsel %vm82, %v13, 0
  %v87 = vsel %vm82, %v14, 0
  %v90 = vsel %vm82, %v15, 0
  %v93 = vsel %vm82, %v16, 0
  %v96 = vsel %vm82, %v17, 0
  %v99 = vsel %vm82, %v18, 0
  %v102 = vsel %vm82, %v19, 0
  %v105 = vsel %vm82, %v20, 0
  %v108 = vsel %vm82, %v21, 0
  %v111 = vsel %vm82, %v22, 0
  %v114 = vsel %vm82, %v23, 0
  %v117 = vsel %vm82, %v24, 0
  %v120 = vsel %vm82, %v25, 0
  %v123 = vsel %vm82, %v26, 0
  %v126 = vsel %vm82, %v27, 0
  %v129 = vsel %vm82, %v28, 0
  %v132 = vsel %vm82, %v29, 0
  %v135 = vsel %vm82, %v30, 0
  %v138 = vsel %vm82, %v31, 0
  %v141 = vsel %vm82, %v32, 0
  %v144 = vsel %vm82, %v33, 0
  %v147 = vsel %vm82, %v34, 0
  %v150 = vsel %vm82, %v35, 0
  %v153 = vsel %vm82, %v36, 0
  %v156 = vsel %vm82, %v37, 0
  %v159 = vsel %vm82, %v38, 0
  %v162 = vsel %vm82, %v39, 0
  %v165 = vsel %vm82, %v40, 0
  %v168 = vsel %vm82, %v41, 0
  %v171 = vsel %vm82, %v42, 0
  %v174 = vsel %vm82, %v43, 0
  %v177 = vsel %vm82, %v44, 0
  %v180 = vsel %vm82, %v45, 0
  %v183 = vsel %vm82, %v46, 0
  %v186 = vsel %vm82, %v47, 0
  %v189 = vsel %vm82, %v48, 0
  %v192 = vsel %vm82, %v49, 0
  %v195 = vsel %vm82, %v50, 0
  %v198 = vsel %vm82, %v51, 0
  %v201 = vsel %vm82, %v52, 0
  %v204 = vsel %vm82, %v53, 0
  %v207 = vsel %vm82, %v54, 0
  %v210 = vsel %vm82, %v55, 0
  %v213 = vsel %vm82, %v56, 0
  %v216 = vsel %vm82, %v57, 0
  %v219 = vsel %vm82, %v58, 0
  %v222 = vsel %vm82, %v59, 0
  %v225 = vsel %vm82, %v60, 0
  %v228 = vsel %vm82, %v61, 0
  %v231 = vsel %vm82, %v62, 0
  %v234 = vsel %vm82, %v63, 0
  %v237 = vsel %vm82, %v64, 0
  %v240 = vsel %vm82, %v65, 0
  %v243 = vsel %vm82, %v66, 0
  %v246 = vsel %vm82, %v67, 0
  %v249 = vsel %vm82, %v68, 0
  %v252 = vsel %vm82, %v69, 0
  %v255 = vsel %vm82, %v70, 0
  %v258 = vsel %vm82, %v71, 0
  %v261 = vsel %vm82, %v72, 0
  %v264 = vsel %vm82, %v73, 0
  %v267 = vsel %vm82, %v74, 0
  %v270 = vsel %vm82, %v75, 0
  %v273 = vsel %vm82, %v76, 0
  %vm275 = vcmask 1043456
  %v277 = vsel %vm275, %v81, 0
  %279 = vmatpush.msra.mxu0 0.0
  %280 = vmatpush.msra.mxu0 0.0
  %281 = vmatpush.msra.mxu0 0.0
  %282 = vmatpush.msra.mxu0 0.0
  %283 = vmatpush.msra.mxu0 0.0
  %284 = vmatpush.msra.mxu0 0.0
  %285 = vmatpush.msra.mxu0 0.0
  %286 = vmatpush.msra.mxu0 0.0
  %287 = vmatpush.msra.mxu0 0.0
  %288 = vmatpush.msra.mxu0 0.0
  %289 = vmatpush.msra.mxu0 0.0
  %v290 = vand.u32 %v277, 4294901760
  %291 = vmatpush.msra.mxu0 %v290
  %v292 = vand.u32 %v80, 4294901760
  %293 = vmatpush.msra.mxu0 %v292
  %v294 = vand.u32 %v79, 4294901760
  %295 = vmatpush.msra.mxu0 %v294
  %v296 = vand.u32 %v78, 4294901760
  %297 = vmatpush.msra.mxu0 %v296
  %v298 = vand.u32 %v77, 4294901760
  %299 = vmatpush.msra.mxu0 %v298
  %v300 = vand.u32 %v84, 4294901760
  %v301 = vsub.f32 %v84, %v300
  %v302 = vand.u32 %v301, 4294901760
  %v303 = vsub.f32 %v301, %v302
  %v304 = vand.u32 %v303, 4294901760
  %305 = vmatmul.f32.gmra.mxu0 %v304
  %v306 = vpop.f32.mrf.mxu0
  %v307 = vadd.f32 0.0, %v306
  %v308 = vand.u32 %v87, 4294901760
  %v309 = vsub.f32 %v87, %v308
  %v310 = vand.u32 %v309, 4294901760
  %v311 = vsub.f32 %v309, %v310
  %v312 = vand.u32 %v311, 4294901760
  %313 = vmatmul.f32.gmra.mxu0 %v312
  %v314 = vpop.f32.mrf.mxu0
  %v315 = vadd.f32 0.0, %v314
  %v316 = vand.u32 %v90, 4294901760
  %v317 = vsub.f32 %v90, %v316
  %v318 = vand.u32 %v317, 4294901760
  %v319 = vsub.f32 %v317, %v318
  %v320 = vand.u32 %v319, 4294901760
  %321 = vmatmul.f32.gmra.mxu0 %v320
  %v322 = vpop.f32.mrf.mxu0
  %v323 = vadd.f32 0.0, %v322
  %v324 = vand.u32 %v93, 4294901760
  %v325 = vsub.f32 %v93, %v324
  %v326 = vand.u32 %v325, 4294901760
  %v327 = vsub.f32 %v325, %v326
  %v328 = vand.u32 %v327, 4294901760
  %329 = vmatmul.f32.gmra.mxu0 %v328
  %v330 = vpop.f32.mrf.mxu0
  %v331 = vadd.f32 0.0, %v330
  %v332 = vand.u32 %v96, 4294901760
  %v333 = vsub.f32 %v96, %v332
  %v334 = vand.u32 %v333, 4294901760
  %v335 = vsub.f32 %v333, %v334
  %v336 = vand.u32 %v335, 4294901760
  %337 = vmatmul.f32.gmra.mxu0 %v336
  %v338 = vpop.f32.mrf.mxu0
  %v339 = vadd.f32 0.0, %v338
  %v340 = vand.u32 %v99, 4294901760
  %v341 = vsub.f32 %v99, %v340
  %v342 = vand.u32 %v341, 4294901760
  %v343 = vsub.f32 %v341, %v342
  %v344 = vand.u32 %v343, 4294901760
  %345 = vmatmul.f32.gmra.mxu0 %v344
  %v346 = vpop.f32.mrf.mxu0
  %v347 = vadd.f32 0.0, %v346
  %v348 = vand.u32 %v102, 4294901760
  %v349 = vsub.f32 %v102, %v348
  %v350 = vand.u32 %v349, 4294901760
  %v351 = vsub.f32 %v349, %v350
  %v352 = vand.u32 %v351, 4294901760
  %353 = vmatmul.f32.gmra.mxu0 %v352
  %v354 = vpop.f32.mrf.mxu0
  %v355 = vadd.f32 0.0, %v354
  %v356 = vand.u32 %v105, 4294901760
  %v357 = vsub.f32 %v105, %v356
  %v358 = vand.u32 %v357, 4294901760
  %v359 = vsub.f32 %v357, %v358
  %v360 = vand.u32 %v359, 4294901760
  %361 = vmatmul.f32.gmra.mxu0 %v360
  %v362 = vpop.f32.mrf.mxu0
  %v363 = vadd.f32 0.0, %v362
  %v364 = vand.u32 %v108, 4294901760
  %v365 = vsub.f32 %v108, %v364
  %v366 = vand.u32 %v365, 4294901760
  %v367 = vsub.f32 %v365, %v366
  %v368 = vand.u32 %v367, 4294901760
  %369 = vmatmul.f32.gmra.mxu0 %v368
  %v370 = vpop.f32.mrf.mxu0
  %v371 = vadd.f32 0.0, %v370
  %v372 = vand.u32 %v111, 4294901760
  %v373 = vsub.f32 %v111, %v372
  %v374 = vand.u32 %v373, 4294901760
  %v375 = vsub.f32 %v373, %v374
  %v376 = vand.u32 %v375, 4294901760
  %377 = vmatmul.f32.gmra.mxu0 %v376
  %v378 = vpop.f32.mrf.mxu0
  %v379 = vadd.f32 0.0, %v378
  %v380 = vand.u32 %v114, 4294901760
  %v381 = vsub.f32 %v114, %v380
  %v382 = vand.u32 %v381, 4294901760
  %v383 = vsub.f32 %v381, %v382
  %v384 = vand.u32 %v383, 4294901760
  %385 = vmatmul.f32.gmra.mxu0 %v384
  %v386 = vpop.f32.mrf.mxu0
  %v387 = vadd.f32 0.0, %v386
  %v388 = vand.u32 %v117, 4294901760
  %v389 = vsub.f32 %v117, %v388
  %v390 = vand.u32 %v389, 4294901760
  %v391 = vsub.f32 %v389, %v390
  %v392 = vand.u32 %v391, 4294901760
  %393 = vmatmul.f32.gmra.mxu0 %v392
  %v394 = vpop.f32.mrf.mxu0
  %v395 = vadd.f32 0.0, %v394
  %v396 = vand.u32 %v120, 4294901760
  %v397 = vsub.f32 %v120, %v396
  %v398 = vand.u32 %v397, 4294901760
  %v399 = vsub.f32 %v397, %v398
  %v400 = vand.u32 %v399, 4294901760
  %401 = vmatmul.f32.gmra.mxu0 %v400
  %v402 = vpop.f32.mrf.mxu0
  %v403 = vadd.f32 0.0, %v402
  %v404 = vand.u32 %v123, 4294901760
  %v405 = vsub.f32 %v123, %v404
  %v406 = vand.u32 %v405, 4294901760
  %v407 = vsub.f32 %v405, %v406
  %v408 = vand.u32 %v407, 4294901760
  %409 = vmatmul.f32.gmra.mxu0 %v408
  %v410 = vpop.f32.mrf.mxu0
  %v411 = vadd.f32 0.0, %v410
  %v412 = vand.u32 %v126, 4294901760
  %v413 = vsub.f32 %v126, %v412
  %v414 = vand.u32 %v413, 4294901760
  %v415 = vsub.f32 %v413, %v414
  %v416 = vand.u32 %v415, 4294901760
  %417 = vmatmul.f32.gmra.mxu0 %v416
  %v418 = vpop.f32.mrf.mxu0
  %v419 = vadd.f32 0.0, %v418
  %v420 = vand.u32 %v129, 4294901760
  %v421 = vsub.f32 %v129, %v420
  %v422 = vand.u32 %v421, 4294901760
  %v423 = vsub.f32 %v421, %v422
  %v424 = vand.u32 %v423, 4294901760
  %425 = vmatmul.f32.gmra.mxu0 %v424
  %v426 = vpop.f32.mrf.mxu0
  %v427 = vadd.f32 0.0, %v426
  %v428 = vand.u32 %v132, 4294901760
  %v429 = vsub.f32 %v132, %v428
  %v430 = vand.u32 %v429, 4294901760
  %v431 = vsub.f32 %v429, %v430
  %v432 = vand.u32 %v431, 4294901760
  %433 = vmatmul.f32.gmra.mxu0 %v432
  %v434 = vpop.f32.mrf.mxu0
  %v435 = vadd.f32 0.0, %v434
  %v436 = vand.u32 %v135, 4294901760
  %v437 = vsub.f32 %v135, %v436
  %v438 = vand.u32 %v437, 4294901760
  %v439 = vsub.f32 %v437, %v438
  %v440 = vand.u32 %v439, 4294901760
  %441 = vmatmul.f32.gmra.mxu0 %v440
  %v442 = vpop.f32.mrf.mxu0
  %v443 = vadd.f32 0.0, %v442
  %v444 = vand.u32 %v138, 4294901760
  %v445 = vsub.f32 %v138, %v444
  %v446 = vand.u32 %v445, 4294901760
  %v447 = vsub.f32 %v445, %v446
  %v448 = vand.u32 %v447, 4294901760
  %449 = vmatmul.f32.gmra.mxu0 %v448
  %v450 = vpop.f32.mrf.mxu0
  %v451 = vadd.f32 0.0, %v450
  %v452 = vand.u32 %v141, 4294901760
  %v453 = vsub.f32 %v141, %v452
  %v454 = vand.u32 %v453, 4294901760
  %v455 = vsub.f32 %v453, %v454
  %v456 = vand.u32 %v455, 4294901760
  %457 = vmatmul.f32.gmra.mxu0 %v456
  %v458 = vpop.f32.mrf.mxu0
  %v459 = vadd.f32 0.0, %v458
  %v460 = vand.u32 %v144, 4294901760
  %v461 = vsub.f32 %v144, %v460
  %v462 = vand.u32 %v461, 4294901760
  %v463 = vsub.f32 %v461, %v462
  %v464 = vand.u32 %v463, 4294901760
  %465 = vmatmul.f32.gmra.mxu0 %v464
  %v466 = vpop.f32.mrf.mxu0
  %v467 = vadd.f32 0.0, %v466
  %v468 = vand.u32 %v147, 4294901760
  %v469 = vsub.f32 %v147, %v468
  %v470 = vand.u32 %v469, 4294901760
  %v471 = vsub.f32 %v469, %v470
  %v472 = vand.u32 %v471, 4294901760
  %473 = vmatmul.f32.gmra.mxu0 %v472
  %v474 = vpop.f32.mrf.mxu0
  %v475 = vadd.f32 0.0, %v474
  %v476 = vand.u32 %v150, 4294901760
  %v477 = vsub.f32 %v150, %v476
  %v478 = vand.u32 %v477, 4294901760
  %v479 = vsub.f32 %v477, %v478
  %v480 = vand.u32 %v479, 4294901760
  %481 = vmatmul.f32.gmra.mxu0 %v480
  %v482 = vpop.f32.mrf.mxu0
  %v483 = vadd.f32 0.0, %v482
  %v484 = vand.u32 %v153, 4294901760
  %v485 = vsub.f32 %v153, %v484
  %v486 = vand.u32 %v485, 4294901760
  %v487 = vsub.f32 %v485, %v486
  %v488 = vand.u32 %v487, 4294901760
  %489 = vmatmul.f32.gmra.mxu0 %v488
  %v490 = vpop.f32.mrf.mxu0
  %v491 = vadd.f32 0.0, %v490
  %v492 = vand.u32 %v156, 4294901760
  %v493 = vsub.f32 %v156, %v492
  %v494 = vand.u32 %v493, 4294901760
  %v495 = vsub.f32 %v493, %v494
  %v496 = vand.u32 %v495, 4294901760
  %497 = vmatmul.f32.gmra.mxu0 %v496
  %v498 = vpop.f32.mrf.mxu0
  %v499 = vadd.f32 0.0, %v498
  %v500 = vand.u32 %v159, 4294901760
  %v501 = vsub.f32 %v159, %v500
  %v502 = vand.u32 %v501, 4294901760
  %v503 = vsub.f32 %v501, %v502
  %v504 = vand.u32 %v503, 4294901760
  %505 = vmatmul.f32.gmra.mxu0 %v504
  %v506 = vpop.f32.mrf.mxu0
  %v507 = vadd.f32 0.0, %v506
  %v508 = vand.u32 %v162, 4294901760
  %v509 = vsub.f32 %v162, %v508
  %v510 = vand.u32 %v509, 4294901760
  %v511 = vsub.f32 %v509, %v510
  %v512 = vand.u32 %v511, 4294901760
  %513 = vmatmul.f32.gmra.mxu0 %v512
  %v514 = vpop.f32.mrf.mxu0
  %v515 = vadd.f32 0.0, %v514
  %v516 = vand.u32 %v165, 4294901760
  %v517 = vsub.f32 %v165, %v516
  %v518 = vand.u32 %v517, 4294901760
  %v519 = vsub.f32 %v517, %v518
  %v520 = vand.u32 %v519, 4294901760
  %521 = vmatmul.f32.gmra.mxu0 %v520
  %v522 = vpop.f32.mrf.mxu0
  %v523 = vadd.f32 0.0, %v522
  %v524 = vand.u32 %v168, 4294901760
  %v525 = vsub.f32 %v168, %v524
  %v526 = vand.u32 %v525, 4294901760
  %v527 = vsub.f32 %v525, %v526
  %v528 = vand.u32 %v527, 4294901760
  %529 = vmatmul.f32.gmra.mxu0 %v528
  %v530 = vpop.f32.mrf.mxu0
  %v531 = vadd.f32 0.0, %v530
  %v532 = vand.u32 %v171, 4294901760
  %v533 = vsub.f32 %v171, %v532
  %v534 = vand.u32 %v533, 4294901760
  %v535 = vsub.f32 %v533, %v534
  %v536 = vand.u32 %v535, 4294901760
  %537 = vmatmul.f32.gmra.mxu0 %v536
  %v538 = vpop.f32.mrf.mxu0
  %v539 = vadd.f32 0.0, %v538
  %v540 = vand.u32 %v174, 4294901760
  %v541 = vsub.f32 %v174, %v540
  %v542 = vand.u32 %v541, 4294901760
  %v543 = vsub.f32 %v541, %v542
  %v544 = vand.u32 %v543, 4294901760
  %545 = vmatmul.f32.gmra.mxu0 %v544
  %v546 = vpop.f32.mrf.mxu0
  %v547 = vadd.f32 0.0, %v546
  %v548 = vand.u32 %v177, 4294901760
  %v549 = vsub.f32 %v177, %v548
  %v550 = vand.u32 %v549, 4294901760
  %v551 = vsub.f32 %v549, %v550
  %v552 = vand.u32 %v551, 4294901760
  %553 = vmatmul.f32.gmra.mxu0 %v552
  %v554 = vpop.f32.mrf.mxu0
  %v555 = vadd.f32 0.0, %v554
  %v556 = vand.u32 %v180, 4294901760
  %v557 = vsub.f32 %v180, %v556
  %v558 = vand.u32 %v557, 4294901760
  %v559 = vsub.f32 %v557, %v558
  %v560 = vand.u32 %v559, 4294901760
  %561 = vmatmul.f32.gmra.mxu0 %v560
  %v562 = vpop.f32.mrf.mxu0
  %v563 = vadd.f32 0.0, %v562
  %v564 = vand.u32 %v183, 4294901760
  %v565 = vsub.f32 %v183, %v564
  %v566 = vand.u32 %v565, 4294901760
  %v567 = vsub.f32 %v565, %v566
  %v568 = vand.u32 %v567, 4294901760
  %569 = vmatmul.f32.gmra.mxu0 %v568
  %v570 = vpop.f32.mrf.mxu0
  %v571 = vadd.f32 0.0, %v570
  %v572 = vand.u32 %v186, 4294901760
  %v573 = vsub.f32 %v186, %v572
  %v574 = vand.u32 %v573, 4294901760
  %v575 = vsub.f32 %v573, %v574
  %v576 = vand.u32 %v575, 4294901760
  %577 = vmatmul.f32.gmra.mxu0 %v576
  %v578 = vpop.f32.mrf.mxu0
  %v579 = vadd.f32 0.0, %v578
  %v580 = vand.u32 %v189, 4294901760
  %v581 = vsub.f32 %v189, %v580
  %v582 = vand.u32 %v581, 4294901760
  %v583 = vsub.f32 %v581, %v582
  %v584 = vand.u32 %v583, 4294901760
  %585 = vmatmul.f32.gmra.mxu0 %v584
  %v586 = vpop.f32.mrf.mxu0
  %v587 = vadd.f32 0.0, %v586
  %v588 = vand.u32 %v192, 4294901760
  %v589 = vsub.f32 %v192, %v588
  %v590 = vand.u32 %v589, 4294901760
  %v591 = vsub.f32 %v589, %v590
  %v592 = vand.u32 %v591, 4294901760
  %593 = vmatmul.f32.gmra.mxu0 %v592
  %v594 = vpop.f32.mrf.mxu0
  %v595 = vadd.f32 0.0, %v594
  %v596 = vand.u32 %v195, 4294901760
  %v597 = vsub.f32 %v195, %v596
  %v598 = vand.u32 %v597, 4294901760
  %v599 = vsub.f32 %v597, %v598
  %v600 = vand.u32 %v599, 4294901760
  %601 = vmatmul.f32.gmra.mxu0 %v600
  %v602 = vpop.f32.mrf.mxu0
  %v603 = vadd.f32 0.0, %v602
  %v604 = vand.u32 %v198, 4294901760
  %v605 = vsub.f32 %v198, %v604
  %v606 = vand.u32 %v605, 4294901760
  %v607 = vsub.f32 %v605, %v606
  %v608 = vand.u32 %v607, 4294901760
  %609 = vmatmul.f32.gmra.mxu0 %v608
  %v610 = vpop.f32.mrf.mxu0
  %v611 = vadd.f32 0.0, %v610
  %v612 = vand.u32 %v201, 4294901760
  %v613 = vsub.f32 %v201, %v612
  %v614 = vand.u32 %v613, 4294901760
  %v615 = vsub.f32 %v613, %v614
  %v616 = vand.u32 %v615, 4294901760
  %617 = vmatmul.f32.gmra.mxu0 %v616
  %v618 = vpop.f32.mrf.mxu0
  %v619 = vadd.f32 0.0, %v618
  %v620 = vand.u32 %v204, 4294901760
  %v621 = vsub.f32 %v204, %v620
  %v622 = vand.u32 %v621, 4294901760
  %v623 = vsub.f32 %v621, %v622
  %v624 = vand.u32 %v623, 4294901760
  %625 = vmatmul.f32.gmra.mxu0 %v624
  %v626 = vpop.f32.mrf.mxu0
  %v627 = vadd.f32 0.0, %v626
  %v628 = vand.u32 %v207, 4294901760
  %v629 = vsub.f32 %v207, %v628
  %v630 = vand.u32 %v629, 4294901760
  %v631 = vsub.f32 %v629, %v630
  %v632 = vand.u32 %v631, 4294901760
  %633 = vmatmul.f32.gmra.mxu0 %v632
  %v634 = vpop.f32.mrf.mxu0
  %v635 = vadd.f32 0.0, %v634
  %v636 = vand.u32 %v210, 4294901760
  %v637 = vsub.f32 %v210, %v636
  %v638 = vand.u32 %v637, 4294901760
  %v639 = vsub.f32 %v637, %v638
  %v640 = vand.u32 %v639, 4294901760
  %641 = vmatmul.f32.gmra.mxu0 %v640
  %v642 = vpop.f32.mrf.mxu0
  %v643 = vadd.f32 0.0, %v642
  %v644 = vand.u32 %v213, 4294901760
  %v645 = vsub.f32 %v213, %v644
  %v646 = vand.u32 %v645, 4294901760
  %v647 = vsub.f32 %v645, %v646
  %v648 = vand.u32 %v647, 4294901760
  %649 = vmatmul.f32.gmra.mxu0 %v648
  %v650 = vpop.f32.mrf.mxu0
  %v651 = vadd.f32 0.0, %v650
  %v652 = vand.u32 %v216, 4294901760
  %v653 = vsub.f32 %v216, %v652
  %v654 = vand.u32 %v653, 4294901760
  %v655 = vsub.f32 %v653, %v654
  %v656 = vand.u32 %v655, 4294901760
  %657 = vmatmul.f32.gmra.mxu0 %v656
  %v658 = vpop.f32.mrf.mxu0
  %v659 = vadd.f32 0.0, %v658
  %v660 = vand.u32 %v219, 4294901760
  %v661 = vsub.f32 %v219, %v660
  %v662 = vand.u32 %v661, 4294901760
  %v663 = vsub.f32 %v661, %v662
  %v664 = vand.u32 %v663, 4294901760
  %665 = vmatmul.f32.gmra.mxu0 %v664
  %v666 = vpop.f32.mrf.mxu0
  %v667 = vadd.f32 0.0, %v666
  %v668 = vand.u32 %v222, 4294901760
  %v669 = vsub.f32 %v222, %v668
  %v670 = vand.u32 %v669, 4294901760
  %v671 = vsub.f32 %v669, %v670
  %v672 = vand.u32 %v671, 4294901760
  %673 = vmatmul.f32.gmra.mxu0 %v672
  %v674 = vpop.f32.mrf.mxu0
  %v675 = vadd.f32 0.0, %v674
  %v676 = vand.u32 %v225, 4294901760
  %v677 = vsub.f32 %v225, %v676
  %v678 = vand.u32 %v677, 4294901760
  %v679 = vsub.f32 %v677, %v678
  %v680 = vand.u32 %v679, 4294901760
  %681 = vmatmul.f32.gmra.mxu0 %v680
  %v682 = vpop.f32.mrf.mxu0
  %v683 = vadd.f32 0.0, %v682
  %v684 = vand.u32 %v228, 4294901760
  %v685 = vsub.f32 %v228, %v684
  %v686 = vand.u32 %v685, 4294901760
  %v687 = vsub.f32 %v685, %v686
  %v688 = vand.u32 %v687, 4294901760
  %689 = vmatmul.f32.gmra.mxu0 %v688
  %v690 = vpop.f32.mrf.mxu0
  %v691 = vadd.f32 0.0, %v690
  %v692 = vand.u32 %v231, 4294901760
  %v693 = vsub.f32 %v231, %v692
  %v694 = vand.u32 %v693, 4294901760
  %v695 = vsub.f32 %v693, %v694
  %v696 = vand.u32 %v695, 4294901760
  %697 = vmatmul.f32.gmra.mxu0 %v696
  %v698 = vpop.f32.mrf.mxu0
  %v699 = vadd.f32 0.0, %v698
  %v700 = vand.u32 %v234, 4294901760
  %v701 = vsub.f32 %v234, %v700
  %v702 = vand.u32 %v701, 4294901760
  %v703 = vsub.f32 %v701, %v702
  %v704 = vand.u32 %v703, 4294901760
  %705 = vmatmul.f32.gmra.mxu0 %v704
  %v706 = vpop.f32.mrf.mxu0
  %v707 = vadd.f32 0.0, %v706
  %v708 = vand.u32 %v237, 4294901760
  %v709 = vsub.f32 %v237, %v708
  %v710 = vand.u32 %v709, 4294901760
  %v711 = vsub.f32 %v709, %v710
  %v712 = vand.u32 %v711, 4294901760
  %713 = vmatmul.f32.gmra.mxu0 %v712
  %v714 = vpop.f32.mrf.mxu0
  %v715 = vadd.f32 0.0, %v714
  %v716 = vand.u32 %v240, 4294901760
  %v717 = vsub.f32 %v240, %v716
  %v718 = vand.u32 %v717, 4294901760
  %v719 = vsub.f32 %v717, %v718
  %v720 = vand.u32 %v719, 4294901760
  %721 = vmatmul.f32.gmra.mxu0 %v720
  %v722 = vpop.f32.mrf.mxu0
  %v723 = vadd.f32 0.0, %v722
  %v724 = vand.u32 %v243, 4294901760
  %v725 = vsub.f32 %v243, %v724
  %v726 = vand.u32 %v725, 4294901760
  %v727 = vsub.f32 %v725, %v726
  %v728 = vand.u32 %v727, 4294901760
  %729 = vmatmul.f32.gmra.mxu0 %v728
  %v730 = vpop.f32.mrf.mxu0
  %v731 = vadd.f32 0.0, %v730
  %v732 = vand.u32 %v246, 4294901760
  %v733 = vsub.f32 %v246, %v732
  %v734 = vand.u32 %v733, 4294901760
  %v735 = vsub.f32 %v733, %v734
  %v736 = vand.u32 %v735, 4294901760
  %737 = vmatmul.f32.gmra.mxu0 %v736
  %v738 = vpop.f32.mrf.mxu0
  %v739 = vadd.f32 0.0, %v738
  %v740 = vand.u32 %v249, 4294901760
  %v741 = vsub.f32 %v249, %v740
  %v742 = vand.u32 %v741, 4294901760
  %v743 = vsub.f32 %v741, %v742
  %v744 = vand.u32 %v743, 4294901760
  %745 = vmatmul.f32.gmra.mxu0 %v744
  %v746 = vpop.f32.mrf.mxu0
  %v747 = vadd.f32 0.0, %v746
  %v748 = vand.u32 %v252, 4294901760
  %v749 = vsub.f32 %v252, %v748
  %v750 = vand.u32 %v749, 4294901760
  %v751 = vsub.f32 %v749, %v750
  %v752 = vand.u32 %v751, 4294901760
  %753 = vmatmul.f32.gmra.mxu0 %v752
  %v754 = vpop.f32.mrf.mxu0
  %v755 = vadd.f32 0.0, %v754
  %v756 = vand.u32 %v255, 4294901760
  %v757 = vsub.f32 %v255, %v756
  %v758 = vand.u32 %v757, 4294901760
  %v759 = vsub.f32 %v757, %v758
  %v760 = vand.u32 %v759, 4294901760
  %761 = vmatmul.f32.gmra.mxu0 %v760
  %v762 = vpop.f32.mrf.mxu0
  %v763 = vadd.f32 0.0, %v762
  %v764 = vand.u32 %v258, 4294901760
  %v765 = vsub.f32 %v258, %v764
  %v766 = vand.u32 %v765, 4294901760
  %v767 = vsub.f32 %v765, %v766
  %v768 = vand.u32 %v767, 4294901760
  %769 = vmatmul.f32.gmra.mxu0 %v768
  %v770 = vpop.f32.mrf.mxu0
  %v771 = vadd.f32 0.0, %v770
  %v772 = vand.u32 %v261, 4294901760
  %v773 = vsub.f32 %v261, %v772
  %v774 = vand.u32 %v773, 4294901760
  %v775 = vsub.f32 %v773, %v774
  %v776 = vand.u32 %v775, 4294901760
  %777 = vmatmul.f32.gmra.mxu0 %v776
  %v778 = vpop.f32.mrf.mxu0
  %v779 = vadd.f32 0.0, %v778
  %v780 = vand.u32 %v264, 4294901760
  %v781 = vsub.f32 %v264, %v780
  %v782 = vand.u32 %v781, 4294901760
  %v783 = vsub.f32 %v781, %v782
  %v784 = vand.u32 %v783, 4294901760
  %785 = vmatmul.f32.gmra.mxu0 %v784
  %v786 = vpop.f32.mrf.mxu0
  %v787 = vadd.f32 0.0, %v786
  %v788 = vand.u32 %v267, 4294901760
  %v789 = vsub.f32 %v267, %v788
  %v790 = vand.u32 %v789, 4294901760
  %v791 = vsub.f32 %v789, %v790
  %v792 = vand.u32 %v791, 4294901760
  %793 = vmatmul.f32.gmra.mxu0 %v792
  %v794 = vpop.f32.mrf.mxu0
  %v795 = vadd.f32 0.0, %v794
  %v796 = vand.u32 %v270, 4294901760
  %v797 = vsub.f32 %v270, %v796
  %v798 = vand.u32 %v797, 4294901760
  %v799 = vsub.f32 %v797, %v798
  %v800 = vand.u32 %v799, 4294901760
  %801 = vmatmul.f32.gmra.mxu0 %v800
  %v802 = vpop.f32.mrf.mxu0
  %v803 = vadd.f32 0.0, %v802
  %v804 = vand.u32 %v273, 4294901760
  %v805 = vsub.f32 %v273, %v804
  %v806 = vand.u32 %v805, 4294901760
  %v807 = vsub.f32 %v805, %v806
  %v808 = vand.u32 %v807, 4294901760
  %809 = vmatmul.f32.gmra.mxu0 %v808
  %v810 = vpop.f32.mrf.mxu0
  %v811 = vadd.f32 0.0, %v810
  %812 = vdwg.mxu0
  %813 = vmatpush.msra.mxu0 0.0
  %814 = vmatpush.msra.mxu0 0.0
  %815 = vmatpush.msra.mxu0 0.0
  %816 = vmatpush.msra.mxu0 0.0
  %817 = vmatpush.msra.mxu0 0.0
  %818 = vmatpush.msra.mxu0 0.0
  %819 = vmatpush.msra.mxu0 0.0
  %820 = vmatpush.msra.mxu0 0.0
  %821 = vmatpush.msra.mxu0 0.0
  %822 = vmatpush.msra.mxu0 0.0
  %823 = vmatpush.msra.mxu0 0.0
  %v824 = vand.u32 %v277, 4294901760
  %v825 = vsub.f32 %v277, %v824
  %v826 = vand.u32 %v825, 4294901760
  %v827 = vsub.f32 %v825, %v826
  %v828 = vand.u32 %v827, 4294901760
  %829 = vmatpush.msra.mxu0 %v828
  %v830 = vand.u32 %v80, 4294901760
  %v831 = vsub.f32 %v80, %v830
  %v832 = vand.u32 %v831, 4294901760
  %v833 = vsub.f32 %v831, %v832
  %v834 = vand.u32 %v833, 4294901760
  %835 = vmatpush.msra.mxu0 %v834
  %v836 = vand.u32 %v79, 4294901760
  %v837 = vsub.f32 %v79, %v836
  %v838 = vand.u32 %v837, 4294901760
  %v839 = vsub.f32 %v837, %v838
  %v840 = vand.u32 %v839, 4294901760
  %841 = vmatpush.msra.mxu0 %v840
  %v842 = vand.u32 %v78, 4294901760
  %v843 = vsub.f32 %v78, %v842
  %v844 = vand.u32 %v843, 4294901760
  %v845 = vsub.f32 %v843, %v844
  %v846 = vand.u32 %v845, 4294901760
  %847 = vmatpush.msra.mxu0 %v846
  %v848 = vand.u32 %v77, 4294901760
  %v849 = vsub.f32 %v77, %v848
  %v850 = vand.u32 %v849, 4294901760
  %v851 = vsub.f32 %v849, %v850
  %v852 = vand.u32 %v851, 4294901760
  %853 = vmatpush.msra.mxu0 %v852
  %v854 = vand.u32 %v84, 4294901760
  %855 = vmatmul.f32.gmra.mxu0 %v854
  %v856 = vpop.f32.mrf.mxu0
  %v857 = vadd.f32 %v307, %v856
  %v858 = vand.u32 %v87, 4294901760
  %859 = vmatmul.f32.gmra.mxu0 %v858
  %v860 = vpop.f32.mrf.mxu0
  %v861 = vadd.f32 %v315, %v860
  %v862 = vand.u32 %v90, 4294901760
  %863 = vmatmul.f32.gmra.mxu0 %v862
  %v864 = vpop.f32.mrf.mxu0
  %v865 = vadd.f32 %v323, %v864
  %v866 = vand.u32 %v93, 4294901760
  %867 = vmatmul.f32.gmra.mxu0 %v866
  %v868 = vpop.f32.mrf.mxu0
  %v869 = vadd.f32 %v331, %v868
  %v870 = vand.u32 %v96, 4294901760
  %871 = vmatmul.f32.gmra.mxu0 %v870
  %v872 = vpop.f32.mrf.mxu0
  %v873 = vadd.f32 %v339, %v872
  %v874 = vand.u32 %v99, 4294901760
  %875 = vmatmul.f32.gmra.mxu0 %v874
  %v876 = vpop.f32.mrf.mxu0
  %v877 = vadd.f32 %v347, %v876
  %v878 = vand.u32 %v102, 4294901760
  %879 = vmatmul.f32.gmra.mxu0 %v878
  %v880 = vpop.f32.mrf.mxu0
  %v881 = vadd.f32 %v355, %v880
  %v882 = vand.u32 %v105, 4294901760
  %883 = vmatmul.f32.gmra.mxu0 %v882
  %v884 = vpop.f32.mrf.mxu0
  %v885 = vadd.f32 %v363, %v884
  %v886 = vand.u32 %v108, 4294901760
  %887 = vmatmul.f32.gmra.mxu0 %v886
  %v888 = vpop.f32.mrf.mxu0
  %v889 = vadd.f32 %v371, %v888
  %v890 = vand.u32 %v111, 4294901760
  %891 = vmatmul.f32.gmra.mxu0 %v890
  %v892 = vpop.f32.mrf.mxu0
  %v893 = vadd.f32 %v379, %v892
  %v894 = vand.u32 %v114, 4294901760
  %895 = vmatmul.f32.gmra.mxu0 %v894
  %v896 = vpop.f32.mrf.mxu0
  %v897 = vadd.f32 %v387, %v896
  %v898 = vand.u32 %v117, 4294901760
  %899 = vmatmul.f32.gmra.mxu0 %v898
  %v900 = vpop.f32.mrf.mxu0
  %v901 = vadd.f32 %v395, %v900
  %v902 = vand.u32 %v120, 4294901760
  %903 = vmatmul.f32.gmra.mxu0 %v902
  %v904 = vpop.f32.mrf.mxu0
  %v905 = vadd.f32 %v403, %v904
  %v906 = vand.u32 %v123, 4294901760
  %907 = vmatmul.f32.gmra.mxu0 %v906
  %v908 = vpop.f32.mrf.mxu0
  %v909 = vadd.f32 %v411, %v908
  %v910 = vand.u32 %v126, 4294901760
  %911 = vmatmul.f32.gmra.mxu0 %v910
  %v912 = vpop.f32.mrf.mxu0
  %v913 = vadd.f32 %v419, %v912
  %v914 = vand.u32 %v129, 4294901760
  %915 = vmatmul.f32.gmra.mxu0 %v914
  %v916 = vpop.f32.mrf.mxu0
  %v917 = vadd.f32 %v427, %v916
  %v918 = vand.u32 %v132, 4294901760
  %919 = vmatmul.f32.gmra.mxu0 %v918
  %v920 = vpop.f32.mrf.mxu0
  %v921 = vadd.f32 %v435, %v920
  %v922 = vand.u32 %v135, 4294901760
  %923 = vmatmul.f32.gmra.mxu0 %v922
  %v924 = vpop.f32.mrf.mxu0
  %v925 = vadd.f32 %v443, %v924
  %v926 = vand.u32 %v138, 4294901760
  %927 = vmatmul.f32.gmra.mxu0 %v926
  %v928 = vpop.f32.mrf.mxu0
  %v929 = vadd.f32 %v451, %v928
  %v930 = vand.u32 %v141, 4294901760
  %931 = vmatmul.f32.gmra.mxu0 %v930
  %v932 = vpop.f32.mrf.mxu0
  %v933 = vadd.f32 %v459, %v932
  %v934 = vand.u32 %v144, 4294901760
  %935 = vmatmul.f32.gmra.mxu0 %v934
  %v936 = vpop.f32.mrf.mxu0
  %v937 = vadd.f32 %v467, %v936
  %v938 = vand.u32 %v147, 4294901760
  %939 = vmatmul.f32.gmra.mxu0 %v938
  %v940 = vpop.f32.mrf.mxu0
  %v941 = vadd.f32 %v475, %v940
  %v942 = vand.u32 %v150, 4294901760
  %943 = vmatmul.f32.gmra.mxu0 %v942
  %v944 = vpop.f32.mrf.mxu0
  %v945 = vadd.f32 %v483, %v944
  %v946 = vand.u32 %v153, 4294901760
  %947 = vmatmul.f32.gmra.mxu0 %v946
  %v948 = vpop.f32.mrf.mxu0
  %v949 = vadd.f32 %v491, %v948
  %v950 = vand.u32 %v156, 4294901760
  %951 = vmatmul.f32.gmra.mxu0 %v950
  %v952 = vpop.f32.mrf.mxu0
  %v953 = vadd.f32 %v499, %v952
  %v954 = vand.u32 %v159, 4294901760
  %955 = vmatmul.f32.gmra.mxu0 %v954
  %v956 = vpop.f32.mrf.mxu0
  %v957 = vadd.f32 %v507, %v956
  %v958 = vand.u32 %v162, 4294901760
  %959 = vmatmul.f32.gmra.mxu0 %v958
  %v960 = vpop.f32.mrf.mxu0
  %v961 = vadd.f32 %v515, %v960
  %v962 = vand.u32 %v165, 4294901760
  %963 = vmatmul.f32.gmra.mxu0 %v962
  %v964 = vpop.f32.mrf.mxu0
  %v965 = vadd.f32 %v523, %v964
  %v966 = vand.u32 %v168, 4294901760
  %967 = vmatmul.f32.gmra.mxu0 %v966
  %v968 = vpop.f32.mrf.mxu0
  %v969 = vadd.f32 %v531, %v968
  %v970 = vand.u32 %v171, 4294901760
  %971 = vmatmul.f32.gmra.mxu0 %v970
  %v972 = vpop.f32.mrf.mxu0
  %v973 = vadd.f32 %v539, %v972
  %v974 = vand.u32 %v174, 4294901760
  %975 = vmatmul.f32.gmra.mxu0 %v974
  %v976 = vpop.f32.mrf.mxu0
  %v977 = vadd.f32 %v547, %v976
  %v978 = vand.u32 %v177, 4294901760
  %979 = vmatmul.f32.gmra.mxu0 %v978
  %v980 = vpop.f32.mrf.mxu0
  %v981 = vadd.f32 %v555, %v980
  %v982 = vand.u32 %v180, 4294901760
  %983 = vmatmul.f32.gmra.mxu0 %v982
  %v984 = vpop.f32.mrf.mxu0
  %v985 = vadd.f32 %v563, %v984
  %v986 = vand.u32 %v183, 4294901760
  %987 = vmatmul.f32.gmra.mxu0 %v986
  %v988 = vpop.f32.mrf.mxu0
  %v989 = vadd.f32 %v571, %v988
  %v990 = vand.u32 %v186, 4294901760
  %991 = vmatmul.f32.gmra.mxu0 %v990
  %v992 = vpop.f32.mrf.mxu0
  %v993 = vadd.f32 %v579, %v992
  %v994 = vand.u32 %v189, 4294901760
  %995 = vmatmul.f32.gmra.mxu0 %v994
  %v996 = vpop.f32.mrf.mxu0
  %v997 = vadd.f32 %v587, %v996
  %v998 = vand.u32 %v192, 4294901760
  %999 = vmatmul.f32.gmra.mxu0 %v998
  %v1000 = vpop.f32.mrf.mxu0
  %v1001 = vadd.f32 %v595, %v1000
  %v1002 = vand.u32 %v195, 4294901760
  %1003 = vmatmul.f32.gmra.mxu0 %v1002
  %v1004 = vpop.f32.mrf.mxu0
  %v1005 = vadd.f32 %v603, %v1004
  %v1006 = vand.u32 %v198, 4294901760
  %1007 = vmatmul.f32.gmra.mxu0 %v1006
  %v1008 = vpop.f32.mrf.mxu0
  %v1009 = vadd.f32 %v611, %v1008
  %v1010 = vand.u32 %v201, 4294901760
  %1011 = vmatmul.f32.gmra.mxu0 %v1010
  %v1012 = vpop.f32.mrf.mxu0
  %v1013 = vadd.f32 %v619, %v1012
  %v1014 = vand.u32 %v204, 4294901760
  %1015 = vmatmul.f32.gmra.mxu0 %v1014
  %v1016 = vpop.f32.mrf.mxu0
  %v1017 = vadd.f32 %v627, %v1016
  %v1018 = vand.u32 %v207, 4294901760
  %1019 = vmatmul.f32.gmra.mxu0 %v1018
  %v1020 = vpop.f32.mrf.mxu0
  %v1021 = vadd.f32 %v635, %v1020
  %v1022 = vand.u32 %v210, 4294901760
  %1023 = vmatmul.f32.gmra.mxu0 %v1022
  %v1024 = vpop.f32.mrf.mxu0
  %v1025 = vadd.f32 %v643, %v1024
  %v1026 = vand.u32 %v213, 4294901760
  %1027 = vmatmul.f32.gmra.mxu0 %v1026
  %v1028 = vpop.f32.mrf.mxu0
  %v1029 = vadd.f32 %v651, %v1028
  %v1030 = vand.u32 %v216, 4294901760
  %1031 = vmatmul.f32.gmra.mxu0 %v1030
  %v1032 = vpop.f32.mrf.mxu0
  %v1033 = vadd.f32 %v659, %v1032
  %v1034 = vand.u32 %v219, 4294901760
  %1035 = vmatmul.f32.gmra.mxu0 %v1034
  %v1036 = vpop.f32.mrf.mxu0
  %v1037 = vadd.f32 %v667, %v1036
  %v1038 = vand.u32 %v222, 4294901760
  %1039 = vmatmul.f32.gmra.mxu0 %v1038
  %v1040 = vpop.f32.mrf.mxu0
  %v1041 = vadd.f32 %v675, %v1040
  %v1042 = vand.u32 %v225, 4294901760
  %1043 = vmatmul.f32.gmra.mxu0 %v1042
  %v1044 = vpop.f32.mrf.mxu0
  %v1045 = vadd.f32 %v683, %v1044
  %v1046 = vand.u32 %v228, 4294901760
  %1047 = vmatmul.f32.gmra.mxu0 %v1046
  %v1048 = vpop.f32.mrf.mxu0
  %v1049 = vadd.f32 %v691, %v1048
  %v1050 = vand.u32 %v231, 4294901760
  %1051 = vmatmul.f32.gmra.mxu0 %v1050
  %v1052 = vpop.f32.mrf.mxu0
  %v1053 = vadd.f32 %v699, %v1052
  %v1054 = vand.u32 %v234, 4294901760
  %1055 = vmatmul.f32.gmra.mxu0 %v1054
  %v1056 = vpop.f32.mrf.mxu0
  %v1057 = vadd.f32 %v707, %v1056
  %v1058 = vand.u32 %v237, 4294901760
  %1059 = vmatmul.f32.gmra.mxu0 %v1058
  %v1060 = vpop.f32.mrf.mxu0
  %v1061 = vadd.f32 %v715, %v1060
  %v1062 = vand.u32 %v240, 4294901760
  %1063 = vmatmul.f32.gmra.mxu0 %v1062
  %v1064 = vpop.f32.mrf.mxu0
  %v1065 = vadd.f32 %v723, %v1064
  %v1066 = vand.u32 %v243, 4294901760
  %1067 = vmatmul.f32.gmra.mxu0 %v1066
  %v1068 = vpop.f32.mrf.mxu0
  %v1069 = vadd.f32 %v731, %v1068
  %v1070 = vand.u32 %v246, 4294901760
  %1071 = vmatmul.f32.gmra.mxu0 %v1070
  %v1072 = vpop.f32.mrf.mxu0
  %v1073 = vadd.f32 %v739, %v1072
  %v1074 = vand.u32 %v249, 4294901760
  %1075 = vmatmul.f32.gmra.mxu0 %v1074
  %v1076 = vpop.f32.mrf.mxu0
  %v1077 = vadd.f32 %v747, %v1076
  %v1078 = vand.u32 %v252, 4294901760
  %1079 = vmatmul.f32.gmra.mxu0 %v1078
  %v1080 = vpop.f32.mrf.mxu0
  %v1081 = vadd.f32 %v755, %v1080
  %v1082 = vand.u32 %v255, 4294901760
  %1083 = vmatmul.f32.gmra.mxu0 %v1082
  %v1084 = vpop.f32.mrf.mxu0
  %v1085 = vadd.f32 %v763, %v1084
  %v1086 = vand.u32 %v258, 4294901760
  %1087 = vmatmul.f32.gmra.mxu0 %v1086
  %v1088 = vpop.f32.mrf.mxu0
  %v1089 = vadd.f32 %v771, %v1088
  %v1090 = vand.u32 %v261, 4294901760
  %1091 = vmatmul.f32.gmra.mxu0 %v1090
  %v1092 = vpop.f32.mrf.mxu0
  %v1093 = vadd.f32 %v779, %v1092
  %v1094 = vand.u32 %v264, 4294901760
  %1095 = vmatmul.f32.gmra.mxu0 %v1094
  %v1096 = vpop.f32.mrf.mxu0
  %v1097 = vadd.f32 %v787, %v1096
  %v1098 = vand.u32 %v267, 4294901760
  %1099 = vmatmul.f32.gmra.mxu0 %v1098
  %v1100 = vpop.f32.mrf.mxu0
  %v1101 = vadd.f32 %v795, %v1100
  %v1102 = vand.u32 %v270, 4294901760
  %1103 = vmatmul.f32.gmra.mxu0 %v1102
  %v1104 = vpop.f32.mrf.mxu0
  %v1105 = vadd.f32 %v803, %v1104
  %v1106 = vand.u32 %v273, 4294901760
  %1107 = vmatmul.f32.gmra.mxu0 %v1106
  %v1108 = vpop.f32.mrf.mxu0
  %v1109 = vadd.f32 %v811, %v1108
  %1110 = vdwg.mxu0
  %1111 = vmatpush.msra.mxu0 0.0
  %1112 = vmatpush.msra.mxu0 0.0
  %1113 = vmatpush.msra.mxu0 0.0
  %1114 = vmatpush.msra.mxu0 0.0
  %1115 = vmatpush.msra.mxu0 0.0
  %1116 = vmatpush.msra.mxu0 0.0
  %1117 = vmatpush.msra.mxu0 0.0
  %1118 = vmatpush.msra.mxu0 0.0
  %1119 = vmatpush.msra.mxu0 0.0
  %1120 = vmatpush.msra.mxu0 0.0
  %1121 = vmatpush.msra.mxu0 0.0
  %v1122 = vand.u32 %v277, 4294901760
  %v1123 = vsub.f32 %v277, %v1122
  %1124 = vmatpush.msra.mxu0 %v1123
  %v1125 = vand.u32 %v80, 4294901760
  %v1126 = vsub.f32 %v80, %v1125
  %1127 = vmatpush.msra.mxu0 %v1126
  %v1128 = vand.u32 %v79, 4294901760
  %v1129 = vsub.f32 %v79, %v1128
  %1130 = vmatpush.msra.mxu0 %v1129
  %v1131 = vand.u32 %v78, 4294901760
  %v1132 = vsub.f32 %v78, %v1131
  %1133 = vmatpush.msra.mxu0 %v1132
  %v1134 = vand.u32 %v77, 4294901760
  %v1135 = vsub.f32 %v77, %v1134
  %1136 = vmatpush.msra.mxu0 %v1135
  %v1137 = vand.u32 %v84, 4294901760
  %v1138 = vsub.f32 %v84, %v1137
  %1139 = vmatmul.f32.gmra.mxu0 %v1138
  %v1140 = vpop.f32.mrf.mxu0
  %v1141 = vadd.f32 %v857, %v1140
  %v1142 = vand.u32 %v87, 4294901760
  %v1143 = vsub.f32 %v87, %v1142
  %1144 = vmatmul.f32.gmra.mxu0 %v1143
  %v1145 = vpop.f32.mrf.mxu0
  %v1146 = vadd.f32 %v861, %v1145
  %v1147 = vand.u32 %v90, 4294901760
  %v1148 = vsub.f32 %v90, %v1147
  %1149 = vmatmul.f32.gmra.mxu0 %v1148
  %v1150 = vpop.f32.mrf.mxu0
  %v1151 = vadd.f32 %v865, %v1150
  %v1152 = vand.u32 %v93, 4294901760
  %v1153 = vsub.f32 %v93, %v1152
  %1154 = vmatmul.f32.gmra.mxu0 %v1153
  %v1155 = vpop.f32.mrf.mxu0
  %v1156 = vadd.f32 %v869, %v1155
  %v1157 = vand.u32 %v96, 4294901760
  %v1158 = vsub.f32 %v96, %v1157
  %1159 = vmatmul.f32.gmra.mxu0 %v1158
  %v1160 = vpop.f32.mrf.mxu0
  %v1161 = vadd.f32 %v873, %v1160
  %v1162 = vand.u32 %v99, 4294901760
  %v1163 = vsub.f32 %v99, %v1162
  %1164 = vmatmul.f32.gmra.mxu0 %v1163
  %v1165 = vpop.f32.mrf.mxu0
  %v1166 = vadd.f32 %v877, %v1165
  %v1167 = vand.u32 %v102, 4294901760
  %v1168 = vsub.f32 %v102, %v1167
  %1169 = vmatmul.f32.gmra.mxu0 %v1168
  %v1170 = vpop.f32.mrf.mxu0
  %v1171 = vadd.f32 %v881, %v1170
  %v1172 = vand.u32 %v105, 4294901760
  %v1173 = vsub.f32 %v105, %v1172
  %1174 = vmatmul.f32.gmra.mxu0 %v1173
  %v1175 = vpop.f32.mrf.mxu0
  %v1176 = vadd.f32 %v885, %v1175
  %v1177 = vand.u32 %v108, 4294901760
  %v1178 = vsub.f32 %v108, %v1177
  %1179 = vmatmul.f32.gmra.mxu0 %v1178
  %v1180 = vpop.f32.mrf.mxu0
  %v1181 = vadd.f32 %v889, %v1180
  %v1182 = vand.u32 %v111, 4294901760
  %v1183 = vsub.f32 %v111, %v1182
  %1184 = vmatmul.f32.gmra.mxu0 %v1183
  %v1185 = vpop.f32.mrf.mxu0
  %v1186 = vadd.f32 %v893, %v1185
  %v1187 = vand.u32 %v114, 4294901760
  %v1188 = vsub.f32 %v114, %v1187
  %1189 = vmatmul.f32.gmra.mxu0 %v1188
  %v1190 = vpop.f32.mrf.mxu0
  %v1191 = vadd.f32 %v897, %v1190
  %v1192 = vand.u32 %v117, 4294901760
  %v1193 = vsub.f32 %v117, %v1192
  %1194 = vmatmul.f32.gmra.mxu0 %v1193
  %v1195 = vpop.f32.mrf.mxu0
  %v1196 = vadd.f32 %v901, %v1195
  %v1197 = vand.u32 %v120, 4294901760
  %v1198 = vsub.f32 %v120, %v1197
  %1199 = vmatmul.f32.gmra.mxu0 %v1198
  %v1200 = vpop.f32.mrf.mxu0
  %v1201 = vadd.f32 %v905, %v1200
  %v1202 = vand.u32 %v123, 4294901760
  %v1203 = vsub.f32 %v123, %v1202
  %1204 = vmatmul.f32.gmra.mxu0 %v1203
  %v1205 = vpop.f32.mrf.mxu0
  %v1206 = vadd.f32 %v909, %v1205
  %v1207 = vand.u32 %v126, 4294901760
  %v1208 = vsub.f32 %v126, %v1207
  %1209 = vmatmul.f32.gmra.mxu0 %v1208
  %v1210 = vpop.f32.mrf.mxu0
  %v1211 = vadd.f32 %v913, %v1210
  %v1212 = vand.u32 %v129, 4294901760
  %v1213 = vsub.f32 %v129, %v1212
  %1214 = vmatmul.f32.gmra.mxu0 %v1213
  %v1215 = vpop.f32.mrf.mxu0
  %v1216 = vadd.f32 %v917, %v1215
  %v1217 = vand.u32 %v132, 4294901760
  %v1218 = vsub.f32 %v132, %v1217
  %1219 = vmatmul.f32.gmra.mxu0 %v1218
  %v1220 = vpop.f32.mrf.mxu0
  %v1221 = vadd.f32 %v921, %v1220
  %v1222 = vand.u32 %v135, 4294901760
  %v1223 = vsub.f32 %v135, %v1222
  %1224 = vmatmul.f32.gmra.mxu0 %v1223
  %v1225 = vpop.f32.mrf.mxu0
  %v1226 = vadd.f32 %v925, %v1225
  %v1227 = vand.u32 %v138, 4294901760
  %v1228 = vsub.f32 %v138, %v1227
  %1229 = vmatmul.f32.gmra.mxu0 %v1228
  %v1230 = vpop.f32.mrf.mxu0
  %v1231 = vadd.f32 %v929, %v1230
  %v1232 = vand.u32 %v141, 4294901760
  %v1233 = vsub.f32 %v141, %v1232
  %1234 = vmatmul.f32.gmra.mxu0 %v1233
  %v1235 = vpop.f32.mrf.mxu0
  %v1236 = vadd.f32 %v933, %v1235
  %v1237 = vand.u32 %v144, 4294901760
  %v1238 = vsub.f32 %v144, %v1237
  %1239 = vmatmul.f32.gmra.mxu0 %v1238
  %v1240 = vpop.f32.mrf.mxu0
  %v1241 = vadd.f32 %v937, %v1240
  %v1242 = vand.u32 %v147, 4294901760
  %v1243 = vsub.f32 %v147, %v1242
  %1244 = vmatmul.f32.gmra.mxu0 %v1243
  %v1245 = vpop.f32.mrf.mxu0
  %v1246 = vadd.f32 %v941, %v1245
  %v1247 = vand.u32 %v150, 4294901760
  %v1248 = vsub.f32 %v150, %v1247
  %1249 = vmatmul.f32.gmra.mxu0 %v1248
  %v1250 = vpop.f32.mrf.mxu0
  %v1251 = vadd.f32 %v945, %v1250
  %v1252 = vand.u32 %v153, 4294901760
  %v1253 = vsub.f32 %v153, %v1252
  %1254 = vmatmul.f32.gmra.mxu0 %v1253
  %v1255 = vpop.f32.mrf.mxu0
  %v1256 = vadd.f32 %v949, %v1255
  %v1257 = vand.u32 %v156, 4294901760
  %v1258 = vsub.f32 %v156, %v1257
  %1259 = vmatmul.f32.gmra.mxu0 %v1258
  %v1260 = vpop.f32.mrf.mxu0
  %v1261 = vadd.f32 %v953, %v1260
  %v1262 = vand.u32 %v159, 4294901760
  %v1263 = vsub.f32 %v159, %v1262
  %1264 = vmatmul.f32.gmra.mxu0 %v1263
  %v1265 = vpop.f32.mrf.mxu0
  %v1266 = vadd.f32 %v957, %v1265
  %v1267 = vand.u32 %v162, 4294901760
  %v1268 = vsub.f32 %v162, %v1267
  %1269 = vmatmul.f32.gmra.mxu0 %v1268
  %v1270 = vpop.f32.mrf.mxu0
  %v1271 = vadd.f32 %v961, %v1270
  %v1272 = vand.u32 %v165, 4294901760
  %v1273 = vsub.f32 %v165, %v1272
  %1274 = vmatmul.f32.gmra.mxu0 %v1273
  %v1275 = vpop.f32.mrf.mxu0
  %v1276 = vadd.f32 %v965, %v1275
  %v1277 = vand.u32 %v168, 4294901760
  %v1278 = vsub.f32 %v168, %v1277
  %1279 = vmatmul.f32.gmra.mxu0 %v1278
  %v1280 = vpop.f32.mrf.mxu0
  %v1281 = vadd.f32 %v969, %v1280
  %v1282 = vand.u32 %v171, 4294901760
  %v1283 = vsub.f32 %v171, %v1282
  %1284 = vmatmul.f32.gmra.mxu0 %v1283
  %v1285 = vpop.f32.mrf.mxu0
  %v1286 = vadd.f32 %v973, %v1285
  %v1287 = vand.u32 %v174, 4294901760
  %v1288 = vsub.f32 %v174, %v1287
  %1289 = vmatmul.f32.gmra.mxu0 %v1288
  %v1290 = vpop.f32.mrf.mxu0
  %v1291 = vadd.f32 %v977, %v1290
  %v1292 = vand.u32 %v177, 4294901760
  %v1293 = vsub.f32 %v177, %v1292
  %1294 = vmatmul.f32.gmra.mxu0 %v1293
  %v1295 = vpop.f32.mrf.mxu0
  %v1296 = vadd.f32 %v981, %v1295
  %v1297 = vand.u32 %v180, 4294901760
  %v1298 = vsub.f32 %v180, %v1297
  %1299 = vmatmul.f32.gmra.mxu0 %v1298
  %v1300 = vpop.f32.mrf.mxu0
  %v1301 = vadd.f32 %v985, %v1300
  %v1302 = vand.u32 %v183, 4294901760
  %v1303 = vsub.f32 %v183, %v1302
  %1304 = vmatmul.f32.gmra.mxu0 %v1303
  %v1305 = vpop.f32.mrf.mxu0
  %v1306 = vadd.f32 %v989, %v1305
  %v1307 = vand.u32 %v186, 4294901760
  %v1308 = vsub.f32 %v186, %v1307
  %1309 = vmatmul.f32.gmra.mxu0 %v1308
  %v1310 = vpop.f32.mrf.mxu0
  %v1311 = vadd.f32 %v993, %v1310
  %v1312 = vand.u32 %v189, 4294901760
  %v1313 = vsub.f32 %v189, %v1312
  %1314 = vmatmul.f32.gmra.mxu0 %v1313
  %v1315 = vpop.f32.mrf.mxu0
  %v1316 = vadd.f32 %v997, %v1315
  %v1317 = vand.u32 %v192, 4294901760
  %v1318 = vsub.f32 %v192, %v1317
  %1319 = vmatmul.f32.gmra.mxu0 %v1318
  %v1320 = vpop.f32.mrf.mxu0
  %v1321 = vadd.f32 %v1001, %v1320
  %v1322 = vand.u32 %v195, 4294901760
  %v1323 = vsub.f32 %v195, %v1322
  %1324 = vmatmul.f32.gmra.mxu0 %v1323
  %v1325 = vpop.f32.mrf.mxu0
  %v1326 = vadd.f32 %v1005, %v1325
  %v1327 = vand.u32 %v198, 4294901760
  %v1328 = vsub.f32 %v198, %v1327
  %1329 = vmatmul.f32.gmra.mxu0 %v1328
  %v1330 = vpop.f32.mrf.mxu0
  %v1331 = vadd.f32 %v1009, %v1330
  %v1332 = vand.u32 %v201, 4294901760
  %v1333 = vsub.f32 %v201, %v1332
  %1334 = vmatmul.f32.gmra.mxu0 %v1333
  %v1335 = vpop.f32.mrf.mxu0
  %v1336 = vadd.f32 %v1013, %v1335
  %v1337 = vand.u32 %v204, 4294901760
  %v1338 = vsub.f32 %v204, %v1337
  %1339 = vmatmul.f32.gmra.mxu0 %v1338
  %v1340 = vpop.f32.mrf.mxu0
  %v1341 = vadd.f32 %v1017, %v1340
  %v1342 = vand.u32 %v207, 4294901760
  %v1343 = vsub.f32 %v207, %v1342
  %1344 = vmatmul.f32.gmra.mxu0 %v1343
  %v1345 = vpop.f32.mrf.mxu0
  %v1346 = vadd.f32 %v1021, %v1345
  %v1347 = vand.u32 %v210, 4294901760
  %v1348 = vsub.f32 %v210, %v1347
  %1349 = vmatmul.f32.gmra.mxu0 %v1348
  %v1350 = vpop.f32.mrf.mxu0
  %v1351 = vadd.f32 %v1025, %v1350
  %v1352 = vand.u32 %v213, 4294901760
  %v1353 = vsub.f32 %v213, %v1352
  %1354 = vmatmul.f32.gmra.mxu0 %v1353
  %v1355 = vpop.f32.mrf.mxu0
  %v1356 = vadd.f32 %v1029, %v1355
  %v1357 = vand.u32 %v216, 4294901760
  %v1358 = vsub.f32 %v216, %v1357
  %1359 = vmatmul.f32.gmra.mxu0 %v1358
  %v1360 = vpop.f32.mrf.mxu0
  %v1361 = vadd.f32 %v1033, %v1360
  %v1362 = vand.u32 %v219, 4294901760
  %v1363 = vsub.f32 %v219, %v1362
  %1364 = vmatmul.f32.gmra.mxu0 %v1363
  %v1365 = vpop.f32.mrf.mxu0
  %v1366 = vadd.f32 %v1037, %v1365
  %v1367 = vand.u32 %v222, 4294901760
  %v1368 = vsub.f32 %v222, %v1367
  %1369 = vmatmul.f32.gmra.mxu0 %v1368
  %v1370 = vpop.f32.mrf.mxu0
  %v1371 = vadd.f32 %v1041, %v1370
  %v1372 = vand.u32 %v225, 4294901760
  %v1373 = vsub.f32 %v225, %v1372
  %1374 = vmatmul.f32.gmra.mxu0 %v1373
  %v1375 = vpop.f32.mrf.mxu0
  %v1376 = vadd.f32 %v1045, %v1375
  %v1377 = vand.u32 %v228, 4294901760
  %v1378 = vsub.f32 %v228, %v1377
  %1379 = vmatmul.f32.gmra.mxu0 %v1378
  %v1380 = vpop.f32.mrf.mxu0
  %v1381 = vadd.f32 %v1049, %v1380
  %v1382 = vand.u32 %v231, 4294901760
  %v1383 = vsub.f32 %v231, %v1382
  %1384 = vmatmul.f32.gmra.mxu0 %v1383
  %v1385 = vpop.f32.mrf.mxu0
  %v1386 = vadd.f32 %v1053, %v1385
  %v1387 = vand.u32 %v234, 4294901760
  %v1388 = vsub.f32 %v234, %v1387
  %1389 = vmatmul.f32.gmra.mxu0 %v1388
  %v1390 = vpop.f32.mrf.mxu0
  %v1391 = vadd.f32 %v1057, %v1390
  %v1392 = vand.u32 %v237, 4294901760
  %v1393 = vsub.f32 %v237, %v1392
  %1394 = vmatmul.f32.gmra.mxu0 %v1393
  %v1395 = vpop.f32.mrf.mxu0
  %v1396 = vadd.f32 %v1061, %v1395
  %v1397 = vand.u32 %v240, 4294901760
  %v1398 = vsub.f32 %v240, %v1397
  %1399 = vmatmul.f32.gmra.mxu0 %v1398
  %v1400 = vpop.f32.mrf.mxu0
  %v1401 = vadd.f32 %v1065, %v1400
  %v1402 = vand.u32 %v243, 4294901760
  %v1403 = vsub.f32 %v243, %v1402
  %1404 = vmatmul.f32.gmra.mxu0 %v1403
  %v1405 = vpop.f32.mrf.mxu0
  %v1406 = vadd.f32 %v1069, %v1405
  %v1407 = vand.u32 %v246, 4294901760
  %v1408 = vsub.f32 %v246, %v1407
  %1409 = vmatmul.f32.gmra.mxu0 %v1408
  %v1410 = vpop.f32.mrf.mxu0
  %v1411 = vadd.f32 %v1073, %v1410
  %v1412 = vand.u32 %v249, 4294901760
  %v1413 = vsub.f32 %v249, %v1412
  %1414 = vmatmul.f32.gmra.mxu0 %v1413
  %v1415 = vpop.f32.mrf.mxu0
  %v1416 = vadd.f32 %v1077, %v1415
  %v1417 = vand.u32 %v252, 4294901760
  %v1418 = vsub.f32 %v252, %v1417
  %1419 = vmatmul.f32.gmra.mxu0 %v1418
  %v1420 = vpop.f32.mrf.mxu0
  %v1421 = vadd.f32 %v1081, %v1420
  %v1422 = vand.u32 %v255, 4294901760
  %v1423 = vsub.f32 %v255, %v1422
  %1424 = vmatmul.f32.gmra.mxu0 %v1423
  %v1425 = vpop.f32.mrf.mxu0
  %v1426 = vadd.f32 %v1085, %v1425
  %v1427 = vand.u32 %v258, 4294901760
  %v1428 = vsub.f32 %v258, %v1427
  %1429 = vmatmul.f32.gmra.mxu0 %v1428
  %v1430 = vpop.f32.mrf.mxu0
  %v1431 = vadd.f32 %v1089, %v1430
  %v1432 = vand.u32 %v261, 4294901760
  %v1433 = vsub.f32 %v261, %v1432
  %1434 = vmatmul.f32.gmra.mxu0 %v1433
  %v1435 = vpop.f32.mrf.mxu0
  %v1436 = vadd.f32 %v1093, %v1435
  %v1437 = vand.u32 %v264, 4294901760
  %v1438 = vsub.f32 %v264, %v1437
  %1439 = vmatmul.f32.gmra.mxu0 %v1438
  %v1440 = vpop.f32.mrf.mxu0
  %v1441 = vadd.f32 %v1097, %v1440
  %v1442 = vand.u32 %v267, 4294901760
  %v1443 = vsub.f32 %v267, %v1442
  %1444 = vmatmul.f32.gmra.mxu0 %v1443
  %v1445 = vpop.f32.mrf.mxu0
  %v1446 = vadd.f32 %v1101, %v1445
  %v1447 = vand.u32 %v270, 4294901760
  %v1448 = vsub.f32 %v270, %v1447
  %1449 = vmatmul.f32.gmra.mxu0 %v1448
  %v1450 = vpop.f32.mrf.mxu0
  %v1451 = vadd.f32 %v1105, %v1450
  %v1452 = vand.u32 %v273, 4294901760
  %v1453 = vsub.f32 %v273, %v1452
  %1454 = vmatmul.f32.gmra.mxu0 %v1453
  %v1455 = vpop.f32.mrf.mxu0
  %v1456 = vadd.f32 %v1109, %v1455
  %1457 = vdwg.mxu0
  %1458 = vmatpush.msra.mxu0 0.0
  %1459 = vmatpush.msra.mxu0 0.0
  %1460 = vmatpush.msra.mxu0 0.0
  %1461 = vmatpush.msra.mxu0 0.0
  %1462 = vmatpush.msra.mxu0 0.0
  %1463 = vmatpush.msra.mxu0 0.0
  %1464 = vmatpush.msra.mxu0 0.0
  %1465 = vmatpush.msra.mxu0 0.0
  %1466 = vmatpush.msra.mxu0 0.0
  %1467 = vmatpush.msra.mxu0 0.0
  %1468 = vmatpush.msra.mxu0 0.0
  %v1469 = vand.u32 %v277, 4294901760
  %1470 = vmatpush.msra.mxu0 %v1469
  %v1471 = vand.u32 %v80, 4294901760
  %1472 = vmatpush.msra.mxu0 %v1471
  %v1473 = vand.u32 %v79, 4294901760
  %1474 = vmatpush.msra.mxu0 %v1473
  %v1475 = vand.u32 %v78, 4294901760
  %1476 = vmatpush.msra.mxu0 %v1475
  %v1477 = vand.u32 %v77, 4294901760
  %1478 = vmatpush.msra.mxu0 %v1477
  %v1479 = vand.u32 %v84, 4294901760
  %v1480 = vsub.f32 %v84, %v1479
  %v1481 = vand.u32 %v1480, 4294901760
  %1482 = vmatmul.f32.gmra.mxu0 %v1481
  %v1483 = vpop.f32.mrf.mxu0
  %v1484 = vadd.f32 %v1141, %v1483
  %v1485 = vand.u32 %v87, 4294901760
  %v1486 = vsub.f32 %v87, %v1485
  %v1487 = vand.u32 %v1486, 4294901760
  %1488 = vmatmul.f32.gmra.mxu0 %v1487
  %v1489 = vpop.f32.mrf.mxu0
  %v1490 = vadd.f32 %v1146, %v1489
  %v1491 = vand.u32 %v90, 4294901760
  %v1492 = vsub.f32 %v90, %v1491
  %v1493 = vand.u32 %v1492, 4294901760
  %1494 = vmatmul.f32.gmra.mxu0 %v1493
  %v1495 = vpop.f32.mrf.mxu0
  %v1496 = vadd.f32 %v1151, %v1495
  %v1497 = vand.u32 %v93, 4294901760
  %v1498 = vsub.f32 %v93, %v1497
  %v1499 = vand.u32 %v1498, 4294901760
  %1500 = vmatmul.f32.gmra.mxu0 %v1499
  %v1501 = vpop.f32.mrf.mxu0
  %v1502 = vadd.f32 %v1156, %v1501
  %v1503 = vand.u32 %v96, 4294901760
  %v1504 = vsub.f32 %v96, %v1503
  %v1505 = vand.u32 %v1504, 4294901760
  %1506 = vmatmul.f32.gmra.mxu0 %v1505
  %v1507 = vpop.f32.mrf.mxu0
  %v1508 = vadd.f32 %v1161, %v1507
  %v1509 = vand.u32 %v99, 4294901760
  %v1510 = vsub.f32 %v99, %v1509
  %v1511 = vand.u32 %v1510, 4294901760
  %1512 = vmatmul.f32.gmra.mxu0 %v1511
  %v1513 = vpop.f32.mrf.mxu0
  %v1514 = vadd.f32 %v1166, %v1513
  %v1515 = vand.u32 %v102, 4294901760
  %v1516 = vsub.f32 %v102, %v1515
  %v1517 = vand.u32 %v1516, 4294901760
  %1518 = vmatmul.f32.gmra.mxu0 %v1517
  %v1519 = vpop.f32.mrf.mxu0
  %v1520 = vadd.f32 %v1171, %v1519
  %v1521 = vand.u32 %v105, 4294901760
  %v1522 = vsub.f32 %v105, %v1521
  %v1523 = vand.u32 %v1522, 4294901760
  %1524 = vmatmul.f32.gmra.mxu0 %v1523
  %v1525 = vpop.f32.mrf.mxu0
  %v1526 = vadd.f32 %v1176, %v1525
  %v1527 = vand.u32 %v108, 4294901760
  %v1528 = vsub.f32 %v108, %v1527
  %v1529 = vand.u32 %v1528, 4294901760
  %1530 = vmatmul.f32.gmra.mxu0 %v1529
  %v1531 = vpop.f32.mrf.mxu0
  %v1532 = vadd.f32 %v1181, %v1531
  %v1533 = vand.u32 %v111, 4294901760
  %v1534 = vsub.f32 %v111, %v1533
  %v1535 = vand.u32 %v1534, 4294901760
  %1536 = vmatmul.f32.gmra.mxu0 %v1535
  %v1537 = vpop.f32.mrf.mxu0
  %v1538 = vadd.f32 %v1186, %v1537
  %v1539 = vand.u32 %v114, 4294901760
  %v1540 = vsub.f32 %v114, %v1539
  %v1541 = vand.u32 %v1540, 4294901760
  %1542 = vmatmul.f32.gmra.mxu0 %v1541
  %v1543 = vpop.f32.mrf.mxu0
  %v1544 = vadd.f32 %v1191, %v1543
  %v1545 = vand.u32 %v117, 4294901760
  %v1546 = vsub.f32 %v117, %v1545
  %v1547 = vand.u32 %v1546, 4294901760
  %1548 = vmatmul.f32.gmra.mxu0 %v1547
  %v1549 = vpop.f32.mrf.mxu0
  %v1550 = vadd.f32 %v1196, %v1549
  %v1551 = vand.u32 %v120, 4294901760
  %v1552 = vsub.f32 %v120, %v1551
  %v1553 = vand.u32 %v1552, 4294901760
  %1554 = vmatmul.f32.gmra.mxu0 %v1553
  %v1555 = vpop.f32.mrf.mxu0
  %v1556 = vadd.f32 %v1201, %v1555
  %v1557 = vand.u32 %v123, 4294901760
  %v1558 = vsub.f32 %v123, %v1557
  %v1559 = vand.u32 %v1558, 4294901760
  %1560 = vmatmul.f32.gmra.mxu0 %v1559
  %v1561 = vpop.f32.mrf.mxu0
  %v1562 = vadd.f32 %v1206, %v1561
  %v1563 = vand.u32 %v126, 4294901760
  %v1564 = vsub.f32 %v126, %v1563
  %v1565 = vand.u32 %v1564, 4294901760
  %1566 = vmatmul.f32.gmra.mxu0 %v1565
  %v1567 = vpop.f32.mrf.mxu0
  %v1568 = vadd.f32 %v1211, %v1567
  %v1569 = vand.u32 %v129, 4294901760
  %v1570 = vsub.f32 %v129, %v1569
  %v1571 = vand.u32 %v1570, 4294901760
  %1572 = vmatmul.f32.gmra.mxu0 %v1571
  %v1573 = vpop.f32.mrf.mxu0
  %v1574 = vadd.f32 %v1216, %v1573
  %v1575 = vand.u32 %v132, 4294901760
  %v1576 = vsub.f32 %v132, %v1575
  %v1577 = vand.u32 %v1576, 4294901760
  %1578 = vmatmul.f32.gmra.mxu0 %v1577
  %v1579 = vpop.f32.mrf.mxu0
  %v1580 = vadd.f32 %v1221, %v1579
  %v1581 = vand.u32 %v135, 4294901760
  %v1582 = vsub.f32 %v135, %v1581
  %v1583 = vand.u32 %v1582, 4294901760
  %1584 = vmatmul.f32.gmra.mxu0 %v1583
  %v1585 = vpop.f32.mrf.mxu0
  %v1586 = vadd.f32 %v1226, %v1585
  %v1587 = vand.u32 %v138, 4294901760
  %v1588 = vsub.f32 %v138, %v1587
  %v1589 = vand.u32 %v1588, 4294901760
  %1590 = vmatmul.f32.gmra.mxu0 %v1589
  %v1591 = vpop.f32.mrf.mxu0
  %v1592 = vadd.f32 %v1231, %v1591
  %v1593 = vand.u32 %v141, 4294901760
  %v1594 = vsub.f32 %v141, %v1593
  %v1595 = vand.u32 %v1594, 4294901760
  %1596 = vmatmul.f32.gmra.mxu0 %v1595
  %v1597 = vpop.f32.mrf.mxu0
  %v1598 = vadd.f32 %v1236, %v1597
  %v1599 = vand.u32 %v144, 4294901760
  %v1600 = vsub.f32 %v144, %v1599
  %v1601 = vand.u32 %v1600, 4294901760
  %1602 = vmatmul.f32.gmra.mxu0 %v1601
  %v1603 = vpop.f32.mrf.mxu0
  %v1604 = vadd.f32 %v1241, %v1603
  %v1605 = vand.u32 %v147, 4294901760
  %v1606 = vsub.f32 %v147, %v1605
  %v1607 = vand.u32 %v1606, 4294901760
  %1608 = vmatmul.f32.gmra.mxu0 %v1607
  %v1609 = vpop.f32.mrf.mxu0
  %v1610 = vadd.f32 %v1246, %v1609
  %v1611 = vand.u32 %v150, 4294901760
  %v1612 = vsub.f32 %v150, %v1611
  %v1613 = vand.u32 %v1612, 4294901760
  %1614 = vmatmul.f32.gmra.mxu0 %v1613
  %v1615 = vpop.f32.mrf.mxu0
  %v1616 = vadd.f32 %v1251, %v1615
  %v1617 = vand.u32 %v153, 4294901760
  %v1618 = vsub.f32 %v153, %v1617
  %v1619 = vand.u32 %v1618, 4294901760
  %1620 = vmatmul.f32.gmra.mxu0 %v1619
  %v1621 = vpop.f32.mrf.mxu0
  %v1622 = vadd.f32 %v1256, %v1621
  %v1623 = vand.u32 %v156, 4294901760
  %v1624 = vsub.f32 %v156, %v1623
  %v1625 = vand.u32 %v1624, 4294901760
  %1626 = vmatmul.f32.gmra.mxu0 %v1625
  %v1627 = vpop.f32.mrf.mxu0
  %v1628 = vadd.f32 %v1261, %v1627
  %v1629 = vand.u32 %v159, 4294901760
  %v1630 = vsub.f32 %v159, %v1629
  %v1631 = vand.u32 %v1630, 4294901760
  %1632 = vmatmul.f32.gmra.mxu0 %v1631
  %v1633 = vpop.f32.mrf.mxu0
  %v1634 = vadd.f32 %v1266, %v1633
  %v1635 = vand.u32 %v162, 4294901760
  %v1636 = vsub.f32 %v162, %v1635
  %v1637 = vand.u32 %v1636, 4294901760
  %1638 = vmatmul.f32.gmra.mxu0 %v1637
  %v1639 = vpop.f32.mrf.mxu0
  %v1640 = vadd.f32 %v1271, %v1639
  %v1641 = vand.u32 %v165, 4294901760
  %v1642 = vsub.f32 %v165, %v1641
  %v1643 = vand.u32 %v1642, 4294901760
  %1644 = vmatmul.f32.gmra.mxu0 %v1643
  %v1645 = vpop.f32.mrf.mxu0
  %v1646 = vadd.f32 %v1276, %v1645
  %v1647 = vand.u32 %v168, 4294901760
  %v1648 = vsub.f32 %v168, %v1647
  %v1649 = vand.u32 %v1648, 4294901760
  %1650 = vmatmul.f32.gmra.mxu0 %v1649
  %v1651 = vpop.f32.mrf.mxu0
  %v1652 = vadd.f32 %v1281, %v1651
  %v1653 = vand.u32 %v171, 4294901760
  %v1654 = vsub.f32 %v171, %v1653
  %v1655 = vand.u32 %v1654, 4294901760
  %1656 = vmatmul.f32.gmra.mxu0 %v1655
  %v1657 = vpop.f32.mrf.mxu0
  %v1658 = vadd.f32 %v1286, %v1657
  %v1659 = vand.u32 %v174, 4294901760
  %v1660 = vsub.f32 %v174, %v1659
  %v1661 = vand.u32 %v1660, 4294901760
  %1662 = vmatmul.f32.gmra.mxu0 %v1661
  %v1663 = vpop.f32.mrf.mxu0
  %v1664 = vadd.f32 %v1291, %v1663
  %v1665 = vand.u32 %v177, 4294901760
  %v1666 = vsub.f32 %v177, %v1665
  %v1667 = vand.u32 %v1666, 4294901760
  %1668 = vmatmul.f32.gmra.mxu0 %v1667
  %v1669 = vpop.f32.mrf.mxu0
  %v1670 = vadd.f32 %v1296, %v1669
  %v1671 = vand.u32 %v180, 4294901760
  %v1672 = vsub.f32 %v180, %v1671
  %v1673 = vand.u32 %v1672, 4294901760
  %1674 = vmatmul.f32.gmra.mxu0 %v1673
  %v1675 = vpop.f32.mrf.mxu0
  %v1676 = vadd.f32 %v1301, %v1675
  %v1677 = vand.u32 %v183, 4294901760
  %v1678 = vsub.f32 %v183, %v1677
  %v1679 = vand.u32 %v1678, 4294901760
  %1680 = vmatmul.f32.gmra.mxu0 %v1679
  %v1681 = vpop.f32.mrf.mxu0
  %v1682 = vadd.f32 %v1306, %v1681
  %v1683 = vand.u32 %v186, 4294901760
  %v1684 = vsub.f32 %v186, %v1683
  %v1685 = vand.u32 %v1684, 4294901760
  %1686 = vmatmul.f32.gmra.mxu0 %v1685
  %v1687 = vpop.f32.mrf.mxu0
  %v1688 = vadd.f32 %v1311, %v1687
  %v1689 = vand.u32 %v189, 4294901760
  %v1690 = vsub.f32 %v189, %v1689
  %v1691 = vand.u32 %v1690, 4294901760
  %1692 = vmatmul.f32.gmra.mxu0 %v1691
  %v1693 = vpop.f32.mrf.mxu0
  %v1694 = vadd.f32 %v1316, %v1693
  %v1695 = vand.u32 %v192, 4294901760
  %v1696 = vsub.f32 %v192, %v1695
  %v1697 = vand.u32 %v1696, 4294901760
  %1698 = vmatmul.f32.gmra.mxu0 %v1697
  %v1699 = vpop.f32.mrf.mxu0
  %v1700 = vadd.f32 %v1321, %v1699
  %v1701 = vand.u32 %v195, 4294901760
  %v1702 = vsub.f32 %v195, %v1701
  %v1703 = vand.u32 %v1702, 4294901760
  %1704 = vmatmul.f32.gmra.mxu0 %v1703
  %v1705 = vpop.f32.mrf.mxu0
  %v1706 = vadd.f32 %v1326, %v1705
  %v1707 = vand.u32 %v198, 4294901760
  %v1708 = vsub.f32 %v198, %v1707
  %v1709 = vand.u32 %v1708, 4294901760
  %1710 = vmatmul.f32.gmra.mxu0 %v1709
  %v1711 = vpop.f32.mrf.mxu0
  %v1712 = vadd.f32 %v1331, %v1711
  %v1713 = vand.u32 %v201, 4294901760
  %v1714 = vsub.f32 %v201, %v1713
  %v1715 = vand.u32 %v1714, 4294901760
  %1716 = vmatmul.f32.gmra.mxu0 %v1715
  %v1717 = vpop.f32.mrf.mxu0
  %v1718 = vadd.f32 %v1336, %v1717
  %v1719 = vand.u32 %v204, 4294901760
  %v1720 = vsub.f32 %v204, %v1719
  %v1721 = vand.u32 %v1720, 4294901760
  %1722 = vmatmul.f32.gmra.mxu0 %v1721
  %v1723 = vpop.f32.mrf.mxu0
  %v1724 = vadd.f32 %v1341, %v1723
  %v1725 = vand.u32 %v207, 4294901760
  %v1726 = vsub.f32 %v207, %v1725
  %v1727 = vand.u32 %v1726, 4294901760
  %1728 = vmatmul.f32.gmra.mxu0 %v1727
  %v1729 = vpop.f32.mrf.mxu0
  %v1730 = vadd.f32 %v1346, %v1729
  %v1731 = vand.u32 %v210, 4294901760
  %v1732 = vsub.f32 %v210, %v1731
  %v1733 = vand.u32 %v1732, 4294901760
  %1734 = vmatmul.f32.gmra.mxu0 %v1733
  %v1735 = vpop.f32.mrf.mxu0
  %v1736 = vadd.f32 %v1351, %v1735
  %v1737 = vand.u32 %v213, 4294901760
  %v1738 = vsub.f32 %v213, %v1737
  %v1739 = vand.u32 %v1738, 4294901760
  %1740 = vmatmul.f32.gmra.mxu0 %v1739
  %v1741 = vpop.f32.mrf.mxu0
  %v1742 = vadd.f32 %v1356, %v1741
  %v1743 = vand.u32 %v216, 4294901760
  %v1744 = vsub.f32 %v216, %v1743
  %v1745 = vand.u32 %v1744, 4294901760
  %1746 = vmatmul.f32.gmra.mxu0 %v1745
  %v1747 = vpop.f32.mrf.mxu0
  %v1748 = vadd.f32 %v1361, %v1747
  %v1749 = vand.u32 %v219, 4294901760
  %v1750 = vsub.f32 %v219, %v1749
  %v1751 = vand.u32 %v1750, 4294901760
  %1752 = vmatmul.f32.gmra.mxu0 %v1751
  %v1753 = vpop.f32.mrf.mxu0
  %v1754 = vadd.f32 %v1366, %v1753
  %v1755 = vand.u32 %v222, 4294901760
  %v1756 = vsub.f32 %v222, %v1755
  %v1757 = vand.u32 %v1756, 4294901760
  %1758 = vmatmul.f32.gmra.mxu0 %v1757
  %v1759 = vpop.f32.mrf.mxu0
  %v1760 = vadd.f32 %v1371, %v1759
  %v1761 = vand.u32 %v225, 4294901760
  %v1762 = vsub.f32 %v225, %v1761
  %v1763 = vand.u32 %v1762, 4294901760
  %1764 = vmatmul.f32.gmra.mxu0 %v1763
  %v1765 = vpop.f32.mrf.mxu0
  %v1766 = vadd.f32 %v1376, %v1765
  %v1767 = vand.u32 %v228, 4294901760
  %v1768 = vsub.f32 %v228, %v1767
  %v1769 = vand.u32 %v1768, 4294901760
  %1770 = vmatmul.f32.gmra.mxu0 %v1769
  %v1771 = vpop.f32.mrf.mxu0
  %v1772 = vadd.f32 %v1381, %v1771
  %v1773 = vand.u32 %v231, 4294901760
  %v1774 = vsub.f32 %v231, %v1773
  %v1775 = vand.u32 %v1774, 4294901760
  %1776 = vmatmul.f32.gmra.mxu0 %v1775
  %v1777 = vpop.f32.mrf.mxu0
  %v1778 = vadd.f32 %v1386, %v1777
  %v1779 = vand.u32 %v234, 4294901760
  %v1780 = vsub.f32 %v234, %v1779
  %v1781 = vand.u32 %v1780, 4294901760
  %1782 = vmatmul.f32.gmra.mxu0 %v1781
  %v1783 = vpop.f32.mrf.mxu0
  %v1784 = vadd.f32 %v1391, %v1783
  %v1785 = vand.u32 %v237, 4294901760
  %v1786 = vsub.f32 %v237, %v1785
  %v1787 = vand.u32 %v1786, 4294901760
  %1788 = vmatmul.f32.gmra.mxu0 %v1787
  %v1789 = vpop.f32.mrf.mxu0
  %v1790 = vadd.f32 %v1396, %v1789
  %v1791 = vand.u32 %v240, 4294901760
  %v1792 = vsub.f32 %v240, %v1791
  %v1793 = vand.u32 %v1792, 4294901760
  %1794 = vmatmul.f32.gmra.mxu0 %v1793
  %v1795 = vpop.f32.mrf.mxu0
  %v1796 = vadd.f32 %v1401, %v1795
  %v1797 = vand.u32 %v243, 4294901760
  %v1798 = vsub.f32 %v243, %v1797
  %v1799 = vand.u32 %v1798, 4294901760
  %1800 = vmatmul.f32.gmra.mxu0 %v1799
  %v1801 = vpop.f32.mrf.mxu0
  %v1802 = vadd.f32 %v1406, %v1801
  %v1803 = vand.u32 %v246, 4294901760
  %v1804 = vsub.f32 %v246, %v1803
  %v1805 = vand.u32 %v1804, 4294901760
  %1806 = vmatmul.f32.gmra.mxu0 %v1805
  %v1807 = vpop.f32.mrf.mxu0
  %v1808 = vadd.f32 %v1411, %v1807
  %v1809 = vand.u32 %v249, 4294901760
  %v1810 = vsub.f32 %v249, %v1809
  %v1811 = vand.u32 %v1810, 4294901760
  %1812 = vmatmul.f32.gmra.mxu0 %v1811
  %v1813 = vpop.f32.mrf.mxu0
  %v1814 = vadd.f32 %v1416, %v1813
  %v1815 = vand.u32 %v252, 4294901760
  %v1816 = vsub.f32 %v252, %v1815
  %v1817 = vand.u32 %v1816, 4294901760
  %1818 = vmatmul.f32.gmra.mxu0 %v1817
  %v1819 = vpop.f32.mrf.mxu0
  %v1820 = vadd.f32 %v1421, %v1819
  %v1821 = vand.u32 %v255, 4294901760
  %v1822 = vsub.f32 %v255, %v1821
  %v1823 = vand.u32 %v1822, 4294901760
  %1824 = vmatmul.f32.gmra.mxu0 %v1823
  %v1825 = vpop.f32.mrf.mxu0
  %v1826 = vadd.f32 %v1426, %v1825
  %v1827 = vand.u32 %v258, 4294901760
  %v1828 = vsub.f32 %v258, %v1827
  %v1829 = vand.u32 %v1828, 4294901760
  %1830 = vmatmul.f32.gmra.mxu0 %v1829
  %v1831 = vpop.f32.mrf.mxu0
  %v1832 = vadd.f32 %v1431, %v1831
  %v1833 = vand.u32 %v261, 4294901760
  %v1834 = vsub.f32 %v261, %v1833
  %v1835 = vand.u32 %v1834, 4294901760
  %1836 = vmatmul.f32.gmra.mxu0 %v1835
  %v1837 = vpop.f32.mrf.mxu0
  %v1838 = vadd.f32 %v1436, %v1837
  %v1839 = vand.u32 %v264, 4294901760
  %v1840 = vsub.f32 %v264, %v1839
  %v1841 = vand.u32 %v1840, 4294901760
  %1842 = vmatmul.f32.gmra.mxu0 %v1841
  %v1843 = vpop.f32.mrf.mxu0
  %v1844 = vadd.f32 %v1441, %v1843
  %v1845 = vand.u32 %v267, 4294901760
  %v1846 = vsub.f32 %v267, %v1845
  %v1847 = vand.u32 %v1846, 4294901760
  %1848 = vmatmul.f32.gmra.mxu0 %v1847
  %v1849 = vpop.f32.mrf.mxu0
  %v1850 = vadd.f32 %v1446, %v1849
  %v1851 = vand.u32 %v270, 4294901760
  %v1852 = vsub.f32 %v270, %v1851
  %v1853 = vand.u32 %v1852, 4294901760
  %1854 = vmatmul.f32.gmra.mxu0 %v1853
  %v1855 = vpop.f32.mrf.mxu0
  %v1856 = vadd.f32 %v1451, %v1855
  %v1857 = vand.u32 %v273, 4294901760
  %v1858 = vsub.f32 %v273, %v1857
  %v1859 = vand.u32 %v1858, 4294901760
  %1860 = vmatmul.f32.gmra.mxu0 %v1859
  %v1861 = vpop.f32.mrf.mxu0
  %v1862 = vadd.f32 %v1456, %v1861
  %1863 = vdwg.mxu0
  %1864 = vmatpush.msra.mxu0 0.0
  %1865 = vmatpush.msra.mxu0 0.0
  %1866 = vmatpush.msra.mxu0 0.0
  %1867 = vmatpush.msra.mxu0 0.0
  %1868 = vmatpush.msra.mxu0 0.0
  %1869 = vmatpush.msra.mxu0 0.0
  %1870 = vmatpush.msra.mxu0 0.0
  %1871 = vmatpush.msra.mxu0 0.0
  %1872 = vmatpush.msra.mxu0 0.0
  %1873 = vmatpush.msra.mxu0 0.0
  %1874 = vmatpush.msra.mxu0 0.0
  %v1875 = vand.u32 %v277, 4294901760
  %v1876 = vsub.f32 %v277, %v1875
  %v1877 = vand.u32 %v1876, 4294901760
  %1878 = vmatpush.msra.mxu0 %v1877
  %v1879 = vand.u32 %v80, 4294901760
  %v1880 = vsub.f32 %v80, %v1879
  %v1881 = vand.u32 %v1880, 4294901760
  %1882 = vmatpush.msra.mxu0 %v1881
  %v1883 = vand.u32 %v79, 4294901760
  %v1884 = vsub.f32 %v79, %v1883
  %v1885 = vand.u32 %v1884, 4294901760
  %1886 = vmatpush.msra.mxu0 %v1885
  %v1887 = vand.u32 %v78, 4294901760
  %v1888 = vsub.f32 %v78, %v1887
  %v1889 = vand.u32 %v1888, 4294901760
  %1890 = vmatpush.msra.mxu0 %v1889
  %v1891 = vand.u32 %v77, 4294901760
  %v1892 = vsub.f32 %v77, %v1891
  %v1893 = vand.u32 %v1892, 4294901760
  %1894 = vmatpush.msra.mxu0 %v1893
  %v1895 = vand.u32 %v84, 4294901760
  %1896 = vmatmul.f32.gmra.mxu0 %v1895
  %v1897 = vpop.f32.mrf.mxu0
  %v1898 = vadd.f32 %v1484, %v1897
  %v1899 = vand.u32 %v87, 4294901760
  %1900 = vmatmul.f32.gmra.mxu0 %v1899
  %v1901 = vpop.f32.mrf.mxu0
  %v1902 = vadd.f32 %v1490, %v1901
  %v1903 = vand.u32 %v90, 4294901760
  %1904 = vmatmul.f32.gmra.mxu0 %v1903
  %v1905 = vpop.f32.mrf.mxu0
  %v1906 = vadd.f32 %v1496, %v1905
  %v1907 = vand.u32 %v93, 4294901760
  %1908 = vmatmul.f32.gmra.mxu0 %v1907
  %v1909 = vpop.f32.mrf.mxu0
  %v1910 = vadd.f32 %v1502, %v1909
  %v1911 = vand.u32 %v96, 4294901760
  %1912 = vmatmul.f32.gmra.mxu0 %v1911
  %v1913 = vpop.f32.mrf.mxu0
  %v1914 = vadd.f32 %v1508, %v1913
  %v1915 = vand.u32 %v99, 4294901760
  %1916 = vmatmul.f32.gmra.mxu0 %v1915
  %v1917 = vpop.f32.mrf.mxu0
  %v1918 = vadd.f32 %v1514, %v1917
  %v1919 = vand.u32 %v102, 4294901760
  %1920 = vmatmul.f32.gmra.mxu0 %v1919
  %v1921 = vpop.f32.mrf.mxu0
  %v1922 = vadd.f32 %v1520, %v1921
  %v1923 = vand.u32 %v105, 4294901760
  %1924 = vmatmul.f32.gmra.mxu0 %v1923
  %v1925 = vpop.f32.mrf.mxu0
  %v1926 = vadd.f32 %v1526, %v1925
  %v1927 = vand.u32 %v108, 4294901760
  %1928 = vmatmul.f32.gmra.mxu0 %v1927
  %v1929 = vpop.f32.mrf.mxu0
  %v1930 = vadd.f32 %v1532, %v1929
  %v1931 = vand.u32 %v111, 4294901760
  %1932 = vmatmul.f32.gmra.mxu0 %v1931
  %v1933 = vpop.f32.mrf.mxu0
  %v1934 = vadd.f32 %v1538, %v1933
  %v1935 = vand.u32 %v114, 4294901760
  %1936 = vmatmul.f32.gmra.mxu0 %v1935
  %v1937 = vpop.f32.mrf.mxu0
  %v1938 = vadd.f32 %v1544, %v1937
  %v1939 = vand.u32 %v117, 4294901760
  %1940 = vmatmul.f32.gmra.mxu0 %v1939
  %v1941 = vpop.f32.mrf.mxu0
  %v1942 = vadd.f32 %v1550, %v1941
  %v1943 = vand.u32 %v120, 4294901760
  %1944 = vmatmul.f32.gmra.mxu0 %v1943
  %v1945 = vpop.f32.mrf.mxu0
  %v1946 = vadd.f32 %v1556, %v1945
  %v1947 = vand.u32 %v123, 4294901760
  %1948 = vmatmul.f32.gmra.mxu0 %v1947
  %v1949 = vpop.f32.mrf.mxu0
  %v1950 = vadd.f32 %v1562, %v1949
  %v1951 = vand.u32 %v126, 4294901760
  %1952 = vmatmul.f32.gmra.mxu0 %v1951
  %v1953 = vpop.f32.mrf.mxu0
  %v1954 = vadd.f32 %v1568, %v1953
  %v1955 = vand.u32 %v129, 4294901760
  %1956 = vmatmul.f32.gmra.mxu0 %v1955
  %v1957 = vpop.f32.mrf.mxu0
  %v1958 = vadd.f32 %v1574, %v1957
  %v1959 = vand.u32 %v132, 4294901760
  %1960 = vmatmul.f32.gmra.mxu0 %v1959
  %v1961 = vpop.f32.mrf.mxu0
  %v1962 = vadd.f32 %v1580, %v1961
  %v1963 = vand.u32 %v135, 4294901760
  %1964 = vmatmul.f32.gmra.mxu0 %v1963
  %v1965 = vpop.f32.mrf.mxu0
  %v1966 = vadd.f32 %v1586, %v1965
  %v1967 = vand.u32 %v138, 4294901760
  %1968 = vmatmul.f32.gmra.mxu0 %v1967
  %v1969 = vpop.f32.mrf.mxu0
  %v1970 = vadd.f32 %v1592, %v1969
  %v1971 = vand.u32 %v141, 4294901760
  %1972 = vmatmul.f32.gmra.mxu0 %v1971
  %v1973 = vpop.f32.mrf.mxu0
  %v1974 = vadd.f32 %v1598, %v1973
  %v1975 = vand.u32 %v144, 4294901760
  %1976 = vmatmul.f32.gmra.mxu0 %v1975
  %v1977 = vpop.f32.mrf.mxu0
  %v1978 = vadd.f32 %v1604, %v1977
  %v1979 = vand.u32 %v147, 4294901760
  %1980 = vmatmul.f32.gmra.mxu0 %v1979
  %v1981 = vpop.f32.mrf.mxu0
  %v1982 = vadd.f32 %v1610, %v1981
  %v1983 = vand.u32 %v150, 4294901760
  %1984 = vmatmul.f32.gmra.mxu0 %v1983
  %v1985 = vpop.f32.mrf.mxu0
  %v1986 = vadd.f32 %v1616, %v1985
  %v1987 = vand.u32 %v153, 4294901760
  %1988 = vmatmul.f32.gmra.mxu0 %v1987
  %v1989 = vpop.f32.mrf.mxu0
  %v1990 = vadd.f32 %v1622, %v1989
  %v1991 = vand.u32 %v156, 4294901760
  %1992 = vmatmul.f32.gmra.mxu0 %v1991
  %v1993 = vpop.f32.mrf.mxu0
  %v1994 = vadd.f32 %v1628, %v1993
  %v1995 = vand.u32 %v159, 4294901760
  %1996 = vmatmul.f32.gmra.mxu0 %v1995
  %v1997 = vpop.f32.mrf.mxu0
  %v1998 = vadd.f32 %v1634, %v1997
  %v1999 = vand.u32 %v162, 4294901760
  %2000 = vmatmul.f32.gmra.mxu0 %v1999
  %v2001 = vpop.f32.mrf.mxu0
  %v2002 = vadd.f32 %v1640, %v2001
  %v2003 = vand.u32 %v165, 4294901760
  %2004 = vmatmul.f32.gmra.mxu0 %v2003
  %v2005 = vpop.f32.mrf.mxu0
  %v2006 = vadd.f32 %v1646, %v2005
  %v2007 = vand.u32 %v168, 4294901760
  %2008 = vmatmul.f32.gmra.mxu0 %v2007
  %v2009 = vpop.f32.mrf.mxu0
  %v2010 = vadd.f32 %v1652, %v2009
  %v2011 = vand.u32 %v171, 4294901760
  %2012 = vmatmul.f32.gmra.mxu0 %v2011
  %v2013 = vpop.f32.mrf.mxu0
  %v2014 = vadd.f32 %v1658, %v2013
  %v2015 = vand.u32 %v174, 4294901760
  %2016 = vmatmul.f32.gmra.mxu0 %v2015
  %v2017 = vpop.f32.mrf.mxu0
  %v2018 = vadd.f32 %v1664, %v2017
  %v2019 = vand.u32 %v177, 4294901760
  %2020 = vmatmul.f32.gmra.mxu0 %v2019
  %v2021 = vpop.f32.mrf.mxu0
  %v2022 = vadd.f32 %v1670, %v2021
  %v2023 = vand.u32 %v180, 4294901760
  %2024 = vmatmul.f32.gmra.mxu0 %v2023
  %v2025 = vpop.f32.mrf.mxu0
  %v2026 = vadd.f32 %v1676, %v2025
  %v2027 = vand.u32 %v183, 4294901760
  %2028 = vmatmul.f32.gmra.mxu0 %v2027
  %v2029 = vpop.f32.mrf.mxu0
  %v2030 = vadd.f32 %v1682, %v2029
  %v2031 = vand.u32 %v186, 4294901760
  %2032 = vmatmul.f32.gmra.mxu0 %v2031
  %v2033 = vpop.f32.mrf.mxu0
  %v2034 = vadd.f32 %v1688, %v2033
  %v2035 = vand.u32 %v189, 4294901760
  %2036 = vmatmul.f32.gmra.mxu0 %v2035
  %v2037 = vpop.f32.mrf.mxu0
  %v2038 = vadd.f32 %v1694, %v2037
  %v2039 = vand.u32 %v192, 4294901760
  %2040 = vmatmul.f32.gmra.mxu0 %v2039
  %v2041 = vpop.f32.mrf.mxu0
  %v2042 = vadd.f32 %v1700, %v2041
  %v2043 = vand.u32 %v195, 4294901760
  %2044 = vmatmul.f32.gmra.mxu0 %v2043
  %v2045 = vpop.f32.mrf.mxu0
  %v2046 = vadd.f32 %v1706, %v2045
  %v2047 = vand.u32 %v198, 4294901760
  %2048 = vmatmul.f32.gmra.mxu0 %v2047
  %v2049 = vpop.f32.mrf.mxu0
  %v2050 = vadd.f32 %v1712, %v2049
  %v2051 = vand.u32 %v201, 4294901760
  %2052 = vmatmul.f32.gmra.mxu0 %v2051
  %v2053 = vpop.f32.mrf.mxu0
  %v2054 = vadd.f32 %v1718, %v2053
  %v2055 = vand.u32 %v204, 4294901760
  %2056 = vmatmul.f32.gmra.mxu0 %v2055
  %v2057 = vpop.f32.mrf.mxu0
  %v2058 = vadd.f32 %v1724, %v2057
  %v2059 = vand.u32 %v207, 4294901760
  %2060 = vmatmul.f32.gmra.mxu0 %v2059
  %v2061 = vpop.f32.mrf.mxu0
  %v2062 = vadd.f32 %v1730, %v2061
  %v2063 = vand.u32 %v210, 4294901760
  %2064 = vmatmul.f32.gmra.mxu0 %v2063
  %v2065 = vpop.f32.mrf.mxu0
  %v2066 = vadd.f32 %v1736, %v2065
  %v2067 = vand.u32 %v213, 4294901760
  %2068 = vmatmul.f32.gmra.mxu0 %v2067
  %v2069 = vpop.f32.mrf.mxu0
  %v2070 = vadd.f32 %v1742, %v2069
  %v2071 = vand.u32 %v216, 4294901760
  %2072 = vmatmul.f32.gmra.mxu0 %v2071
  %v2073 = vpop.f32.mrf.mxu0
  %v2074 = vadd.f32 %v1748, %v2073
  %v2075 = vand.u32 %v219, 4294901760
  %2076 = vmatmul.f32.gmra.mxu0 %v2075
  %v2077 = vpop.f32.mrf.mxu0
  %v2078 = vadd.f32 %v1754, %v2077
  %v2079 = vand.u32 %v222, 4294901760
  %2080 = vmatmul.f32.gmra.mxu0 %v2079
  %v2081 = vpop.f32.mrf.mxu0
  %v2082 = vadd.f32 %v1760, %v2081
  %v2083 = vand.u32 %v225, 4294901760
  %2084 = vmatmul.f32.gmra.mxu0 %v2083
  %v2085 = vpop.f32.mrf.mxu0
  %v2086 = vadd.f32 %v1766, %v2085
  %v2087 = vand.u32 %v228, 4294901760
  %2088 = vmatmul.f32.gmra.mxu0 %v2087
  %v2089 = vpop.f32.mrf.mxu0
  %v2090 = vadd.f32 %v1772, %v2089
  %v2091 = vand.u32 %v231, 4294901760
  %2092 = vmatmul.f32.gmra.mxu0 %v2091
  %v2093 = vpop.f32.mrf.mxu0
  %v2094 = vadd.f32 %v1778, %v2093
  %v2095 = vand.u32 %v234, 4294901760
  %2096 = vmatmul.f32.gmra.mxu0 %v2095
  %v2097 = vpop.f32.mrf.mxu0
  %v2098 = vadd.f32 %v1784, %v2097
  %v2099 = vand.u32 %v237, 4294901760
  %2100 = vmatmul.f32.gmra.mxu0 %v2099
  %v2101 = vpop.f32.mrf.mxu0
  %v2102 = vadd.f32 %v1790, %v2101
  %v2103 = vand.u32 %v240, 4294901760
  %2104 = vmatmul.f32.gmra.mxu0 %v2103
  %v2105 = vpop.f32.mrf.mxu0
  %v2106 = vadd.f32 %v1796, %v2105
  %v2107 = vand.u32 %v243, 4294901760
  %2108 = vmatmul.f32.gmra.mxu0 %v2107
  %v2109 = vpop.f32.mrf.mxu0
  %v2110 = vadd.f32 %v1802, %v2109
  %v2111 = vand.u32 %v246, 4294901760
  %2112 = vmatmul.f32.gmra.mxu0 %v2111
  %v2113 = vpop.f32.mrf.mxu0
  %v2114 = vadd.f32 %v1808, %v2113
  %v2115 = vand.u32 %v249, 4294901760
  %2116 = vmatmul.f32.gmra.mxu0 %v2115
  %v2117 = vpop.f32.mrf.mxu0
  %v2118 = vadd.f32 %v1814, %v2117
  %v2119 = vand.u32 %v252, 4294901760
  %2120 = vmatmul.f32.gmra.mxu0 %v2119
  %v2121 = vpop.f32.mrf.mxu0
  %v2122 = vadd.f32 %v1820, %v2121
  %v2123 = vand.u32 %v255, 4294901760
  %2124 = vmatmul.f32.gmra.mxu0 %v2123
  %v2125 = vpop.f32.mrf.mxu0
  %v2126 = vadd.f32 %v1826, %v2125
  %v2127 = vand.u32 %v258, 4294901760
  %2128 = vmatmul.f32.gmra.mxu0 %v2127
  %v2129 = vpop.f32.mrf.mxu0
  %v2130 = vadd.f32 %v1832, %v2129
  %v2131 = vand.u32 %v261, 4294901760
  %2132 = vmatmul.f32.gmra.mxu0 %v2131
  %v2133 = vpop.f32.mrf.mxu0
  %v2134 = vadd.f32 %v1838, %v2133
  %v2135 = vand.u32 %v264, 4294901760
  %2136 = vmatmul.f32.gmra.mxu0 %v2135
  %v2137 = vpop.f32.mrf.mxu0
  %v2138 = vadd.f32 %v1844, %v2137
  %v2139 = vand.u32 %v267, 4294901760
  %2140 = vmatmul.f32.gmra.mxu0 %v2139
  %v2141 = vpop.f32.mrf.mxu0
  %v2142 = vadd.f32 %v1850, %v2141
  %v2143 = vand.u32 %v270, 4294901760
  %2144 = vmatmul.f32.gmra.mxu0 %v2143
  %v2145 = vpop.f32.mrf.mxu0
  %v2146 = vadd.f32 %v1856, %v2145
  %v2147 = vand.u32 %v273, 4294901760
  %2148 = vmatmul.f32.gmra.mxu0 %v2147
  %v2149 = vpop.f32.mrf.mxu0
  %v2150 = vadd.f32 %v1862, %v2149
  %2151 = vdwg.mxu0
  %2152 = vmatpush.msra.mxu0 0.0
  %2153 = vmatpush.msra.mxu0 0.0
  %2154 = vmatpush.msra.mxu0 0.0
  %2155 = vmatpush.msra.mxu0 0.0
  %2156 = vmatpush.msra.mxu0 0.0
  %2157 = vmatpush.msra.mxu0 0.0
  %2158 = vmatpush.msra.mxu0 0.0
  %2159 = vmatpush.msra.mxu0 0.0
  %2160 = vmatpush.msra.mxu0 0.0
  %2161 = vmatpush.msra.mxu0 0.0
  %2162 = vmatpush.msra.mxu0 0.0
  %v2163 = vand.u32 %v277, 4294901760
  %2164 = vmatpush.msra.mxu0 %v2163
  %v2165 = vand.u32 %v80, 4294901760
  %2166 = vmatpush.msra.mxu0 %v2165
  %v2167 = vand.u32 %v79, 4294901760
  %2168 = vmatpush.msra.mxu0 %v2167
  %v2169 = vand.u32 %v78, 4294901760
  %2170 = vmatpush.msra.mxu0 %v2169
  %v2171 = vand.u32 %v77, 4294901760
  %2172 = vmatpush.msra.mxu0 %v2171
  %v2173 = vand.u32 %v84, 4294901760
  %2174 = vmatmul.f32.gmra.mxu0 %v2173
  %v2175 = vpop.f32.mrf.mxu0
  %v2176 = vadd.f32 %v1898, %v2175
  %v2177 = vand.u32 %v87, 4294901760
  %2178 = vmatmul.f32.gmra.mxu0 %v2177
  %v2179 = vpop.f32.mrf.mxu0
  %v2180 = vadd.f32 %v1902, %v2179
  %v2181 = vand.u32 %v90, 4294901760
  %2182 = vmatmul.f32.gmra.mxu0 %v2181
  %v2183 = vpop.f32.mrf.mxu0
  %v2184 = vadd.f32 %v1906, %v2183
  %v2185 = vand.u32 %v93, 4294901760
  %2186 = vmatmul.f32.gmra.mxu0 %v2185
  %v2187 = vpop.f32.mrf.mxu0
  %v2188 = vadd.f32 %v1910, %v2187
  %v2189 = vand.u32 %v96, 4294901760
  %2190 = vmatmul.f32.gmra.mxu0 %v2189
  %v2191 = vpop.f32.mrf.mxu0
  %v2192 = vadd.f32 %v1914, %v2191
  %v2193 = vand.u32 %v99, 4294901760
  %2194 = vmatmul.f32.gmra.mxu0 %v2193
  %v2195 = vpop.f32.mrf.mxu0
  %v2196 = vadd.f32 %v1918, %v2195
  %v2197 = vand.u32 %v102, 4294901760
  %2198 = vmatmul.f32.gmra.mxu0 %v2197
  %v2199 = vpop.f32.mrf.mxu0
  %v2200 = vadd.f32 %v1922, %v2199
  %v2201 = vand.u32 %v105, 4294901760
  %2202 = vmatmul.f32.gmra.mxu0 %v2201
  %v2203 = vpop.f32.mrf.mxu0
  %v2204 = vadd.f32 %v1926, %v2203
  %v2205 = vand.u32 %v108, 4294901760
  %2206 = vmatmul.f32.gmra.mxu0 %v2205
  %v2207 = vpop.f32.mrf.mxu0
  %v2208 = vadd.f32 %v1930, %v2207
  %v2209 = vand.u32 %v111, 4294901760
  %2210 = vmatmul.f32.gmra.mxu0 %v2209
  %v2211 = vpop.f32.mrf.mxu0
  %v2212 = vadd.f32 %v1934, %v2211
  %v2213 = vand.u32 %v114, 4294901760
  %2214 = vmatmul.f32.gmra.mxu0 %v2213
  %v2215 = vpop.f32.mrf.mxu0
  %v2216 = vadd.f32 %v1938, %v2215
  %v2217 = vand.u32 %v117, 4294901760
  %2218 = vmatmul.f32.gmra.mxu0 %v2217
  %v2219 = vpop.f32.mrf.mxu0
  %v2220 = vadd.f32 %v1942, %v2219
  %v2221 = vand.u32 %v120, 4294901760
  %2222 = vmatmul.f32.gmra.mxu0 %v2221
  %v2223 = vpop.f32.mrf.mxu0
  %v2224 = vadd.f32 %v1946, %v2223
  %v2225 = vand.u32 %v123, 4294901760
  %2226 = vmatmul.f32.gmra.mxu0 %v2225
  %v2227 = vpop.f32.mrf.mxu0
  %v2228 = vadd.f32 %v1950, %v2227
  %v2229 = vand.u32 %v126, 4294901760
  %2230 = vmatmul.f32.gmra.mxu0 %v2229
  %v2231 = vpop.f32.mrf.mxu0
  %v2232 = vadd.f32 %v1954, %v2231
  %v2233 = vand.u32 %v129, 4294901760
  %2234 = vmatmul.f32.gmra.mxu0 %v2233
  %v2235 = vpop.f32.mrf.mxu0
  %v2236 = vadd.f32 %v1958, %v2235
  %v2237 = vand.u32 %v132, 4294901760
  %2238 = vmatmul.f32.gmra.mxu0 %v2237
  %v2239 = vpop.f32.mrf.mxu0
  %v2240 = vadd.f32 %v1962, %v2239
  %v2241 = vand.u32 %v135, 4294901760
  %2242 = vmatmul.f32.gmra.mxu0 %v2241
  %v2243 = vpop.f32.mrf.mxu0
  %v2244 = vadd.f32 %v1966, %v2243
  %v2245 = vand.u32 %v138, 4294901760
  %2246 = vmatmul.f32.gmra.mxu0 %v2245
  %v2247 = vpop.f32.mrf.mxu0
  %v2248 = vadd.f32 %v1970, %v2247
  %v2249 = vand.u32 %v141, 4294901760
  %2250 = vmatmul.f32.gmra.mxu0 %v2249
  %v2251 = vpop.f32.mrf.mxu0
  %v2252 = vadd.f32 %v1974, %v2251
  %v2253 = vand.u32 %v144, 4294901760
  %2254 = vmatmul.f32.gmra.mxu0 %v2253
  %v2255 = vpop.f32.mrf.mxu0
  %v2256 = vadd.f32 %v1978, %v2255
  %v2257 = vand.u32 %v147, 4294901760
  %2258 = vmatmul.f32.gmra.mxu0 %v2257
  %v2259 = vpop.f32.mrf.mxu0
  %v2260 = vadd.f32 %v1982, %v2259
  %v2261 = vand.u32 %v150, 4294901760
  %2262 = vmatmul.f32.gmra.mxu0 %v2261
  %v2263 = vpop.f32.mrf.mxu0
  %v2264 = vadd.f32 %v1986, %v2263
  %v2265 = vand.u32 %v153, 4294901760
  %2266 = vmatmul.f32.gmra.mxu0 %v2265
  %v2267 = vpop.f32.mrf.mxu0
  %v2268 = vadd.f32 %v1990, %v2267
  %v2269 = vand.u32 %v156, 4294901760
  %2270 = vmatmul.f32.gmra.mxu0 %v2269
  %v2271 = vpop.f32.mrf.mxu0
  %v2272 = vadd.f32 %v1994, %v2271
  %v2273 = vand.u32 %v159, 4294901760
  %2274 = vmatmul.f32.gmra.mxu0 %v2273
  %v2275 = vpop.f32.mrf.mxu0
  %v2276 = vadd.f32 %v1998, %v2275
  %v2277 = vand.u32 %v162, 4294901760
  %2278 = vmatmul.f32.gmra.mxu0 %v2277
  %v2279 = vpop.f32.mrf.mxu0
  %v2280 = vadd.f32 %v2002, %v2279
  %v2281 = vand.u32 %v165, 4294901760
  %2282 = vmatmul.f32.gmra.mxu0 %v2281
  %v2283 = vpop.f32.mrf.mxu0
  %v2284 = vadd.f32 %v2006, %v2283
  %v2285 = vand.u32 %v168, 4294901760
  %2286 = vmatmul.f32.gmra.mxu0 %v2285
  %v2287 = vpop.f32.mrf.mxu0
  %v2288 = vadd.f32 %v2010, %v2287
  %v2289 = vand.u32 %v171, 4294901760
  %2290 = vmatmul.f32.gmra.mxu0 %v2289
  %v2291 = vpop.f32.mrf.mxu0
  %v2292 = vadd.f32 %v2014, %v2291
  %v2293 = vand.u32 %v174, 4294901760
  %2294 = vmatmul.f32.gmra.mxu0 %v2293
  %v2295 = vpop.f32.mrf.mxu0
  %v2296 = vadd.f32 %v2018, %v2295
  %v2297 = vand.u32 %v177, 4294901760
  %2298 = vmatmul.f32.gmra.mxu0 %v2297
  %v2299 = vpop.f32.mrf.mxu0
  %v2300 = vadd.f32 %v2022, %v2299
  %v2301 = vand.u32 %v180, 4294901760
  %2302 = vmatmul.f32.gmra.mxu0 %v2301
  %v2303 = vpop.f32.mrf.mxu0
  %v2304 = vadd.f32 %v2026, %v2303
  %v2305 = vand.u32 %v183, 4294901760
  %2306 = vmatmul.f32.gmra.mxu0 %v2305
  %v2307 = vpop.f32.mrf.mxu0
  %v2308 = vadd.f32 %v2030, %v2307
  %v2309 = vand.u32 %v186, 4294901760
  %2310 = vmatmul.f32.gmra.mxu0 %v2309
  %v2311 = vpop.f32.mrf.mxu0
  %v2312 = vadd.f32 %v2034, %v2311
  %v2313 = vand.u32 %v189, 4294901760
  %2314 = vmatmul.f32.gmra.mxu0 %v2313
  %v2315 = vpop.f32.mrf.mxu0
  %v2316 = vadd.f32 %v2038, %v2315
  %v2317 = vand.u32 %v192, 4294901760
  %2318 = vmatmul.f32.gmra.mxu0 %v2317
  %v2319 = vpop.f32.mrf.mxu0
  %v2320 = vadd.f32 %v2042, %v2319
  %v2321 = vand.u32 %v195, 4294901760
  %2322 = vmatmul.f32.gmra.mxu0 %v2321
  %v2323 = vpop.f32.mrf.mxu0
  %v2324 = vadd.f32 %v2046, %v2323
  %v2325 = vand.u32 %v198, 4294901760
  %2326 = vmatmul.f32.gmra.mxu0 %v2325
  %v2327 = vpop.f32.mrf.mxu0
  %v2328 = vadd.f32 %v2050, %v2327
  %v2329 = vand.u32 %v201, 4294901760
  %2330 = vmatmul.f32.gmra.mxu0 %v2329
  %v2331 = vpop.f32.mrf.mxu0
  %v2332 = vadd.f32 %v2054, %v2331
  %v2333 = vand.u32 %v204, 4294901760
  %2334 = vmatmul.f32.gmra.mxu0 %v2333
  %v2335 = vpop.f32.mrf.mxu0
  %v2336 = vadd.f32 %v2058, %v2335
  %v2337 = vand.u32 %v207, 4294901760
  %2338 = vmatmul.f32.gmra.mxu0 %v2337
  %v2339 = vpop.f32.mrf.mxu0
  %v2340 = vadd.f32 %v2062, %v2339
  %v2341 = vand.u32 %v210, 4294901760
  %2342 = vmatmul.f32.gmra.mxu0 %v2341
  %v2343 = vpop.f32.mrf.mxu0
  %v2344 = vadd.f32 %v2066, %v2343
  %v2345 = vand.u32 %v213, 4294901760
  %2346 = vmatmul.f32.gmra.mxu0 %v2345
  %v2347 = vpop.f32.mrf.mxu0
  %v2348 = vadd.f32 %v2070, %v2347
  %v2349 = vand.u32 %v216, 4294901760
  %2350 = vmatmul.f32.gmra.mxu0 %v2349
  %v2351 = vpop.f32.mrf.mxu0
  %v2352 = vadd.f32 %v2074, %v2351
  %v2353 = vand.u32 %v219, 4294901760
  %2354 = vmatmul.f32.gmra.mxu0 %v2353
  %v2355 = vpop.f32.mrf.mxu0
  %v2356 = vadd.f32 %v2078, %v2355
  %v2357 = vand.u32 %v222, 4294901760
  %2358 = vmatmul.f32.gmra.mxu0 %v2357
  %v2359 = vpop.f32.mrf.mxu0
  %v2360 = vadd.f32 %v2082, %v2359
  %v2361 = vand.u32 %v225, 4294901760
  %2362 = vmatmul.f32.gmra.mxu0 %v2361
  %v2363 = vpop.f32.mrf.mxu0
  %v2364 = vadd.f32 %v2086, %v2363
  %v2365 = vand.u32 %v228, 4294901760
  %2366 = vmatmul.f32.gmra.mxu0 %v2365
  %v2367 = vpop.f32.mrf.mxu0
  %v2368 = vadd.f32 %v2090, %v2367
  %v2369 = vand.u32 %v231, 4294901760
  %2370 = vmatmul.f32.gmra.mxu0 %v2369
  %v2371 = vpop.f32.mrf.mxu0
  %v2372 = vadd.f32 %v2094, %v2371
  %v2373 = vand.u32 %v234, 4294901760
  %2374 = vmatmul.f32.gmra.mxu0 %v2373
  %v2375 = vpop.f32.mrf.mxu0
  %v2376 = vadd.f32 %v2098, %v2375
  %v2377 = vand.u32 %v237, 4294901760
  %2378 = vmatmul.f32.gmra.mxu0 %v2377
  %v2379 = vpop.f32.mrf.mxu0
  %v2380 = vadd.f32 %v2102, %v2379
  %v2381 = vand.u32 %v240, 4294901760
  %2382 = vmatmul.f32.gmra.mxu0 %v2381
  %v2383 = vpop.f32.mrf.mxu0
  %v2384 = vadd.f32 %v2106, %v2383
  %v2385 = vand.u32 %v243, 4294901760
  %2386 = vmatmul.f32.gmra.mxu0 %v2385
  %v2387 = vpop.f32.mrf.mxu0
  %v2388 = vadd.f32 %v2110, %v2387
  %v2389 = vand.u32 %v246, 4294901760
  %2390 = vmatmul.f32.gmra.mxu0 %v2389
  %v2391 = vpop.f32.mrf.mxu0
  %v2392 = vadd.f32 %v2114, %v2391
  %v2393 = vand.u32 %v249, 4294901760
  %2394 = vmatmul.f32.gmra.mxu0 %v2393
  %v2395 = vpop.f32.mrf.mxu0
  %v2396 = vadd.f32 %v2118, %v2395
  %v2397 = vand.u32 %v252, 4294901760
  %2398 = vmatmul.f32.gmra.mxu0 %v2397
  %v2399 = vpop.f32.mrf.mxu0
  %v2400 = vadd.f32 %v2122, %v2399
  %v2401 = vand.u32 %v255, 4294901760
  %2402 = vmatmul.f32.gmra.mxu0 %v2401
  %v2403 = vpop.f32.mrf.mxu0
  %v2404 = vadd.f32 %v2126, %v2403
  %v2405 = vand.u32 %v258, 4294901760
  %2406 = vmatmul.f32.gmra.mxu0 %v2405
  %v2407 = vpop.f32.mrf.mxu0
  %v2408 = vadd.f32 %v2130, %v2407
  %v2409 = vand.u32 %v261, 4294901760
  %2410 = vmatmul.f32.gmra.mxu0 %v2409
  %v2411 = vpop.f32.mrf.mxu0
  %v2412 = vadd.f32 %v2134, %v2411
  %v2413 = vand.u32 %v264, 4294901760
  %2414 = vmatmul.f32.gmra.mxu0 %v2413
  %v2415 = vpop.f32.mrf.mxu0
  %v2416 = vadd.f32 %v2138, %v2415
  %v2417 = vand.u32 %v267, 4294901760
  %2418 = vmatmul.f32.gmra.mxu0 %v2417
  %v2419 = vpop.f32.mrf.mxu0
  %v2420 = vadd.f32 %v2142, %v2419
  %v2421 = vand.u32 %v270, 4294901760
  %2422 = vmatmul.f32.gmra.mxu0 %v2421
  %v2423 = vpop.f32.mrf.mxu0
  %v2424 = vadd.f32 %v2146, %v2423
  %v2425 = vand.u32 %v273, 4294901760
  %2426 = vmatmul.f32.gmra.mxu0 %v2425
  %v2427 = vpop.f32.mrf.mxu0
  %v2428 = vadd.f32 %v2150, %v2427
  %2429 = vdwg.mxu0
  %2430 = vst [vmem:[%s2] sm:$0xff] %v2176
  %2431 = vst [vmem:[%s2 + $0x8] sm:$0xff] %v2180
  %2432 = vst [vmem:[%s2 + $0x10] sm:$0xff] %v2184
  %2433 = vst [vmem:[%s2 + $0x18] sm:$0xff] %v2188
  %2434 = vst [vmem:[%s2 + $0x20] sm:$0xff] %v2192
  %2435 = vst [vmem:[%s2 + $0x28] sm:$0xff] %v2196
  %2436 = vst [vmem:[%s2 + $0x30] sm:$0xff] %v2200
  %2437 = vst [vmem:[%s2 + $0x38] sm:$0xff] %v2204
  %2438 = vst [vmem:[%s2 + $0x40] sm:$0xff] %v2208
  %2439 = vst [vmem:[%s2 + $0x48] sm:$0xff] %v2212
  %2440 = vst [vmem:[%s2 + $0x50] sm:$0xff] %v2216
  %2441 = vst [vmem:[%s2 + $0x58] sm:$0xff] %v2220
  %2442 = vst [vmem:[%s2 + $0x60] sm:$0xff] %v2224
  %2443 = vst [vmem:[%s2 + $0x68] sm:$0xff] %v2228
  %2444 = vst [vmem:[%s2 + $0x70] sm:$0xff] %v2232
  %2445 = vst [vmem:[%s2 + $0x78] sm:$0xff] %v2236
  %2446 = vst [vmem:[%s2 + $0x80] sm:$0xff] %v2240
  %2447 = vst [vmem:[%s2 + $0x88] sm:$0xff] %v2244
  %2448 = vst [vmem:[%s2 + $0x90] sm:$0xff] %v2248
  %2449 = vst [vmem:[%s2 + $0x98] sm:$0xff] %v2252
  %2450 = vst [vmem:[%s2 + $0xa0] sm:$0xff] %v2256
  %2451 = vst [vmem:[%s2 + $0xa8] sm:$0xff] %v2260
  %2452 = vst [vmem:[%s2 + $0xb0] sm:$0xff] %v2264
  %2453 = vst [vmem:[%s2 + $0xb8] sm:$0xff] %v2268
  %2454 = vst [vmem:[%s2 + $0xc0] sm:$0xff] %v2272
  %2455 = vst [vmem:[%s2 + $0xc8] sm:$0xff] %v2276
  %2456 = vst [vmem:[%s2 + $0xd0] sm:$0xff] %v2280
  %2457 = vst [vmem:[%s2 + $0xd8] sm:$0xff] %v2284
  %2458 = vst [vmem:[%s2 + $0xe0] sm:$0xff] %v2288
  %2459 = vst [vmem:[%s2 + $0xe8] sm:$0xff] %v2292
  %2460 = vst [vmem:[%s2 + $0xf0] sm:$0xff] %v2296
  %2461 = vst [vmem:[%s2 + $0xf8] sm:$0xff] %v2300
  %2462 = vst [vmem:[%s2 + $0x100] sm:$0xff] %v2304
  %2463 = vst [vmem:[%s2 + $0x108] sm:$0xff] %v2308
  %2464 = vst [vmem:[%s2 + $0x110] sm:$0xff] %v2312
  %2465 = vst [vmem:[%s2 + $0x118] sm:$0xff] %v2316
  %2466 = vst [vmem:[%s2 + $0x120] sm:$0xff] %v2320
  %2467 = vst [vmem:[%s2 + $0x128] sm:$0xff] %v2324
  %2468 = vst [vmem:[%s2 + $0x130] sm:$0xff] %v2328
  %2469 = vst [vmem:[%s2 + $0x138] sm:$0xff] %v2332
  %2470 = vst [vmem:[%s2 + $0x140] sm:$0xff] %v2336
  %2471 = vst [vmem:[%s2 + $0x148] sm:$0xff] %v2340
  %2472 = vst [vmem:[%s2 + $0x150] sm:$0xff] %v2344
  %2473 = vst [vmem:[%s2 + $0x158] sm:$0xff] %v2348
  %2474 = vst [vmem:[%s2 + $0x160] sm:$0xff] %v2352
  %2475 = vst [vmem:[%s2 + $0x168] sm:$0xff] %v2356
  %2476 = vst [vmem:[%s2 + $0x170] sm:$0xff] %v2360
  %2477 = vst [vmem:[%s2 + $0x178] sm:$0xff] %v2364
  %2478 = vst [vmem:[%s2 + $0x180] sm:$0xff] %v2368
  %2479 = vst [vmem:[%s2 + $0x188] sm:$0xff] %v2372
  %2480 = vst [vmem:[%s2 + $0x190] sm:$0xff] %v2376
  %2481 = vst [vmem:[%s2 + $0x198] sm:$0xff] %v2380
  %2482 = vst [vmem:[%s2 + $0x1a0] sm:$0xff] %v2384
  %2483 = vst [vmem:[%s2 + $0x1a8] sm:$0xff] %v2388
  %2484 = vst [vmem:[%s2 + $0x1b0] sm:$0xff] %v2392
  %2485 = vst [vmem:[%s2 + $0x1b8] sm:$0xff] %v2396
  %2486 = vst [vmem:[%s2 + $0x1c0] sm:$0xff] %v2400
  %2487 = vst [vmem:[%s2 + $0x1c8] sm:$0xff] %v2404
  %2488 = vst [vmem:[%s2 + $0x1d0] sm:$0xff] %v2408
  %2489 = vst [vmem:[%s2 + $0x1d8] sm:$0xff] %v2412
  %2490 = vst [vmem:[%s2 + $0x1e0] sm:$0xff] %v2416
  %2491 = vst [vmem:[%s2 + $0x1e8] sm:$0xff] %v2420
  %2492 = vst [vmem:[%s2 + $0x1f0] sm:$0xff] %v2424
  %2493 = vst [vmem:[%s2 + $0x1f8] sm:$0xff] %v2428
  %v2494 = vand.u32 %v2236, 4294901760
  %2495 = vmatpush.msra.mxu0 %v2494
  %v2496 = vand.u32 %v2232, 4294901760
  %2497 = vmatpush.msra.mxu0 %v2496
  %v2498 = vand.u32 %v2228, 4294901760
  %2499 = vmatpush.msra.mxu0 %v2498
  %v2500 = vand.u32 %v2224, 4294901760
  %2501 = vmatpush.msra.mxu0 %v2500
  %v2502 = vand.u32 %v2220, 4294901760
  %2503 = vmatpush.msra.mxu0 %v2502
  %v2504 = vand.u32 %v2216, 4294901760
  %2505 = vmatpush.msra.mxu0 %v2504
  %v2506 = vand.u32 %v2212, 4294901760
  %2507 = vmatpush.msra.mxu0 %v2506
  %v2508 = vand.u32 %v2208, 4294901760
  %2509 = vmatpush.msra.mxu0 %v2508
  %v2510 = vand.u32 %v2204, 4294901760
  %2511 = vmatpush.msra.mxu0 %v2510
  %v2512 = vand.u32 %v2200, 4294901760
  %2513 = vmatpush.msra.mxu0 %v2512
  %v2514 = vand.u32 %v2196, 4294901760
  %2515 = vmatpush.msra.mxu0 %v2514
  %v2516 = vand.u32 %v2192, 4294901760
  %2517 = vmatpush.msra.mxu0 %v2516
  %v2518 = vand.u32 %v2188, 4294901760
  %2519 = vmatpush.msra.mxu0 %v2518
  %v2520 = vand.u32 %v2184, 4294901760
  %2521 = vmatpush.msra.mxu0 %v2520
  %v2522 = vand.u32 %v2180, 4294901760
  %2523 = vmatpush.msra.mxu0 %v2522
  %v2524 = vand.u32 %v2176, 4294901760
  %2525 = vmatpush.msra.mxu0 %v2524
  %2526 = vmatmul.f32.gmra.mxu0 0.0
  %v2527 = vpop.f32.mrf.mxu0
  %v2528 = vadd.f32 0.0, %v2527
  %2529 = vdwg.mxu0
  %v2530 = vand.u32 %v2236, 4294901760
  %v2531 = vsub.f32 %v2236, %v2530
  %v2532 = vand.u32 %v2531, 4294901760
  %v2533 = vsub.f32 %v2531, %v2532
  %v2534 = vand.u32 %v2533, 4294901760
  %2535 = vmatpush.msra.mxu0 %v2534
  %v2536 = vand.u32 %v2232, 4294901760
  %v2537 = vsub.f32 %v2232, %v2536
  %v2538 = vand.u32 %v2537, 4294901760
  %v2539 = vsub.f32 %v2537, %v2538
  %v2540 = vand.u32 %v2539, 4294901760
  %2541 = vmatpush.msra.mxu0 %v2540
  %v2542 = vand.u32 %v2228, 4294901760
  %v2543 = vsub.f32 %v2228, %v2542
  %v2544 = vand.u32 %v2543, 4294901760
  %v2545 = vsub.f32 %v2543, %v2544
  %v2546 = vand.u32 %v2545, 4294901760
  %2547 = vmatpush.msra.mxu0 %v2546
  %v2548 = vand.u32 %v2224, 4294901760
  %v2549 = vsub.f32 %v2224, %v2548
  %v2550 = vand.u32 %v2549, 4294901760
  %v2551 = vsub.f32 %v2549, %v2550
  %v2552 = vand.u32 %v2551, 4294901760
  %2553 = vmatpush.msra.mxu0 %v2552
  %v2554 = vand.u32 %v2220, 4294901760
  %v2555 = vsub.f32 %v2220, %v2554
  %v2556 = vand.u32 %v2555, 4294901760
  %v2557 = vsub.f32 %v2555, %v2556
  %v2558 = vand.u32 %v2557, 4294901760
  %2559 = vmatpush.msra.mxu0 %v2558
  %v2560 = vand.u32 %v2216, 4294901760
  %v2561 = vsub.f32 %v2216, %v2560
  %v2562 = vand.u32 %v2561, 4294901760
  %v2563 = vsub.f32 %v2561, %v2562
  %v2564 = vand.u32 %v2563, 4294901760
  %2565 = vmatpush.msra.mxu0 %v2564
  %v2566 = vand.u32 %v2212, 4294901760
  %v2567 = vsub.f32 %v2212, %v2566
  %v2568 = vand.u32 %v2567, 4294901760
  %v2569 = vsub.f32 %v2567, %v2568
  %v2570 = vand.u32 %v2569, 4294901760
  %2571 = vmatpush.msra.mxu0 %v2570
  %v2572 = vand.u32 %v2208, 4294901760
  %v2573 = vsub.f32 %v2208, %v2572
  %v2574 = vand.u32 %v2573, 4294901760
  %v2575 = vsub.f32 %v2573, %v2574
  %v2576 = vand.u32 %v2575, 4294901760
  %2577 = vmatpush.msra.mxu0 %v2576
  %v2578 = vand.u32 %v2204, 4294901760
  %v2579 = vsub.f32 %v2204, %v2578
  %v2580 = vand.u32 %v2579, 4294901760
  %v2581 = vsub.f32 %v2579, %v2580
  %v2582 = vand.u32 %v2581, 4294901760
  %2583 = vmatpush.msra.mxu0 %v2582
  %v2584 = vand.u32 %v2200, 4294901760
  %v2585 = vsub.f32 %v2200, %v2584
  %v2586 = vand.u32 %v2585, 4294901760
  %v2587 = vsub.f32 %v2585, %v2586
  %v2588 = vand.u32 %v2587, 4294901760
  %2589 = vmatpush.msra.mxu0 %v2588
  %v2590 = vand.u32 %v2196, 4294901760
  %v2591 = vsub.f32 %v2196, %v2590
  %v2592 = vand.u32 %v2591, 4294901760
  %v2593 = vsub.f32 %v2591, %v2592
  %v2594 = vand.u32 %v2593, 4294901760
  %2595 = vmatpush.msra.mxu0 %v2594
  %v2596 = vand.u32 %v2192, 4294901760
  %v2597 = vsub.f32 %v2192, %v2596
  %v2598 = vand.u32 %v2597, 4294901760
  %v2599 = vsub.f32 %v2597, %v2598
  %v2600 = vand.u32 %v2599, 4294901760
  %2601 = vmatpush.msra.mxu0 %v2600
  %v2602 = vand.u32 %v2188, 4294901760
  %v2603 = vsub.f32 %v2188, %v2602
  %v2604 = vand.u32 %v2603, 4294901760
  %v2605 = vsub.f32 %v2603, %v2604
  %v2606 = vand.u32 %v2605, 4294901760
  %2607 = vmatpush.msra.mxu0 %v2606
  %v2608 = vand.u32 %v2184, 4294901760
  %v2609 = vsub.f32 %v2184, %v2608
  %v2610 = vand.u32 %v2609, 4294901760
  %v2611 = vsub.f32 %v2609, %v2610
  %v2612 = vand.u32 %v2611, 4294901760
  %2613 = vmatpush.msra.mxu0 %v2612
  %v2614 = vand.u32 %v2180, 4294901760
  %v2615 = vsub.f32 %v2180, %v2614
  %v2616 = vand.u32 %v2615, 4294901760
  %v2617 = vsub.f32 %v2615, %v2616
  %v2618 = vand.u32 %v2617, 4294901760
  %2619 = vmatpush.msra.mxu0 %v2618
  %v2620 = vand.u32 %v2176, 4294901760
  %v2621 = vsub.f32 %v2176, %v2620
  %v2622 = vand.u32 %v2621, 4294901760
  %v2623 = vsub.f32 %v2621, %v2622
  %v2624 = vand.u32 %v2623, 4294901760
  %2625 = vmatpush.msra.mxu0 %v2624
  %2626 = vmatmul.f32.gmra.mxu0 1.0
  %v2627 = vpop.f32.mrf.mxu0
  %v2628 = vadd.f32 %v2528, %v2627
  %2629 = vdwg.mxu0
  %v2630 = vand.u32 %v2236, 4294901760
  %v2631 = vsub.f32 %v2236, %v2630
  %2632 = vmatpush.msra.mxu0 %v2631
  %v2633 = vand.u32 %v2232, 4294901760
  %v2634 = vsub.f32 %v2232, %v2633
  %2635 = vmatpush.msra.mxu0 %v2634
  %v2636 = vand.u32 %v2228, 4294901760
  %v2637 = vsub.f32 %v2228, %v2636
  %2638 = vmatpush.msra.mxu0 %v2637
  %v2639 = vand.u32 %v2224, 4294901760
  %v2640 = vsub.f32 %v2224, %v2639
  %2641 = vmatpush.msra.mxu0 %v2640
  %v2642 = vand.u32 %v2220, 4294901760
  %v2643 = vsub.f32 %v2220, %v2642
  %2644 = vmatpush.msra.mxu0 %v2643
  %v2645 = vand.u32 %v2216, 4294901760
  %v2646 = vsub.f32 %v2216, %v2645
  %2647 = vmatpush.msra.mxu0 %v2646
  %v2648 = vand.u32 %v2212, 4294901760
  %v2649 = vsub.f32 %v2212, %v2648
  %2650 = vmatpush.msra.mxu0 %v2649
  %v2651 = vand.u32 %v2208, 4294901760
  %v2652 = vsub.f32 %v2208, %v2651
  %2653 = vmatpush.msra.mxu0 %v2652
  %v2654 = vand.u32 %v2204, 4294901760
  %v2655 = vsub.f32 %v2204, %v2654
  %2656 = vmatpush.msra.mxu0 %v2655
  %v2657 = vand.u32 %v2200, 4294901760
  %v2658 = vsub.f32 %v2200, %v2657
  %2659 = vmatpush.msra.mxu0 %v2658
  %v2660 = vand.u32 %v2196, 4294901760
  %v2661 = vsub.f32 %v2196, %v2660
  %2662 = vmatpush.msra.mxu0 %v2661
  %v2663 = vand.u32 %v2192, 4294901760
  %v2664 = vsub.f32 %v2192, %v2663
  %2665 = vmatpush.msra.mxu0 %v2664
  %v2666 = vand.u32 %v2188, 4294901760
  %v2667 = vsub.f32 %v2188, %v2666
  %2668 = vmatpush.msra.mxu0 %v2667
  %v2669 = vand.u32 %v2184, 4294901760
  %v2670 = vsub.f32 %v2184, %v2669
  %2671 = vmatpush.msra.mxu0 %v2670
  %v2672 = vand.u32 %v2180, 4294901760
  %v2673 = vsub.f32 %v2180, %v2672
  %2674 = vmatpush.msra.mxu0 %v2673
  %v2675 = vand.u32 %v2176, 4294901760
  %v2676 = vsub.f32 %v2176, %v2675
  %2677 = vmatpush.msra.mxu0 %v2676
  %2678 = vmatmul.f32.gmra.mxu0 0.0
  %v2679 = vpop.f32.mrf.mxu0
  %v2680 = vadd.f32 %v2628, %v2679
  %2681 = vdwg.mxu0
  %v2682 = vand.u32 %v2236, 4294901760
  %2683 = vmatpush.msra.mxu0 %v2682
  %v2684 = vand.u32 %v2232, 4294901760
  %2685 = vmatpush.msra.mxu0 %v2684
  %v2686 = vand.u32 %v2228, 4294901760
  %2687 = vmatpush.msra.mxu0 %v2686
  %v2688 = vand.u32 %v2224, 4294901760
  %2689 = vmatpush.msra.mxu0 %v2688
  %v2690 = vand.u32 %v2220, 4294901760
  %2691 = vmatpush.msra.mxu0 %v2690
  %v2692 = vand.u32 %v2216, 4294901760
  %2693 = vmatpush.msra.mxu0 %v2692
  %v2694 = vand.u32 %v2212, 4294901760
  %2695 = vmatpush.msra.mxu0 %v2694
  %v2696 = vand.u32 %v2208, 4294901760
  %2697 = vmatpush.msra.mxu0 %v2696
  %v2698 = vand.u32 %v2204, 4294901760
  %2699 = vmatpush.msra.mxu0 %v2698
  %v2700 = vand.u32 %v2200, 4294901760
  %2701 = vmatpush.msra.mxu0 %v2700
  %v2702 = vand.u32 %v2196, 4294901760
  %2703 = vmatpush.msra.mxu0 %v2702
  %v2704 = vand.u32 %v2192, 4294901760
  %2705 = vmatpush.msra.mxu0 %v2704
  %v2706 = vand.u32 %v2188, 4294901760
  %2707 = vmatpush.msra.mxu0 %v2706
  %v2708 = vand.u32 %v2184, 4294901760
  %2709 = vmatpush.msra.mxu0 %v2708
  %v2710 = vand.u32 %v2180, 4294901760
  %2711 = vmatpush.msra.mxu0 %v2710
  %v2712 = vand.u32 %v2176, 4294901760
  %2713 = vmatpush.msra.mxu0 %v2712
  %2714 = vmatmul.f32.gmra.mxu0 0.0
  %v2715 = vpop.f32.mrf.mxu0
  %v2716 = vadd.f32 %v2680, %v2715
  %2717 = vdwg.mxu0
  %v2718 = vand.u32 %v2236, 4294901760
  %v2719 = vsub.f32 %v2236, %v2718
  %v2720 = vand.u32 %v2719, 4294901760
  %2721 = vmatpush.msra.mxu0 %v2720
  %v2722 = vand.u32 %v2232, 4294901760
  %v2723 = vsub.f32 %v2232, %v2722
  %v2724 = vand.u32 %v2723, 4294901760
  %2725 = vmatpush.msra.mxu0 %v2724
  %v2726 = vand.u32 %v2228, 4294901760
  %v2727 = vsub.f32 %v2228, %v2726
  %v2728 = vand.u32 %v2727, 4294901760
  %2729 = vmatpush.msra.mxu0 %v2728
  %v2730 = vand.u32 %v2224, 4294901760
  %v2731 = vsub.f32 %v2224, %v2730
  %v2732 = vand.u32 %v2731, 4294901760
  %2733 = vmatpush.msra.mxu0 %v2732
  %v2734 = vand.u32 %v2220, 4294901760
  %v2735 = vsub.f32 %v2220, %v2734
  %v2736 = vand.u32 %v2735, 4294901760
  %2737 = vmatpush.msra.mxu0 %v2736
  %v2738 = vand.u32 %v2216, 4294901760
  %v2739 = vsub.f32 %v2216, %v2738
  %v2740 = vand.u32 %v2739, 4294901760
  %2741 = vmatpush.msra.mxu0 %v2740
  %v2742 = vand.u32 %v2212, 4294901760
  %v2743 = vsub.f32 %v2212, %v2742
  %v2744 = vand.u32 %v2743, 4294901760
  %2745 = vmatpush.msra.mxu0 %v2744
  %v2746 = vand.u32 %v2208, 4294901760
  %v2747 = vsub.f32 %v2208, %v2746
  %v2748 = vand.u32 %v2747, 4294901760
  %2749 = vmatpush.msra.mxu0 %v2748
  %v2750 = vand.u32 %v2204, 4294901760
  %v2751 = vsub.f32 %v2204, %v2750
  %v2752 = vand.u32 %v2751, 4294901760
  %2753 = vmatpush.msra.mxu0 %v2752
  %v2754 = vand.u32 %v2200, 4294901760
  %v2755 = vsub.f32 %v2200, %v2754
  %v2756 = vand.u32 %v2755, 4294901760
  %2757 = vmatpush.msra.mxu0 %v2756
  %v2758 = vand.u32 %v2196, 4294901760
  %v2759 = vsub.f32 %v2196, %v2758
  %v2760 = vand.u32 %v2759, 4294901760
  %2761 = vmatpush.msra.mxu0 %v2760
  %v2762 = vand.u32 %v2192, 4294901760
  %v2763 = vsub.f32 %v2192, %v2762
  %v2764 = vand.u32 %v2763, 4294901760
  %2765 = vmatpush.msra.mxu0 %v2764
  %v2766 = vand.u32 %v2188, 4294901760
  %v2767 = vsub.f32 %v2188, %v2766
  %v2768 = vand.u32 %v2767, 4294901760
  %2769 = vmatpush.msra.mxu0 %v2768
  %v2770 = vand.u32 %v2184, 4294901760
  %v2771 = vsub.f32 %v2184, %v2770
  %v2772 = vand.u32 %v2771, 4294901760
  %2773 = vmatpush.msra.mxu0 %v2772
  %v2774 = vand.u32 %v2180, 4294901760
  %v2775 = vsub.f32 %v2180, %v2774
  %v2776 = vand.u32 %v2775, 4294901760
  %2777 = vmatpush.msra.mxu0 %v2776
  %v2778 = vand.u32 %v2176, 4294901760
  %v2779 = vsub.f32 %v2176, %v2778
  %v2780 = vand.u32 %v2779, 4294901760
  %2781 = vmatpush.msra.mxu0 %v2780
  %2782 = vmatmul.f32.gmra.mxu0 1.0
  %v2783 = vpop.f32.mrf.mxu0
  %v2784 = vadd.f32 %v2716, %v2783
  %2785 = vdwg.mxu0
  %v2786 = vand.u32 %v2236, 4294901760
  %2787 = vmatpush.msra.mxu0 %v2786
  %v2788 = vand.u32 %v2232, 4294901760
  %2789 = vmatpush.msra.mxu0 %v2788
  %v2790 = vand.u32 %v2228, 4294901760
  %2791 = vmatpush.msra.mxu0 %v2790
  %v2792 = vand.u32 %v2224, 4294901760
  %2793 = vmatpush.msra.mxu0 %v2792
  %v2794 = vand.u32 %v2220, 4294901760
  %2795 = vmatpush.msra.mxu0 %v2794
  %v2796 = vand.u32 %v2216, 4294901760
  %2797 = vmatpush.msra.mxu0 %v2796
  %v2798 = vand.u32 %v2212, 4294901760
  %2799 = vmatpush.msra.mxu0 %v2798
  %v2800 = vand.u32 %v2208, 4294901760
  %2801 = vmatpush.msra.mxu0 %v2800
  %v2802 = vand.u32 %v2204, 4294901760
  %2803 = vmatpush.msra.mxu0 %v2802
  %v2804 = vand.u32 %v2200, 4294901760
  %2805 = vmatpush.msra.mxu0 %v2804
  %v2806 = vand.u32 %v2196, 4294901760
  %2807 = vmatpush.msra.mxu0 %v2806
  %v2808 = vand.u32 %v2192, 4294901760
  %2809 = vmatpush.msra.mxu0 %v2808
  %v2810 = vand.u32 %v2188, 4294901760
  %2811 = vmatpush.msra.mxu0 %v2810
  %v2812 = vand.u32 %v2184, 4294901760
  %2813 = vmatpush.msra.mxu0 %v2812
  %v2814 = vand.u32 %v2180, 4294901760
  %2815 = vmatpush.msra.mxu0 %v2814
  %v2816 = vand.u32 %v2176, 4294901760
  %2817 = vmatpush.msra.mxu0 %v2816
  %2818 = vmatmul.f32.gmra.mxu0 1.0
  %v2819 = vpop.f32.mrf.mxu0
  %v2820 = vadd.f32 %v2784, %v2819
  %2821 = vdwg.mxu0
  %v2822 = vand.u32 %v2300, 4294901760
  %2823 = vmatpush.msra.mxu0 %v2822
  %v2824 = vand.u32 %v2296, 4294901760
  %2825 = vmatpush.msra.mxu0 %v2824
  %v2826 = vand.u32 %v2292, 4294901760
  %2827 = vmatpush.msra.mxu0 %v2826
  %v2828 = vand.u32 %v2288, 4294901760
  %2829 = vmatpush.msra.mxu0 %v2828
  %v2830 = vand.u32 %v2284, 4294901760
  %2831 = vmatpush.msra.mxu0 %v2830
  %v2832 = vand.u32 %v2280, 4294901760
  %2833 = vmatpush.msra.mxu0 %v2832
  %v2834 = vand.u32 %v2276, 4294901760
  %2835 = vmatpush.msra.mxu0 %v2834
  %v2836 = vand.u32 %v2272, 4294901760
  %2837 = vmatpush.msra.mxu0 %v2836
  %v2838 = vand.u32 %v2268, 4294901760
  %2839 = vmatpush.msra.mxu0 %v2838
  %v2840 = vand.u32 %v2264, 4294901760
  %2841 = vmatpush.msra.mxu0 %v2840
  %v2842 = vand.u32 %v2260, 4294901760
  %2843 = vmatpush.msra.mxu0 %v2842
  %v2844 = vand.u32 %v2256, 4294901760
  %2845 = vmatpush.msra.mxu0 %v2844
  %v2846 = vand.u32 %v2252, 4294901760
  %2847 = vmatpush.msra.mxu0 %v2846
  %v2848 = vand.u32 %v2248, 4294901760
  %2849 = vmatpush.msra.mxu0 %v2848
  %v2850 = vand.u32 %v2244, 4294901760
  %2851 = vmatpush.msra.mxu0 %v2850
  %v2852 = vand.u32 %v2240, 4294901760
  %2853 = vmatpush.msra.mxu0 %v2852
  %2854 = vmatmul.f32.gmra.mxu0 0.0
  %v2855 = vpop.f32.mrf.mxu0
  %v2856 = vadd.f32 %v2820, %v2855
  %2857 = vdwg.mxu0
  %v2858 = vand.u32 %v2300, 4294901760
  %v2859 = vsub.f32 %v2300, %v2858
  %v2860 = vand.u32 %v2859, 4294901760
  %v2861 = vsub.f32 %v2859, %v2860
  %v2862 = vand.u32 %v2861, 4294901760
  %2863 = vmatpush.msra.mxu0 %v2862
  %v2864 = vand.u32 %v2296, 4294901760
  %v2865 = vsub.f32 %v2296, %v2864
  %v2866 = vand.u32 %v2865, 4294901760
  %v2867 = vsub.f32 %v2865, %v2866
  %v2868 = vand.u32 %v2867, 4294901760
  %2869 = vmatpush.msra.mxu0 %v2868
  %v2870 = vand.u32 %v2292, 4294901760
  %v2871 = vsub.f32 %v2292, %v2870
  %v2872 = vand.u32 %v2871, 4294901760
  %v2873 = vsub.f32 %v2871, %v2872
  %v2874 = vand.u32 %v2873, 4294901760
  %2875 = vmatpush.msra.mxu0 %v2874
  %v2876 = vand.u32 %v2288, 4294901760
  %v2877 = vsub.f32 %v2288, %v2876
  %v2878 = vand.u32 %v2877, 4294901760
  %v2879 = vsub.f32 %v2877, %v2878
  %v2880 = vand.u32 %v2879, 4294901760
  %2881 = vmatpush.msra.mxu0 %v2880
  %v2882 = vand.u32 %v2284, 4294901760
  %v2883 = vsub.f32 %v2284, %v2882
  %v2884 = vand.u32 %v2883, 4294901760
  %v2885 = vsub.f32 %v2883, %v2884
  %v2886 = vand.u32 %v2885, 4294901760
  %2887 = vmatpush.msra.mxu0 %v2886
  %v2888 = vand.u32 %v2280, 4294901760
  %v2889 = vsub.f32 %v2280, %v2888
  %v2890 = vand.u32 %v2889, 4294901760
  %v2891 = vsub.f32 %v2889, %v2890
  %v2892 = vand.u32 %v2891, 4294901760
  %2893 = vmatpush.msra.mxu0 %v2892
  %v2894 = vand.u32 %v2276, 4294901760
  %v2895 = vsub.f32 %v2276, %v2894
  %v2896 = vand.u32 %v2895, 4294901760
  %v2897 = vsub.f32 %v2895, %v2896
  %v2898 = vand.u32 %v2897, 4294901760
  %2899 = vmatpush.msra.mxu0 %v2898
  %v2900 = vand.u32 %v2272, 4294901760
  %v2901 = vsub.f32 %v2272, %v2900
  %v2902 = vand.u32 %v2901, 4294901760
  %v2903 = vsub.f32 %v2901, %v2902
  %v2904 = vand.u32 %v2903, 4294901760
  %2905 = vmatpush.msra.mxu0 %v2904
  %v2906 = vand.u32 %v2268, 4294901760
  %v2907 = vsub.f32 %v2268, %v2906
  %v2908 = vand.u32 %v2907, 4294901760
  %v2909 = vsub.f32 %v2907, %v2908
  %v2910 = vand.u32 %v2909, 4294901760
  %2911 = vmatpush.msra.mxu0 %v2910
  %v2912 = vand.u32 %v2264, 4294901760
  %v2913 = vsub.f32 %v2264, %v2912
  %v2914 = vand.u32 %v2913, 4294901760
  %v2915 = vsub.f32 %v2913, %v2914
  %v2916 = vand.u32 %v2915, 4294901760
  %2917 = vmatpush.msra.mxu0 %v2916
  %v2918 = vand.u32 %v2260, 4294901760
  %v2919 = vsub.f32 %v2260, %v2918
  %v2920 = vand.u32 %v2919, 4294901760
  %v2921 = vsub.f32 %v2919, %v2920
  %v2922 = vand.u32 %v2921, 4294901760
  %2923 = vmatpush.msra.mxu0 %v2922
  %v2924 = vand.u32 %v2256, 4294901760
  %v2925 = vsub.f32 %v2256, %v2924
  %v2926 = vand.u32 %v2925, 4294901760
  %v2927 = vsub.f32 %v2925, %v2926
  %v2928 = vand.u32 %v2927, 4294901760
  %2929 = vmatpush.msra.mxu0 %v2928
  %v2930 = vand.u32 %v2252, 4294901760
  %v2931 = vsub.f32 %v2252, %v2930
  %v2932 = vand.u32 %v2931, 4294901760
  %v2933 = vsub.f32 %v2931, %v2932
  %v2934 = vand.u32 %v2933, 4294901760
  %2935 = vmatpush.msra.mxu0 %v2934
  %v2936 = vand.u32 %v2248, 4294901760
  %v2937 = vsub.f32 %v2248, %v2936
  %v2938 = vand.u32 %v2937, 4294901760
  %v2939 = vsub.f32 %v2937, %v2938
  %v2940 = vand.u32 %v2939, 4294901760
  %2941 = vmatpush.msra.mxu0 %v2940
  %v2942 = vand.u32 %v2244, 4294901760
  %v2943 = vsub.f32 %v2244, %v2942
  %v2944 = vand.u32 %v2943, 4294901760
  %v2945 = vsub.f32 %v2943, %v2944
  %v2946 = vand.u32 %v2945, 4294901760
  %2947 = vmatpush.msra.mxu0 %v2946
  %v2948 = vand.u32 %v2240, 4294901760
  %v2949 = vsub.f32 %v2240, %v2948
  %v2950 = vand.u32 %v2949, 4294901760
  %v2951 = vsub.f32 %v2949, %v2950
  %v2952 = vand.u32 %v2951, 4294901760
  %2953 = vmatpush.msra.mxu0 %v2952
  %2954 = vmatmul.f32.gmra.mxu0 1.0
  %v2955 = vpop.f32.mrf.mxu0
  %v2956 = vadd.f32 %v2856, %v2955
  %2957 = vdwg.mxu0
  %v2958 = vand.u32 %v2300, 4294901760
  %v2959 = vsub.f32 %v2300, %v2958
  %2960 = vmatpush.msra.mxu0 %v2959
  %v2961 = vand.u32 %v2296, 4294901760
  %v2962 = vsub.f32 %v2296, %v2961
  %2963 = vmatpush.msra.mxu0 %v2962
  %v2964 = vand.u32 %v2292, 4294901760
  %v2965 = vsub.f32 %v2292, %v2964
  %2966 = vmatpush.msra.mxu0 %v2965
  %v2967 = vand.u32 %v2288, 4294901760
  %v2968 = vsub.f32 %v2288, %v2967
  %2969 = vmatpush.msra.mxu0 %v2968
  %v2970 = vand.u32 %v2284, 4294901760
  %v2971 = vsub.f32 %v2284, %v2970
  %2972 = vmatpush.msra.mxu0 %v2971
  %v2973 = vand.u32 %v2280, 4294901760
  %v2974 = vsub.f32 %v2280, %v2973
  %2975 = vmatpush.msra.mxu0 %v2974
  %v2976 = vand.u32 %v2276, 4294901760
  %v2977 = vsub.f32 %v2276, %v2976
  %2978 = vmatpush.msra.mxu0 %v2977
  %v2979 = vand.u32 %v2272, 4294901760
  %v2980 = vsub.f32 %v2272, %v2979
  %2981 = vmatpush.msra.mxu0 %v2980
  %v2982 = vand.u32 %v2268, 4294901760
  %v2983 = vsub.f32 %v2268, %v2982
  %2984 = vmatpush.msra.mxu0 %v2983
  %v2985 = vand.u32 %v2264, 4294901760
  %v2986 = vsub.f32 %v2264, %v2985
  %2987 = vmatpush.msra.mxu0 %v2986
  %v2988 = vand.u32 %v2260, 4294901760
  %v2989 = vsub.f32 %v2260, %v2988
  %2990 = vmatpush.msra.mxu0 %v2989
  %v2991 = vand.u32 %v2256, 4294901760
  %v2992 = vsub.f32 %v2256, %v2991
  %2993 = vmatpush.msra.mxu0 %v2992
  %v2994 = vand.u32 %v2252, 4294901760
  %v2995 = vsub.f32 %v2252, %v2994
  %2996 = vmatpush.msra.mxu0 %v2995
  %v2997 = vand.u32 %v2248, 4294901760
  %v2998 = vsub.f32 %v2248, %v2997
  %2999 = vmatpush.msra.mxu0 %v2998
  %v3000 = vand.u32 %v2244, 4294901760
  %v3001 = vsub.f32 %v2244, %v3000
  %3002 = vmatpush.msra.mxu0 %v3001
  %v3003 = vand.u32 %v2240, 4294901760
  %v3004 = vsub.f32 %v2240, %v3003
  %3005 = vmatpush.msra.mxu0 %v3004
  %3006 = vmatmul.f32.gmra.mxu0 0.0
  %v3007 = vpop.f32.mrf.mxu0
  %v3008 = vadd.f32 %v2956, %v3007
  %3009 = vdwg.mxu0
  %v3010 = vand.u32 %v2300, 4294901760
  %3011 = vmatpush.msra.mxu0 %v3010
  %v3012 = vand.u32 %v2296, 4294901760
  %3013 = vmatpush.msra.mxu0 %v3012
  %v3014 = vand.u32 %v2292, 4294901760
  %3015 = vmatpush.msra.mxu0 %v3014
  %v3016 = vand.u32 %v2288, 4294901760
  %3017 = vmatpush.msra.mxu0 %v3016
  %v3018 = vand.u32 %v2284, 4294901760
  %3019 = vmatpush.msra.mxu0 %v3018
  %v3020 = vand.u32 %v2280, 4294901760
  %3021 = vmatpush.msra.mxu0 %v3020
  %v3022 = vand.u32 %v2276, 4294901760
  %3023 = vmatpush.msra.mxu0 %v3022
  %v3024 = vand.u32 %v2272, 4294901760
  %3025 = vmatpush.msra.mxu0 %v3024
  %v3026 = vand.u32 %v2268, 4294901760
  %3027 = vmatpush.msra.mxu0 %v3026
  %v3028 = vand.u32 %v2264, 4294901760
  %3029 = vmatpush.msra.mxu0 %v3028
  %v3030 = vand.u32 %v2260, 4294901760
  %3031 = vmatpush.msra.mxu0 %v3030
  %v3032 = vand.u32 %v2256, 4294901760
  %3033 = vmatpush.msra.mxu0 %v3032
  %v3034 = vand.u32 %v2252, 4294901760
  %3035 = vmatpush.msra.mxu0 %v3034
  %v3036 = vand.u32 %v2248, 4294901760
  %3037 = vmatpush.msra.mxu0 %v3036
  %v3038 = vand.u32 %v2244, 4294901760
  %3039 = vmatpush.msra.mxu0 %v3038
  %v3040 = vand.u32 %v2240, 4294901760
  %3041 = vmatpush.msra.mxu0 %v3040
  %3042 = vmatmul.f32.gmra.mxu0 0.0
  %v3043 = vpop.f32.mrf.mxu0
  %v3044 = vadd.f32 %v3008, %v3043
  %3045 = vdwg.mxu0
  %v3046 = vand.u32 %v2300, 4294901760
  %v3047 = vsub.f32 %v2300, %v3046
  %v3048 = vand.u32 %v3047, 4294901760
  %3049 = vmatpush.msra.mxu0 %v3048
  %v3050 = vand.u32 %v2296, 4294901760
  %v3051 = vsub.f32 %v2296, %v3050
  %v3052 = vand.u32 %v3051, 4294901760
  %3053 = vmatpush.msra.mxu0 %v3052
  %v3054 = vand.u32 %v2292, 4294901760
  %v3055 = vsub.f32 %v2292, %v3054
  %v3056 = vand.u32 %v3055, 4294901760
  %3057 = vmatpush.msra.mxu0 %v3056
  %v3058 = vand.u32 %v2288, 4294901760
  %v3059 = vsub.f32 %v2288, %v3058
  %v3060 = vand.u32 %v3059, 4294901760
  %3061 = vmatpush.msra.mxu0 %v3060
  %v3062 = vand.u32 %v2284, 4294901760
  %v3063 = vsub.f32 %v2284, %v3062
  %v3064 = vand.u32 %v3063, 4294901760
  %3065 = vmatpush.msra.mxu0 %v3064
  %v3066 = vand.u32 %v2280, 4294901760
  %v3067 = vsub.f32 %v2280, %v3066
  %v3068 = vand.u32 %v3067, 4294901760
  %3069 = vmatpush.msra.mxu0 %v3068
  %v3070 = vand.u32 %v2276, 4294901760
  %v3071 = vsub.f32 %v2276, %v3070
  %v3072 = vand.u32 %v3071, 4294901760
  %3073 = vmatpush.msra.mxu0 %v3072
  %v3074 = vand.u32 %v2272, 4294901760
  %v3075 = vsub.f32 %v2272, %v3074
  %v3076 = vand.u32 %v3075, 4294901760
  %3077 = vmatpush.msra.mxu0 %v3076
  %v3078 = vand.u32 %v2268, 4294901760
  %v3079 = vsub.f32 %v2268, %v3078
  %v3080 = vand.u32 %v3079, 4294901760
  %3081 = vmatpush.msra.mxu0 %v3080
  %v3082 = vand.u32 %v2264, 4294901760
  %v3083 = vsub.f32 %v2264, %v3082
  %v3084 = vand.u32 %v3083, 4294901760
  %3085 = vmatpush.msra.mxu0 %v3084
  %v3086 = vand.u32 %v2260, 4294901760
  %v3087 = vsub.f32 %v2260, %v3086
  %v3088 = vand.u32 %v3087, 4294901760
  %3089 = vmatpush.msra.mxu0 %v3088
  %v3090 = vand.u32 %v2256, 4294901760
  %v3091 = vsub.f32 %v2256, %v3090
  %v3092 = vand.u32 %v3091, 4294901760
  %3093 = vmatpush.msra.mxu0 %v3092
  %v3094 = vand.u32 %v2252, 4294901760
  %v3095 = vsub.f32 %v2252, %v3094
  %v3096 = vand.u32 %v3095, 4294901760
  %3097 = vmatpush.msra.mxu0 %v3096
  %v3098 = vand.u32 %v2248, 4294901760
  %v3099 = vsub.f32 %v2248, %v3098
  %v3100 = vand.u32 %v3099, 4294901760
  %3101 = vmatpush.msra.mxu0 %v3100
  %v3102 = vand.u32 %v2244, 4294901760
  %v3103 = vsub.f32 %v2244, %v3102
  %v3104 = vand.u32 %v3103, 4294901760
  %3105 = vmatpush.msra.mxu0 %v3104
  %v3106 = vand.u32 %v2240, 4294901760
  %v3107 = vsub.f32 %v2240, %v3106
  %v3108 = vand.u32 %v3107, 4294901760
  %3109 = vmatpush.msra.mxu0 %v3108
  %3110 = vmatmul.f32.gmra.mxu0 1.0
  %v3111 = vpop.f32.mrf.mxu0
  %v3112 = vadd.f32 %v3044, %v3111
  %3113 = vdwg.mxu0
  %v3114 = vand.u32 %v2300, 4294901760
  %3115 = vmatpush.msra.mxu0 %v3114
  %v3116 = vand.u32 %v2296, 4294901760
  %3117 = vmatpush.msra.mxu0 %v3116
  %v3118 = vand.u32 %v2292, 4294901760
  %3119 = vmatpush.msra.mxu0 %v3118
  %v3120 = vand.u32 %v2288, 4294901760
  %3121 = vmatpush.msra.mxu0 %v3120
  %v3122 = vand.u32 %v2284, 4294901760
  %3123 = vmatpush.msra.mxu0 %v3122
  %v3124 = vand.u32 %v2280, 4294901760
  %3125 = vmatpush.msra.mxu0 %v3124
  %v3126 = vand.u32 %v2276, 4294901760
  %3127 = vmatpush.msra.mxu0 %v3126
  %v3128 = vand.u32 %v2272, 4294901760
  %3129 = vmatpush.msra.mxu0 %v3128
  %v3130 = vand.u32 %v2268, 4294901760
  %3131 = vmatpush.msra.mxu0 %v3130
  %v3132 = vand.u32 %v2264, 4294901760
  %3133 = vmatpush.msra.mxu0 %v3132
  %v3134 = vand.u32 %v2260, 4294901760
  %3135 = vmatpush.msra.mxu0 %v3134
  %v3136 = vand.u32 %v2256, 4294901760
  %3137 = vmatpush.msra.mxu0 %v3136
  %v3138 = vand.u32 %v2252, 4294901760
  %3139 = vmatpush.msra.mxu0 %v3138
  %v3140 = vand.u32 %v2248, 4294901760
  %3141 = vmatpush.msra.mxu0 %v3140
  %v3142 = vand.u32 %v2244, 4294901760
  %3143 = vmatpush.msra.mxu0 %v3142
  %v3144 = vand.u32 %v2240, 4294901760
  %3145 = vmatpush.msra.mxu0 %v3144
  %3146 = vmatmul.f32.gmra.mxu0 1.0
  %v3147 = vpop.f32.mrf.mxu0
  %v3148 = vadd.f32 %v3112, %v3147
  %3149 = vdwg.mxu0
  %v3150 = vand.u32 %v2364, 4294901760
  %3151 = vmatpush.msra.mxu0 %v3150
  %v3152 = vand.u32 %v2360, 4294901760
  %3153 = vmatpush.msra.mxu0 %v3152
  %v3154 = vand.u32 %v2356, 4294901760
  %3155 = vmatpush.msra.mxu0 %v3154
  %v3156 = vand.u32 %v2352, 4294901760
  %3157 = vmatpush.msra.mxu0 %v3156
  %v3158 = vand.u32 %v2348, 4294901760
  %3159 = vmatpush.msra.mxu0 %v3158
  %v3160 = vand.u32 %v2344, 4294901760
  %3161 = vmatpush.msra.mxu0 %v3160
  %v3162 = vand.u32 %v2340, 4294901760
  %3163 = vmatpush.msra.mxu0 %v3162
  %v3164 = vand.u32 %v2336, 4294901760
  %3165 = vmatpush.msra.mxu0 %v3164
  %v3166 = vand.u32 %v2332, 4294901760
  %3167 = vmatpush.msra.mxu0 %v3166
  %v3168 = vand.u32 %v2328, 4294901760
  %3169 = vmatpush.msra.mxu0 %v3168
  %v3170 = vand.u32 %v2324, 4294901760
  %3171 = vmatpush.msra.mxu0 %v3170
  %v3172 = vand.u32 %v2320, 4294901760
  %3173 = vmatpush.msra.mxu0 %v3172
  %v3174 = vand.u32 %v2316, 4294901760
  %3175 = vmatpush.msra.mxu0 %v3174
  %v3176 = vand.u32 %v2312, 4294901760
  %3177 = vmatpush.msra.mxu0 %v3176
  %v3178 = vand.u32 %v2308, 4294901760
  %3179 = vmatpush.msra.mxu0 %v3178
  %v3180 = vand.u32 %v2304, 4294901760
  %3181 = vmatpush.msra.mxu0 %v3180
  %3182 = vmatmul.f32.gmra.mxu0 0.0
  %v3183 = vpop.f32.mrf.mxu0
  %v3184 = vadd.f32 %v3148, %v3183
  %3185 = vdwg.mxu0
  %v3186 = vand.u32 %v2364, 4294901760
  %v3187 = vsub.f32 %v2364, %v3186
  %v3188 = vand.u32 %v3187, 4294901760
  %v3189 = vsub.f32 %v3187, %v3188
  %v3190 = vand.u32 %v3189, 4294901760
  %3191 = vmatpush.msra.mxu0 %v3190
  %v3192 = vand.u32 %v2360, 4294901760
  %v3193 = vsub.f32 %v2360, %v3192
  %v3194 = vand.u32 %v3193, 4294901760
  %v3195 = vsub.f32 %v3193, %v3194
  %v3196 = vand.u32 %v3195, 4294901760
  %3197 = vmatpush.msra.mxu0 %v3196
  %v3198 = vand.u32 %v2356, 4294901760
  %v3199 = vsub.f32 %v2356, %v3198
  %v3200 = vand.u32 %v3199, 4294901760
  %v3201 = vsub.f32 %v3199, %v3200
  %v3202 = vand.u32 %v3201, 4294901760
  %3203 = vmatpush.msra.mxu0 %v3202
  %v3204 = vand.u32 %v2352, 4294901760
  %v3205 = vsub.f32 %v2352, %v3204
  %v3206 = vand.u32 %v3205, 4294901760
  %v3207 = vsub.f32 %v3205, %v3206
  %v3208 = vand.u32 %v3207, 4294901760
  %3209 = vmatpush.msra.mxu0 %v3208
  %v3210 = vand.u32 %v2348, 4294901760
  %v3211 = vsub.f32 %v2348, %v3210
  %v3212 = vand.u32 %v3211, 4294901760
  %v3213 = vsub.f32 %v3211, %v3212
  %v3214 = vand.u32 %v3213, 4294901760
  %3215 = vmatpush.msra.mxu0 %v3214
  %v3216 = vand.u32 %v2344, 4294901760
  %v3217 = vsub.f32 %v2344, %v3216
  %v3218 = vand.u32 %v3217, 4294901760
  %v3219 = vsub.f32 %v3217, %v3218
  %v3220 = vand.u32 %v3219, 4294901760
  %3221 = vmatpush.msra.mxu0 %v3220
  %v3222 = vand.u32 %v2340, 4294901760
  %v3223 = vsub.f32 %v2340, %v3222
  %v3224 = vand.u32 %v3223, 4294901760
  %v3225 = vsub.f32 %v3223, %v3224
  %v3226 = vand.u32 %v3225, 4294901760
  %3227 = vmatpush.msra.mxu0 %v3226
  %v3228 = vand.u32 %v2336, 4294901760
  %v3229 = vsub.f32 %v2336, %v3228
  %v3230 = vand.u32 %v3229, 4294901760
  %v3231 = vsub.f32 %v3229, %v3230
  %v3232 = vand.u32 %v3231, 4294901760
  %3233 = vmatpush.msra.mxu0 %v3232
  %v3234 = vand.u32 %v2332, 4294901760
  %v3235 = vsub.f32 %v2332, %v3234
  %v3236 = vand.u32 %v3235, 4294901760
  %v3237 = vsub.f32 %v3235, %v3236
  %v3238 = vand.u32 %v3237, 4294901760
  %3239 = vmatpush.msra.mxu0 %v3238
  %v3240 = vand.u32 %v2328, 4294901760
  %v3241 = vsub.f32 %v2328, %v3240
  %v3242 = vand.u32 %v3241, 4294901760
  %v3243 = vsub.f32 %v3241, %v3242
  %v3244 = vand.u32 %v3243, 4294901760
  %3245 = vmatpush.msra.mxu0 %v3244
  %v3246 = vand.u32 %v2324, 4294901760
  %v3247 = vsub.f32 %v2324, %v3246
  %v3248 = vand.u32 %v3247, 4294901760
  %v3249 = vsub.f32 %v3247, %v3248
  %v3250 = vand.u32 %v3249, 4294901760
  %3251 = vmatpush.msra.mxu0 %v3250
  %v3252 = vand.u32 %v2320, 4294901760
  %v3253 = vsub.f32 %v2320, %v3252
  %v3254 = vand.u32 %v3253, 4294901760
  %v3255 = vsub.f32 %v3253, %v3254
  %v3256 = vand.u32 %v3255, 4294901760
  %3257 = vmatpush.msra.mxu0 %v3256
  %v3258 = vand.u32 %v2316, 4294901760
  %v3259 = vsub.f32 %v2316, %v3258
  %v3260 = vand.u32 %v3259, 4294901760
  %v3261 = vsub.f32 %v3259, %v3260
  %v3262 = vand.u32 %v3261, 4294901760
  %3263 = vmatpush.msra.mxu0 %v3262
  %v3264 = vand.u32 %v2312, 4294901760
  %v3265 = vsub.f32 %v2312, %v3264
  %v3266 = vand.u32 %v3265, 4294901760
  %v3267 = vsub.f32 %v3265, %v3266
  %v3268 = vand.u32 %v3267, 4294901760
  %3269 = vmatpush.msra.mxu0 %v3268
  %v3270 = vand.u32 %v2308, 4294901760
  %v3271 = vsub.f32 %v2308, %v3270
  %v3272 = vand.u32 %v3271, 4294901760
  %v3273 = vsub.f32 %v3271, %v3272
  %v3274 = vand.u32 %v3273, 4294901760
  %3275 = vmatpush.msra.mxu0 %v3274
  %v3276 = vand.u32 %v2304, 4294901760
  %v3277 = vsub.f32 %v2304, %v3276
  %v3278 = vand.u32 %v3277, 4294901760
  %v3279 = vsub.f32 %v3277, %v3278
  %v3280 = vand.u32 %v3279, 4294901760
  %3281 = vmatpush.msra.mxu0 %v3280
  %3282 = vmatmul.f32.gmra.mxu0 1.0
  %v3283 = vpop.f32.mrf.mxu0
  %v3284 = vadd.f32 %v3184, %v3283
  %3285 = vdwg.mxu0
  %v3286 = vand.u32 %v2364, 4294901760
  %v3287 = vsub.f32 %v2364, %v3286
  %3288 = vmatpush.msra.mxu0 %v3287
  %v3289 = vand.u32 %v2360, 4294901760
  %v3290 = vsub.f32 %v2360, %v3289
  %3291 = vmatpush.msra.mxu0 %v3290
  %v3292 = vand.u32 %v2356, 4294901760
  %v3293 = vsub.f32 %v2356, %v3292
  %3294 = vmatpush.msra.mxu0 %v3293
  %v3295 = vand.u32 %v2352, 4294901760
  %v3296 = vsub.f32 %v2352, %v3295
  %3297 = vmatpush.msra.mxu0 %v3296
  %v3298 = vand.u32 %v2348, 4294901760
  %v3299 = vsub.f32 %v2348, %v3298
  %3300 = vmatpush.msra.mxu0 %v3299
  %v3301 = vand.u32 %v2344, 4294901760
  %v3302 = vsub.f32 %v2344, %v3301
  %3303 = vmatpush.msra.mxu0 %v3302
  %v3304 = vand.u32 %v2340, 4294901760
  %v3305 = vsub.f32 %v2340, %v3304
  %3306 = vmatpush.msra.mxu0 %v3305
  %v3307 = vand.u32 %v2336, 4294901760
  %v3308 = vsub.f32 %v2336, %v3307
  %3309 = vmatpush.msra.mxu0 %v3308
  %v3310 = vand.u32 %v2332, 4294901760
  %v3311 = vsub.f32 %v2332, %v3310
  %3312 = vmatpush.msra.mxu0 %v3311
  %v3313 = vand.u32 %v2328, 4294901760
  %v3314 = vsub.f32 %v2328, %v3313
  %3315 = vmatpush.msra.mxu0 %v3314
  %v3316 = vand.u32 %v2324, 4294901760
  %v3317 = vsub.f32 %v2324, %v3316
  %3318 = vmatpush.msra.mxu0 %v3317
  %v3319 = vand.u32 %v2320, 4294901760
  %v3320 = vsub.f32 %v2320, %v3319
  %3321 = vmatpush.msra.mxu0 %v3320
  %v3322 = vand.u32 %v2316, 4294901760
  %v3323 = vsub.f32 %v2316, %v3322
  %3324 = vmatpush.msra.mxu0 %v3323
  %v3325 = vand.u32 %v2312, 4294901760
  %v3326 = vsub.f32 %v2312, %v3325
  %3327 = vmatpush.msra.mxu0 %v3326
  %v3328 = vand.u32 %v2308, 4294901760
  %v3329 = vsub.f32 %v2308, %v3328
  %3330 = vmatpush.msra.mxu0 %v3329
  %v3331 = vand.u32 %v2304, 4294901760
  %v3332 = vsub.f32 %v2304, %v3331
  %3333 = vmatpush.msra.mxu0 %v3332
  %3334 = vmatmul.f32.gmra.mxu0 0.0
  %v3335 = vpop.f32.mrf.mxu0
  %v3336 = vadd.f32 %v3284, %v3335
  %3337 = vdwg.mxu0
  %v3338 = vand.u32 %v2364, 4294901760
  %3339 = vmatpush.msra.mxu0 %v3338
  %v3340 = vand.u32 %v2360, 4294901760
  %3341 = vmatpush.msra.mxu0 %v3340
  %v3342 = vand.u32 %v2356, 4294901760
  %3343 = vmatpush.msra.mxu0 %v3342
  %v3344 = vand.u32 %v2352, 4294901760
  %3345 = vmatpush.msra.mxu0 %v3344
  %v3346 = vand.u32 %v2348, 4294901760
  %3347 = vmatpush.msra.mxu0 %v3346
  %v3348 = vand.u32 %v2344, 4294901760
  %3349 = vmatpush.msra.mxu0 %v3348
  %v3350 = vand.u32 %v2340, 4294901760
  %3351 = vmatpush.msra.mxu0 %v3350
  %v3352 = vand.u32 %v2336, 4294901760
  %3353 = vmatpush.msra.mxu0 %v3352
  %v3354 = vand.u32 %v2332, 4294901760
  %3355 = vmatpush.msra.mxu0 %v3354
  %v3356 = vand.u32 %v2328, 4294901760
  %3357 = vmatpush.msra.mxu0 %v3356
  %v3358 = vand.u32 %v2324, 4294901760
  %3359 = vmatpush.msra.mxu0 %v3358
  %v3360 = vand.u32 %v2320, 4294901760
  %3361 = vmatpush.msra.mxu0 %v3360
  %v3362 = vand.u32 %v2316, 4294901760
  %3363 = vmatpush.msra.mxu0 %v3362
  %v3364 = vand.u32 %v2312, 4294901760
  %3365 = vmatpush.msra.mxu0 %v3364
  %v3366 = vand.u32 %v2308, 4294901760
  %3367 = vmatpush.msra.mxu0 %v3366
  %v3368 = vand.u32 %v2304, 4294901760
  %3369 = vmatpush.msra.mxu0 %v3368
  %3370 = vmatmul.f32.gmra.mxu0 0.0
  %v3371 = vpop.f32.mrf.mxu0
  %v3372 = vadd.f32 %v3336, %v3371
  %3373 = vdwg.mxu0
  %v3374 = vand.u32 %v2364, 4294901760
  %v3375 = vsub.f32 %v2364, %v3374
  %v3376 = vand.u32 %v3375, 4294901760
  %3377 = vmatpush.msra.mxu0 %v3376
  %v3378 = vand.u32 %v2360, 4294901760
  %v3379 = vsub.f32 %v2360, %v3378
  %v3380 = vand.u32 %v3379, 4294901760
  %3381 = vmatpush.msra.mxu0 %v3380
  %v3382 = vand.u32 %v2356, 4294901760
  %v3383 = vsub.f32 %v2356, %v3382
  %v3384 = vand.u32 %v3383, 4294901760
  %3385 = vmatpush.msra.mxu0 %v3384
  %v3386 = vand.u32 %v2352, 4294901760
  %v3387 = vsub.f32 %v2352, %v3386
  %v3388 = vand.u32 %v3387, 4294901760
  %3389 = vmatpush.msra.mxu0 %v3388
  %v3390 = vand.u32 %v2348, 4294901760
  %v3391 = vsub.f32 %v2348, %v3390
  %v3392 = vand.u32 %v3391, 4294901760
  %3393 = vmatpush.msra.mxu0 %v3392
  %v3394 = vand.u32 %v2344, 4294901760
  %v3395 = vsub.f32 %v2344, %v3394
  %v3396 = vand.u32 %v3395, 4294901760
  %3397 = vmatpush.msra.mxu0 %v3396
  %v3398 = vand.u32 %v2340, 4294901760
  %v3399 = vsub.f32 %v2340, %v3398
  %v3400 = vand.u32 %v3399, 4294901760
  %3401 = vmatpush.msra.mxu0 %v3400
  %v3402 = vand.u32 %v2336, 4294901760
  %v3403 = vsub.f32 %v2336, %v3402
  %v3404 = vand.u32 %v3403, 4294901760
  %3405 = vmatpush.msra.mxu0 %v3404
  %v3406 = vand.u32 %v2332, 4294901760
  %v3407 = vsub.f32 %v2332, %v3406
  %v3408 = vand.u32 %v3407, 4294901760
  %3409 = vmatpush.msra.mxu0 %v3408
  %v3410 = vand.u32 %v2328, 4294901760
  %v3411 = vsub.f32 %v2328, %v3410
  %v3412 = vand.u32 %v3411, 4294901760
  %3413 = vmatpush.msra.mxu0 %v3412
  %v3414 = vand.u32 %v2324, 4294901760
  %v3415 = vsub.f32 %v2324, %v3414
  %v3416 = vand.u32 %v3415, 4294901760
  %3417 = vmatpush.msra.mxu0 %v3416
  %v3418 = vand.u32 %v2320, 4294901760
  %v3419 = vsub.f32 %v2320, %v3418
  %v3420 = vand.u32 %v3419, 4294901760
  %3421 = vmatpush.msra.mxu0 %v3420
  %v3422 = vand.u32 %v2316, 4294901760
  %v3423 = vsub.f32 %v2316, %v3422
  %v3424 = vand.u32 %v3423, 4294901760
  %3425 = vmatpush.msra.mxu0 %v3424
  %v3426 = vand.u32 %v2312, 4294901760
  %v3427 = vsub.f32 %v2312, %v3426
  %v3428 = vand.u32 %v3427, 4294901760
  %3429 = vmatpush.msra.mxu0 %v3428
  %v3430 = vand.u32 %v2308, 4294901760
  %v3431 = vsub.f32 %v2308, %v3430
  %v3432 = vand.u32 %v3431, 4294901760
  %3433 = vmatpush.msra.mxu0 %v3432
  %v3434 = vand.u32 %v2304, 4294901760
  %v3435 = vsub.f32 %v2304, %v3434
  %v3436 = vand.u32 %v3435, 4294901760
  %3437 = vmatpush.msra.mxu0 %v3436
  %3438 = vmatmul.f32.gmra.mxu0 1.0
  %v3439 = vpop.f32.mrf.mxu0
  %v3440 = vadd.f32 %v3372, %v3439
  %3441 = vdwg.mxu0
  %v3442 = vand.u32 %v2364, 4294901760
  %3443 = vmatpush.msra.mxu0 %v3442
  %v3444 = vand.u32 %v2360, 4294901760
  %3445 = vmatpush.msra.mxu0 %v3444
  %v3446 = vand.u32 %v2356, 4294901760
  %3447 = vmatpush.msra.mxu0 %v3446
  %v3448 = vand.u32 %v2352, 4294901760
  %3449 = vmatpush.msra.mxu0 %v3448
  %v3450 = vand.u32 %v2348, 4294901760
  %3451 = vmatpush.msra.mxu0 %v3450
  %v3452 = vand.u32 %v2344, 4294901760
  %3453 = vmatpush.msra.mxu0 %v3452
  %v3454 = vand.u32 %v2340, 4294901760
  %3455 = vmatpush.msra.mxu0 %v3454
  %v3456 = vand.u32 %v2336, 4294901760
  %3457 = vmatpush.msra.mxu0 %v3456
  %v3458 = vand.u32 %v2332, 4294901760
  %3459 = vmatpush.msra.mxu0 %v3458
  %v3460 = vand.u32 %v2328, 4294901760
  %3461 = vmatpush.msra.mxu0 %v3460
  %v3462 = vand.u32 %v2324, 4294901760
  %3463 = vmatpush.msra.mxu0 %v3462
  %v3464 = vand.u32 %v2320, 4294901760
  %3465 = vmatpush.msra.mxu0 %v3464
  %v3466 = vand.u32 %v2316, 4294901760
  %3467 = vmatpush.msra.mxu0 %v3466
  %v3468 = vand.u32 %v2312, 4294901760
  %3469 = vmatpush.msra.mxu0 %v3468
  %v3470 = vand.u32 %v2308, 4294901760
  %3471 = vmatpush.msra.mxu0 %v3470
  %v3472 = vand.u32 %v2304, 4294901760
  %3473 = vmatpush.msra.mxu0 %v3472
  %3474 = vmatmul.f32.gmra.mxu0 1.0
  %v3475 = vpop.f32.mrf.mxu0
  %v3476 = vadd.f32 %v3440, %v3475
  %3477 = vdwg.mxu0
  %v3478 = vand.u32 %v2428, 4294901760
  %3479 = vmatpush.msra.mxu0 %v3478
  %v3480 = vand.u32 %v2424, 4294901760
  %3481 = vmatpush.msra.mxu0 %v3480
  %v3482 = vand.u32 %v2420, 4294901760
  %3483 = vmatpush.msra.mxu0 %v3482
  %v3484 = vand.u32 %v2416, 4294901760
  %3485 = vmatpush.msra.mxu0 %v3484
  %v3486 = vand.u32 %v2412, 4294901760
  %3487 = vmatpush.msra.mxu0 %v3486
  %v3488 = vand.u32 %v2408, 4294901760
  %3489 = vmatpush.msra.mxu0 %v3488
  %v3490 = vand.u32 %v2404, 4294901760
  %3491 = vmatpush.msra.mxu0 %v3490
  %v3492 = vand.u32 %v2400, 4294901760
  %3493 = vmatpush.msra.mxu0 %v3492
  %v3494 = vand.u32 %v2396, 4294901760
  %3495 = vmatpush.msra.mxu0 %v3494
  %v3496 = vand.u32 %v2392, 4294901760
  %3497 = vmatpush.msra.mxu0 %v3496
  %v3498 = vand.u32 %v2388, 4294901760
  %3499 = vmatpush.msra.mxu0 %v3498
  %v3500 = vand.u32 %v2384, 4294901760
  %3501 = vmatpush.msra.mxu0 %v3500
  %v3502 = vand.u32 %v2380, 4294901760
  %3503 = vmatpush.msra.mxu0 %v3502
  %v3504 = vand.u32 %v2376, 4294901760
  %3505 = vmatpush.msra.mxu0 %v3504
  %v3506 = vand.u32 %v2372, 4294901760
  %3507 = vmatpush.msra.mxu0 %v3506
  %v3508 = vand.u32 %v2368, 4294901760
  %3509 = vmatpush.msra.mxu0 %v3508
  %3510 = vmatmul.f32.gmra.mxu0 0.0
  %v3511 = vpop.f32.mrf.mxu0
  %v3512 = vadd.f32 %v3476, %v3511
  %3513 = vdwg.mxu0
  %v3514 = vand.u32 %v2428, 4294901760
  %v3515 = vsub.f32 %v2428, %v3514
  %v3516 = vand.u32 %v3515, 4294901760
  %v3517 = vsub.f32 %v3515, %v3516
  %v3518 = vand.u32 %v3517, 4294901760
  %3519 = vmatpush.msra.mxu0 %v3518
  %v3520 = vand.u32 %v2424, 4294901760
  %v3521 = vsub.f32 %v2424, %v3520
  %v3522 = vand.u32 %v3521, 4294901760
  %v3523 = vsub.f32 %v3521, %v3522
  %v3524 = vand.u32 %v3523, 4294901760
  %3525 = vmatpush.msra.mxu0 %v3524
  %v3526 = vand.u32 %v2420, 4294901760
  %v3527 = vsub.f32 %v2420, %v3526
  %v3528 = vand.u32 %v3527, 4294901760
  %v3529 = vsub.f32 %v3527, %v3528
  %v3530 = vand.u32 %v3529, 4294901760
  %3531 = vmatpush.msra.mxu0 %v3530
  %v3532 = vand.u32 %v2416, 4294901760
  %v3533 = vsub.f32 %v2416, %v3532
  %v3534 = vand.u32 %v3533, 4294901760
  %v3535 = vsub.f32 %v3533, %v3534
  %v3536 = vand.u32 %v3535, 4294901760
  %3537 = vmatpush.msra.mxu0 %v3536
  %v3538 = vand.u32 %v2412, 4294901760
  %v3539 = vsub.f32 %v2412, %v3538
  %v3540 = vand.u32 %v3539, 4294901760
  %v3541 = vsub.f32 %v3539, %v3540
  %v3542 = vand.u32 %v3541, 4294901760
  %3543 = vmatpush.msra.mxu0 %v3542
  %v3544 = vand.u32 %v2408, 4294901760
  %v3545 = vsub.f32 %v2408, %v3544
  %v3546 = vand.u32 %v3545, 4294901760
  %v3547 = vsub.f32 %v3545, %v3546
  %v3548 = vand.u32 %v3547, 4294901760
  %3549 = vmatpush.msra.mxu0 %v3548
  %v3550 = vand.u32 %v2404, 4294901760
  %v3551 = vsub.f32 %v2404, %v3550
  %v3552 = vand.u32 %v3551, 4294901760
  %v3553 = vsub.f32 %v3551, %v3552
  %v3554 = vand.u32 %v3553, 4294901760
  %3555 = vmatpush.msra.mxu0 %v3554
  %v3556 = vand.u32 %v2400, 4294901760
  %v3557 = vsub.f32 %v2400, %v3556
  %v3558 = vand.u32 %v3557, 4294901760
  %v3559 = vsub.f32 %v3557, %v3558
  %v3560 = vand.u32 %v3559, 4294901760
  %3561 = vmatpush.msra.mxu0 %v3560
  %v3562 = vand.u32 %v2396, 4294901760
  %v3563 = vsub.f32 %v2396, %v3562
  %v3564 = vand.u32 %v3563, 4294901760
  %v3565 = vsub.f32 %v3563, %v3564
  %v3566 = vand.u32 %v3565, 4294901760
  %3567 = vmatpush.msra.mxu0 %v3566
  %v3568 = vand.u32 %v2392, 4294901760
  %v3569 = vsub.f32 %v2392, %v3568
  %v3570 = vand.u32 %v3569, 4294901760
  %v3571 = vsub.f32 %v3569, %v3570
  %v3572 = vand.u32 %v3571, 4294901760
  %3573 = vmatpush.msra.mxu0 %v3572
  %v3574 = vand.u32 %v2388, 4294901760
  %v3575 = vsub.f32 %v2388, %v3574
  %v3576 = vand.u32 %v3575, 4294901760
  %v3577 = vsub.f32 %v3575, %v3576
  %v3578 = vand.u32 %v3577, 4294901760
  %3579 = vmatpush.msra.mxu0 %v3578
  %v3580 = vand.u32 %v2384, 4294901760
  %v3581 = vsub.f32 %v2384, %v3580
  %v3582 = vand.u32 %v3581, 4294901760
  %v3583 = vsub.f32 %v3581, %v3582
  %v3584 = vand.u32 %v3583, 4294901760
  %3585 = vmatpush.msra.mxu0 %v3584
  %v3586 = vand.u32 %v2380, 4294901760
  %v3587 = vsub.f32 %v2380, %v3586
  %v3588 = vand.u32 %v3587, 4294901760
  %v3589 = vsub.f32 %v3587, %v3588
  %v3590 = vand.u32 %v3589, 4294901760
  %3591 = vmatpush.msra.mxu0 %v3590
  %v3592 = vand.u32 %v2376, 4294901760
  %v3593 = vsub.f32 %v2376, %v3592
  %v3594 = vand.u32 %v3593, 4294901760
  %v3595 = vsub.f32 %v3593, %v3594
  %v3596 = vand.u32 %v3595, 4294901760
  %3597 = vmatpush.msra.mxu0 %v3596
  %v3598 = vand.u32 %v2372, 4294901760
  %v3599 = vsub.f32 %v2372, %v3598
  %v3600 = vand.u32 %v3599, 4294901760
  %v3601 = vsub.f32 %v3599, %v3600
  %v3602 = vand.u32 %v3601, 4294901760
  %3603 = vmatpush.msra.mxu0 %v3602
  %v3604 = vand.u32 %v2368, 4294901760
  %v3605 = vsub.f32 %v2368, %v3604
  %v3606 = vand.u32 %v3605, 4294901760
  %v3607 = vsub.f32 %v3605, %v3606
  %v3608 = vand.u32 %v3607, 4294901760
  %3609 = vmatpush.msra.mxu0 %v3608
  %3610 = vmatmul.f32.gmra.mxu0 1.0
  %v3611 = vpop.f32.mrf.mxu0
  %v3612 = vadd.f32 %v3512, %v3611
  %3613 = vdwg.mxu0
  %v3614 = vand.u32 %v2428, 4294901760
  %v3615 = vsub.f32 %v2428, %v3614
  %3616 = vmatpush.msra.mxu0 %v3615
  %v3617 = vand.u32 %v2424, 4294901760
  %v3618 = vsub.f32 %v2424, %v3617
  %3619 = vmatpush.msra.mxu0 %v3618
  %v3620 = vand.u32 %v2420, 4294901760
  %v3621 = vsub.f32 %v2420, %v3620
  %3622 = vmatpush.msra.mxu0 %v3621
  %v3623 = vand.u32 %v2416, 4294901760
  %v3624 = vsub.f32 %v2416, %v3623
  %3625 = vmatpush.msra.mxu0 %v3624
  %v3626 = vand.u32 %v2412, 4294901760
  %v3627 = vsub.f32 %v2412, %v3626
  %3628 = vmatpush.msra.mxu0 %v3627
  %v3629 = vand.u32 %v2408, 4294901760
  %v3630 = vsub.f32 %v2408, %v3629
  %3631 = vmatpush.msra.mxu0 %v3630
  %v3632 = vand.u32 %v2404, 4294901760
  %v3633 = vsub.f32 %v2404, %v3632
  %3634 = vmatpush.msra.mxu0 %v3633
  %v3635 = vand.u32 %v2400, 4294901760
  %v3636 = vsub.f32 %v2400, %v3635
  %3637 = vmatpush.msra.mxu0 %v3636
  %v3638 = vand.u32 %v2396, 4294901760
  %v3639 = vsub.f32 %v2396, %v3638
  %3640 = vmatpush.msra.mxu0 %v3639
  %v3641 = vand.u32 %v2392, 4294901760
  %v3642 = vsub.f32 %v2392, %v3641
  %3643 = vmatpush.msra.mxu0 %v3642
  %v3644 = vand.u32 %v2388, 4294901760
  %v3645 = vsub.f32 %v2388, %v3644
  %3646 = vmatpush.msra.mxu0 %v3645
  %v3647 = vand.u32 %v2384, 4294901760
  %v3648 = vsub.f32 %v2384, %v3647
  %3649 = vmatpush.msra.mxu0 %v3648
  %v3650 = vand.u32 %v2380, 4294901760
  %v3651 = vsub.f32 %v2380, %v3650
  %3652 = vmatpush.msra.mxu0 %v3651
  %v3653 = vand.u32 %v2376, 4294901760
  %v3654 = vsub.f32 %v2376, %v3653
  %3655 = vmatpush.msra.mxu0 %v3654
  %v3656 = vand.u32 %v2372, 4294901760
  %v3657 = vsub.f32 %v2372, %v3656
  %3658 = vmatpush.msra.mxu0 %v3657
  %v3659 = vand.u32 %v2368, 4294901760
  %v3660 = vsub.f32 %v2368, %v3659
  %3661 = vmatpush.msra.mxu0 %v3660
  %3662 = vmatmul.f32.gmra.mxu0 0.0
  %v3663 = vpop.f32.mrf.mxu0
  %v3664 = vadd.f32 %v3612, %v3663
  %3665 = vdwg.mxu0
  %v3666 = vand.u32 %v2428, 4294901760
  %3667 = vmatpush.msra.mxu0 %v3666
  %v3668 = vand.u32 %v2424, 4294901760
  %3669 = vmatpush.msra.mxu0 %v3668
  %v3670 = vand.u32 %v2420, 4294901760
  %3671 = vmatpush.msra.mxu0 %v3670
  %v3672 = vand.u32 %v2416, 4294901760
  %3673 = vmatpush.msra.mxu0 %v3672
  %v3674 = vand.u32 %v2412, 4294901760
  %3675 = vmatpush.msra.mxu0 %v3674
  %v3676 = vand.u32 %v2408, 4294901760
  %3677 = vmatpush.msra.mxu0 %v3676
  %v3678 = vand.u32 %v2404, 4294901760
  %3679 = vmatpush.msra.mxu0 %v3678
  %v3680 = vand.u32 %v2400, 4294901760
  %3681 = vmatpush.msra.mxu0 %v3680
  %v3682 = vand.u32 %v2396, 4294901760
  %3683 = vmatpush.msra.mxu0 %v3682
  %v3684 = vand.u32 %v2392, 4294901760
  %3685 = vmatpush.msra.mxu0 %v3684
  %v3686 = vand.u32 %v2388, 4294901760
  %3687 = vmatpush.msra.mxu0 %v3686
  %v3688 = vand.u32 %v2384, 4294901760
  %3689 = vmatpush.msra.mxu0 %v3688
  %v3690 = vand.u32 %v2380, 4294901760
  %3691 = vmatpush.msra.mxu0 %v3690
  %v3692 = vand.u32 %v2376, 4294901760
  %3693 = vmatpush.msra.mxu0 %v3692
  %v3694 = vand.u32 %v2372, 4294901760
  %3695 = vmatpush.msra.mxu0 %v3694
  %v3696 = vand.u32 %v2368, 4294901760
  %3697 = vmatpush.msra.mxu0 %v3696
  %3698 = vmatmul.f32.gmra.mxu0 0.0
  %v3699 = vpop.f32.mrf.mxu0
  %v3700 = vadd.f32 %v3664, %v3699
  %3701 = vdwg.mxu0
  %v3702 = vand.u32 %v2428, 4294901760
  %v3703 = vsub.f32 %v2428, %v3702
  %v3704 = vand.u32 %v3703, 4294901760
  %3705 = vmatpush.msra.mxu0 %v3704
  %v3706 = vand.u32 %v2424, 4294901760
  %v3707 = vsub.f32 %v2424, %v3706
  %v3708 = vand.u32 %v3707, 4294901760
  %3709 = vmatpush.msra.mxu0 %v3708
  %v3710 = vand.u32 %v2420, 4294901760
  %v3711 = vsub.f32 %v2420, %v3710
  %v3712 = vand.u32 %v3711, 4294901760
  %3713 = vmatpush.msra.mxu0 %v3712
  %v3714 = vand.u32 %v2416, 4294901760
  %v3715 = vsub.f32 %v2416, %v3714
  %v3716 = vand.u32 %v3715, 4294901760
  %3717 = vmatpush.msra.mxu0 %v3716
  %v3718 = vand.u32 %v2412, 4294901760
  %v3719 = vsub.f32 %v2412, %v3718
  %v3720 = vand.u32 %v3719, 4294901760
  %3721 = vmatpush.msra.mxu0 %v3720
  %v3722 = vand.u32 %v2408, 4294901760
  %v3723 = vsub.f32 %v2408, %v3722
  %v3724 = vand.u32 %v3723, 4294901760
  %3725 = vmatpush.msra.mxu0 %v3724
  %v3726 = vand.u32 %v2404, 4294901760
  %v3727 = vsub.f32 %v2404, %v3726
  %v3728 = vand.u32 %v3727, 4294901760
  %3729 = vmatpush.msra.mxu0 %v3728
  %v3730 = vand.u32 %v2400, 4294901760
  %v3731 = vsub.f32 %v2400, %v3730
  %v3732 = vand.u32 %v3731, 4294901760
  %3733 = vmatpush.msra.mxu0 %v3732
  %v3734 = vand.u32 %v2396, 4294901760
  %v3735 = vsub.f32 %v2396, %v3734
  %v3736 = vand.u32 %v3735, 4294901760
  %3737 = vmatpush.msra.mxu0 %v3736
  %v3738 = vand.u32 %v2392, 4294901760
  %v3739 = vsub.f32 %v2392, %v3738
  %v3740 = vand.u32 %v3739, 4294901760
  %3741 = vmatpush.msra.mxu0 %v3740
  %v3742 = vand.u32 %v2388, 4294901760
  %v3743 = vsub.f32 %v2388, %v3742
  %v3744 = vand.u32 %v3743, 4294901760
  %3745 = vmatpush.msra.mxu0 %v3744
  %v3746 = vand.u32 %v2384, 4294901760
  %v3747 = vsub.f32 %v2384, %v3746
  %v3748 = vand.u32 %v3747, 4294901760
  %3749 = vmatpush.msra.mxu0 %v3748
  %v3750 = vand.u32 %v2380, 4294901760
  %v3751 = vsub.f32 %v2380, %v3750
  %v3752 = vand.u32 %v3751, 4294901760
  %3753 = vmatpush.msra.mxu0 %v3752
  %v3754 = vand.u32 %v2376, 4294901760
  %v3755 = vsub.f32 %v2376, %v3754
  %v3756 = vand.u32 %v3755, 4294901760
  %3757 = vmatpush.msra.mxu0 %v3756
  %v3758 = vand.u32 %v2372, 4294901760
  %v3759 = vsub.f32 %v2372, %v3758
  %v3760 = vand.u32 %v3759, 4294901760
  %3761 = vmatpush.msra.mxu0 %v3760
  %v3762 = vand.u32 %v2368, 4294901760
  %v3763 = vsub.f32 %v2368, %v3762
  %v3764 = vand.u32 %v3763, 4294901760
  %3765 = vmatpush.msra.mxu0 %v3764
  %3766 = vmatmul.f32.gmra.mxu0 1.0
  %v3767 = vpop.f32.mrf.mxu0
  %v3768 = vadd.f32 %v3700, %v3767
  %3769 = vdwg.mxu0
  %v3770 = vand.u32 %v2428, 4294901760
  %3771 = vmatpush.msra.mxu0 %v3770
  %v3772 = vand.u32 %v2424, 4294901760
  %3773 = vmatpush.msra.mxu0 %v3772
  %v3774 = vand.u32 %v2420, 4294901760
  %3775 = vmatpush.msra.mxu0 %v3774
  %v3776 = vand.u32 %v2416, 4294901760
  %3777 = vmatpush.msra.mxu0 %v3776
  %v3778 = vand.u32 %v2412, 4294901760
  %3779 = vmatpush.msra.mxu0 %v3778
  %v3780 = vand.u32 %v2408, 4294901760
  %3781 = vmatpush.msra.mxu0 %v3780
  %v3782 = vand.u32 %v2404, 4294901760
  %3783 = vmatpush.msra.mxu0 %v3782
  %v3784 = vand.u32 %v2400, 4294901760
  %3785 = vmatpush.msra.mxu0 %v3784
  %v3786 = vand.u32 %v2396, 4294901760
  %3787 = vmatpush.msra.mxu0 %v3786
  %v3788 = vand.u32 %v2392, 4294901760
  %3789 = vmatpush.msra.mxu0 %v3788
  %v3790 = vand.u32 %v2388, 4294901760
  %3791 = vmatpush.msra.mxu0 %v3790
  %v3792 = vand.u32 %v2384, 4294901760
  %3793 = vmatpush.msra.mxu0 %v3792
  %v3794 = vand.u32 %v2380, 4294901760
  %3795 = vmatpush.msra.mxu0 %v3794
  %v3796 = vand.u32 %v2376, 4294901760
  %3797 = vmatpush.msra.mxu0 %v3796
  %v3798 = vand.u32 %v2372, 4294901760
  %3799 = vmatpush.msra.mxu0 %v3798
  %v3800 = vand.u32 %v2368, 4294901760
  %3801 = vmatpush.msra.mxu0 %v3800
  %3802 = vmatmul.f32.gmra.mxu0 1.0
  %v3803 = vpop.f32.mrf.mxu0
  %v3804 = vadd.f32 %v3768, %v3803
  %3805 = vdwg.mxu0
  %v3806 = vmul.f32 %v2176, %v2176
  %v3807 = vmul.f32 %v2180, %v2180
  %v3808 = vmul.f32 %v2184, %v2184
  %v3809 = vmul.f32 %v2188, %v2188
  %v3810 = vmul.f32 %v2192, %v2192
  %v3811 = vmul.f32 %v2196, %v2196
  %v3812 = vmul.f32 %v2200, %v2200
  %v3813 = vmul.f32 %v2204, %v2204
  %v3814 = vmul.f32 %v2208, %v2208
  %v3815 = vmul.f32 %v2212, %v2212
  %v3816 = vmul.f32 %v2216, %v2216
  %v3817 = vmul.f32 %v2220, %v2220
  %v3818 = vmul.f32 %v2224, %v2224
  %v3819 = vmul.f32 %v2228, %v2228
  %v3820 = vmul.f32 %v2232, %v2232
  %v3821 = vmul.f32 %v2236, %v2236
  %v3822 = vmul.f32 %v2240, %v2240
  %v3823 = vmul.f32 %v2244, %v2244
  %v3824 = vmul.f32 %v2248, %v2248
  %v3825 = vmul.f32 %v2252, %v2252
  %v3826 = vmul.f32 %v2256, %v2256
  %v3827 = vmul.f32 %v2260, %v2260
  %v3828 = vmul.f32 %v2264, %v2264
  %v3829 = vmul.f32 %v2268, %v2268
  %v3830 = vmul.f32 %v2272, %v2272
  %v3831 = vmul.f32 %v2276, %v2276
  %v3832 = vmul.f32 %v2280, %v2280
  %v3833 = vmul.f32 %v2284, %v2284
  %v3834 = vmul.f32 %v2288, %v2288
  %v3835 = vmul.f32 %v2292, %v2292
  %v3836 = vmul.f32 %v2296, %v2296
  %v3837 = vmul.f32 %v2300, %v2300
  %v3838 = vmul.f32 %v2304, %v2304
  %v3839 = vmul.f32 %v2308, %v2308
  %v3840 = vmul.f32 %v2312, %v2312
  %v3841 = vmul.f32 %v2316, %v2316
  %v3842 = vmul.f32 %v2320, %v2320
  %v3843 = vmul.f32 %v2324, %v2324
  %v3844 = vmul.f32 %v2328, %v2328
  %v3845 = vmul.f32 %v2332, %v2332
  %v3846 = vmul.f32 %v2336, %v2336
  %v3847 = vmul.f32 %v2340, %v2340
  %v3848 = vmul.f32 %v2344, %v2344
  %v3849 = vmul.f32 %v2348, %v2348
  %v3850 = vmul.f32 %v2352, %v2352
  %v3851 = vmul.f32 %v2356, %v2356
  %v3852 = vmul.f32 %v2360, %v2360
  %v3853 = vmul.f32 %v2364, %v2364
  %v3854 = vmul.f32 %v2368, %v2368
  %v3855 = vmul.f32 %v2372, %v2372
  %v3856 = vmul.f32 %v2376, %v2376
  %v3857 = vmul.f32 %v2380, %v2380
  %v3858 = vmul.f32 %v2384, %v2384
  %v3859 = vmul.f32 %v2388, %v2388
  %v3860 = vmul.f32 %v2392, %v2392
  %v3861 = vmul.f32 %v2396, %v2396
  %v3862 = vmul.f32 %v2400, %v2400
  %v3863 = vmul.f32 %v2404, %v2404
  %v3864 = vmul.f32 %v2408, %v2408
  %v3865 = vmul.f32 %v2412, %v2412
  %v3866 = vmul.f32 %v2416, %v2416
  %v3867 = vmul.f32 %v2420, %v2420
  %v3868 = vmul.f32 %v2424, %v2424
  %v3869 = vmul.f32 %v2428, %v2428
  %v3870 = vand.u32 %v3821, 4294901760
  %3871 = vmatpush.msra.mxu0 %v3870
  %v3872 = vand.u32 %v3820, 4294901760
  %3873 = vmatpush.msra.mxu0 %v3872
  %v3874 = vand.u32 %v3819, 4294901760
  %3875 = vmatpush.msra.mxu0 %v3874
  %v3876 = vand.u32 %v3818, 4294901760
  %3877 = vmatpush.msra.mxu0 %v3876
  %v3878 = vand.u32 %v3817, 4294901760
  %3879 = vmatpush.msra.mxu0 %v3878
  %v3880 = vand.u32 %v3816, 4294901760
  %3881 = vmatpush.msra.mxu0 %v3880
  %v3882 = vand.u32 %v3815, 4294901760
  %3883 = vmatpush.msra.mxu0 %v3882
  %v3884 = vand.u32 %v3814, 4294901760
  %3885 = vmatpush.msra.mxu0 %v3884
  %v3886 = vand.u32 %v3813, 4294901760
  %3887 = vmatpush.msra.mxu0 %v3886
  %v3888 = vand.u32 %v3812, 4294901760
  %3889 = vmatpush.msra.mxu0 %v3888
  %v3890 = vand.u32 %v3811, 4294901760
  %3891 = vmatpush.msra.mxu0 %v3890
  %v3892 = vand.u32 %v3810, 4294901760
  %3893 = vmatpush.msra.mxu0 %v3892
  %v3894 = vand.u32 %v3809, 4294901760
  %3895 = vmatpush.msra.mxu0 %v3894
  %v3896 = vand.u32 %v3808, 4294901760
  %3897 = vmatpush.msra.mxu0 %v3896
  %v3898 = vand.u32 %v3807, 4294901760
  %3899 = vmatpush.msra.mxu0 %v3898
  %v3900 = vand.u32 %v3806, 4294901760
  %3901 = vmatpush.msra.mxu0 %v3900
  %3902 = vmatmul.f32.gmra.mxu0 0.0
  %v3903 = vpop.f32.mrf.mxu0
  %v3904 = vadd.f32 0.0, %v3903
  %3905 = vdwg.mxu0
  %v3906 = vand.u32 %v3821, 4294901760
  %v3907 = vsub.f32 %v3821, %v3906
  %v3908 = vand.u32 %v3907, 4294901760
  %v3909 = vsub.f32 %v3907, %v3908
  %v3910 = vand.u32 %v3909, 4294901760
  %3911 = vmatpush.msra.mxu0 %v3910
  %v3912 = vand.u32 %v3820, 4294901760
  %v3913 = vsub.f32 %v3820, %v3912
  %v3914 = vand.u32 %v3913, 4294901760
  %v3915 = vsub.f32 %v3913, %v3914
  %v3916 = vand.u32 %v3915, 4294901760
  %3917 = vmatpush.msra.mxu0 %v3916
  %v3918 = vand.u32 %v3819, 4294901760
  %v3919 = vsub.f32 %v3819, %v3918
  %v3920 = vand.u32 %v3919, 4294901760
  %v3921 = vsub.f32 %v3919, %v3920
  %v3922 = vand.u32 %v3921, 4294901760
  %3923 = vmatpush.msra.mxu0 %v3922
  %v3924 = vand.u32 %v3818, 4294901760
  %v3925 = vsub.f32 %v3818, %v3924
  %v3926 = vand.u32 %v3925, 4294901760
  %v3927 = vsub.f32 %v3925, %v3926
  %v3928 = vand.u32 %v3927, 4294901760
  %3929 = vmatpush.msra.mxu0 %v3928
  %v3930 = vand.u32 %v3817, 4294901760
  %v3931 = vsub.f32 %v3817, %v3930
  %v3932 = vand.u32 %v3931, 4294901760
  %v3933 = vsub.f32 %v3931, %v3932
  %v3934 = vand.u32 %v3933, 4294901760
  %3935 = vmatpush.msra.mxu0 %v3934
  %v3936 = vand.u32 %v3816, 4294901760
  %v3937 = vsub.f32 %v3816, %v3936
  %v3938 = vand.u32 %v3937, 4294901760
  %v3939 = vsub.f32 %v3937, %v3938
  %v3940 = vand.u32 %v3939, 4294901760
  %3941 = vmatpush.msra.mxu0 %v3940
  %v3942 = vand.u32 %v3815, 4294901760
  %v3943 = vsub.f32 %v3815, %v3942
  %v3944 = vand.u32 %v3943, 4294901760
  %v3945 = vsub.f32 %v3943, %v3944
  %v3946 = vand.u32 %v3945, 4294901760
  %3947 = vmatpush.msra.mxu0 %v3946
  %v3948 = vand.u32 %v3814, 4294901760
  %v3949 = vsub.f32 %v3814, %v3948
  %v3950 = vand.u32 %v3949, 4294901760
  %v3951 = vsub.f32 %v3949, %v3950
  %v3952 = vand.u32 %v3951, 4294901760
  %3953 = vmatpush.msra.mxu0 %v3952
  %v3954 = vand.u32 %v3813, 4294901760
  %v3955 = vsub.f32 %v3813, %v3954
  %v3956 = vand.u32 %v3955, 4294901760
  %v3957 = vsub.f32 %v3955, %v3956
  %v3958 = vand.u32 %v3957, 4294901760
  %3959 = vmatpush.msra.mxu0 %v3958
  %v3960 = vand.u32 %v3812, 4294901760
  %v3961 = vsub.f32 %v3812, %v3960
  %v3962 = vand.u32 %v3961, 4294901760
  %v3963 = vsub.f32 %v3961, %v3962
  %v3964 = vand.u32 %v3963, 4294901760
  %3965 = vmatpush.msra.mxu0 %v3964
  %v3966 = vand.u32 %v3811, 4294901760
  %v3967 = vsub.f32 %v3811, %v3966
  %v3968 = vand.u32 %v3967, 4294901760
  %v3969 = vsub.f32 %v3967, %v3968
  %v3970 = vand.u32 %v3969, 4294901760
  %3971 = vmatpush.msra.mxu0 %v3970
  %v3972 = vand.u32 %v3810, 4294901760
  %v3973 = vsub.f32 %v3810, %v3972
  %v3974 = vand.u32 %v3973, 4294901760
  %v3975 = vsub.f32 %v3973, %v3974
  %v3976 = vand.u32 %v3975, 4294901760
  %3977 = vmatpush.msra.mxu0 %v3976
  %v3978 = vand.u32 %v3809, 4294901760
  %v3979 = vsub.f32 %v3809, %v3978
  %v3980 = vand.u32 %v3979, 4294901760
  %v3981 = vsub.f32 %v3979, %v3980
  %v3982 = vand.u32 %v3981, 4294901760
  %3983 = vmatpush.msra.mxu0 %v3982
  %v3984 = vand.u32 %v3808, 4294901760
  %v3985 = vsub.f32 %v3808, %v3984
  %v3986 = vand.u32 %v3985, 4294901760
  %v3987 = vsub.f32 %v3985, %v3986
  %v3988 = vand.u32 %v3987, 4294901760
  %3989 = vmatpush.msra.mxu0 %v3988
  %v3990 = vand.u32 %v3807, 4294901760
  %v3991 = vsub.f32 %v3807, %v3990
  %v3992 = vand.u32 %v3991, 4294901760
  %v3993 = vsub.f32 %v3991, %v3992
  %v3994 = vand.u32 %v3993, 4294901760
  %3995 = vmatpush.msra.mxu0 %v3994
  %v3996 = vand.u32 %v3806, 4294901760
  %v3997 = vsub.f32 %v3806, %v3996
  %v3998 = vand.u32 %v3997, 4294901760
  %v3999 = vsub.f32 %v3997, %v3998
  %v4000 = vand.u32 %v3999, 4294901760
  %4001 = vmatpush.msra.mxu0 %v4000
  %4002 = vmatmul.f32.gmra.mxu0 1.0
  %v4003 = vpop.f32.mrf.mxu0
  %v4004 = vadd.f32 %v3904, %v4003
  %4005 = vdwg.mxu0
  %v4006 = vand.u32 %v3821, 4294901760
  %v4007 = vsub.f32 %v3821, %v4006
  %4008 = vmatpush.msra.mxu0 %v4007
  %v4009 = vand.u32 %v3820, 4294901760
  %v4010 = vsub.f32 %v3820, %v4009
  %4011 = vmatpush.msra.mxu0 %v4010
  %v4012 = vand.u32 %v3819, 4294901760
  %v4013 = vsub.f32 %v3819, %v4012
  %4014 = vmatpush.msra.mxu0 %v4013
  %v4015 = vand.u32 %v3818, 4294901760
  %v4016 = vsub.f32 %v3818, %v4015
  %4017 = vmatpush.msra.mxu0 %v4016
  %v4018 = vand.u32 %v3817, 4294901760
  %v4019 = vsub.f32 %v3817, %v4018
  %4020 = vmatpush.msra.mxu0 %v4019
  %v4021 = vand.u32 %v3816, 4294901760
  %v4022 = vsub.f32 %v3816, %v4021
  %4023 = vmatpush.msra.mxu0 %v4022
  %v4024 = vand.u32 %v3815, 4294901760
  %v4025 = vsub.f32 %v3815, %v4024
  %4026 = vmatpush.msra.mxu0 %v4025
  %v4027 = vand.u32 %v3814, 4294901760
  %v4028 = vsub.f32 %v3814, %v4027
  %4029 = vmatpush.msra.mxu0 %v4028
  %v4030 = vand.u32 %v3813, 4294901760
  %v4031 = vsub.f32 %v3813, %v4030
  %4032 = vmatpush.msra.mxu0 %v4031
  %v4033 = vand.u32 %v3812, 4294901760
  %v4034 = vsub.f32 %v3812, %v4033
  %4035 = vmatpush.msra.mxu0 %v4034
  %v4036 = vand.u32 %v3811, 4294901760
  %v4037 = vsub.f32 %v3811, %v4036
  %4038 = vmatpush.msra.mxu0 %v4037
  %v4039 = vand.u32 %v3810, 4294901760
  %v4040 = vsub.f32 %v3810, %v4039
  %4041 = vmatpush.msra.mxu0 %v4040
  %v4042 = vand.u32 %v3809, 4294901760
  %v4043 = vsub.f32 %v3809, %v4042
  %4044 = vmatpush.msra.mxu0 %v4043
  %v4045 = vand.u32 %v3808, 4294901760
  %v4046 = vsub.f32 %v3808, %v4045
  %4047 = vmatpush.msra.mxu0 %v4046
  %v4048 = vand.u32 %v3807, 4294901760
  %v4049 = vsub.f32 %v3807, %v4048
  %4050 = vmatpush.msra.mxu0 %v4049
  %v4051 = vand.u32 %v3806, 4294901760
  %v4052 = vsub.f32 %v3806, %v4051
  %4053 = vmatpush.msra.mxu0 %v4052
  %4054 = vmatmul.f32.gmra.mxu0 0.0
  %v4055 = vpop.f32.mrf.mxu0
  %v4056 = vadd.f32 %v4004, %v4055
  %4057 = vdwg.mxu0
  %v4058 = vand.u32 %v3821, 4294901760
  %4059 = vmatpush.msra.mxu0 %v4058
  %v4060 = vand.u32 %v3820, 4294901760
  %4061 = vmatpush.msra.mxu0 %v4060
  %v4062 = vand.u32 %v3819, 4294901760
  %4063 = vmatpush.msra.mxu0 %v4062
  %v4064 = vand.u32 %v3818, 4294901760
  %4065 = vmatpush.msra.mxu0 %v4064
  %v4066 = vand.u32 %v3817, 4294901760
  %4067 = vmatpush.msra.mxu0 %v4066
  %v4068 = vand.u32 %v3816, 4294901760
  %4069 = vmatpush.msra.mxu0 %v4068
  %v4070 = vand.u32 %v3815, 4294901760
  %4071 = vmatpush.msra.mxu0 %v4070
  %v4072 = vand.u32 %v3814, 4294901760
  %4073 = vmatpush.msra.mxu0 %v4072
  %v4074 = vand.u32 %v3813, 4294901760
  %4075 = vmatpush.msra.mxu0 %v4074
  %v4076 = vand.u32 %v3812, 4294901760
  %4077 = vmatpush.msra.mxu0 %v4076
  %v4078 = vand.u32 %v3811, 4294901760
  %4079 = vmatpush.msra.mxu0 %v4078
  %v4080 = vand.u32 %v3810, 4294901760
  %4081 = vmatpush.msra.mxu0 %v4080
  %v4082 = vand.u32 %v3809, 4294901760
  %4083 = vmatpush.msra.mxu0 %v4082
  %v4084 = vand.u32 %v3808, 4294901760
  %4085 = vmatpush.msra.mxu0 %v4084
  %v4086 = vand.u32 %v3807, 4294901760
  %4087 = vmatpush.msra.mxu0 %v4086
  %v4088 = vand.u32 %v3806, 4294901760
  %4089 = vmatpush.msra.mxu0 %v4088
  %4090 = vmatmul.f32.gmra.mxu0 0.0
  %v4091 = vpop.f32.mrf.mxu0
  %v4092 = vadd.f32 %v4056, %v4091
  %4093 = vdwg.mxu0
  %v4094 = vand.u32 %v3821, 4294901760
  %v4095 = vsub.f32 %v3821, %v4094
  %v4096 = vand.u32 %v4095, 4294901760
  %4097 = vmatpush.msra.mxu0 %v4096
  %v4098 = vand.u32 %v3820, 4294901760
  %v4099 = vsub.f32 %v3820, %v4098
  %v4100 = vand.u32 %v4099, 4294901760
  %4101 = vmatpush.msra.mxu0 %v4100
  %v4102 = vand.u32 %v3819, 4294901760
  %v4103 = vsub.f32 %v3819, %v4102
  %v4104 = vand.u32 %v4103, 4294901760
  %4105 = vmatpush.msra.mxu0 %v4104
  %v4106 = vand.u32 %v3818, 4294901760
  %v4107 = vsub.f32 %v3818, %v4106
  %v4108 = vand.u32 %v4107, 4294901760
  %4109 = vmatpush.msra.mxu0 %v4108
  %v4110 = vand.u32 %v3817, 4294901760
  %v4111 = vsub.f32 %v3817, %v4110
  %v4112 = vand.u32 %v4111, 4294901760
  %4113 = vmatpush.msra.mxu0 %v4112
  %v4114 = vand.u32 %v3816, 4294901760
  %v4115 = vsub.f32 %v3816, %v4114
  %v4116 = vand.u32 %v4115, 4294901760
  %4117 = vmatpush.msra.mxu0 %v4116
  %v4118 = vand.u32 %v3815, 4294901760
  %v4119 = vsub.f32 %v3815, %v4118
  %v4120 = vand.u32 %v4119, 4294901760
  %4121 = vmatpush.msra.mxu0 %v4120
  %v4122 = vand.u32 %v3814, 4294901760
  %v4123 = vsub.f32 %v3814, %v4122
  %v4124 = vand.u32 %v4123, 4294901760
  %4125 = vmatpush.msra.mxu0 %v4124
  %v4126 = vand.u32 %v3813, 4294901760
  %v4127 = vsub.f32 %v3813, %v4126
  %v4128 = vand.u32 %v4127, 4294901760
  %4129 = vmatpush.msra.mxu0 %v4128
  %v4130 = vand.u32 %v3812, 4294901760
  %v4131 = vsub.f32 %v3812, %v4130
  %v4132 = vand.u32 %v4131, 4294901760
  %4133 = vmatpush.msra.mxu0 %v4132
  %v4134 = vand.u32 %v3811, 4294901760
  %v4135 = vsub.f32 %v3811, %v4134
  %v4136 = vand.u32 %v4135, 4294901760
  %4137 = vmatpush.msra.mxu0 %v4136
  %v4138 = vand.u32 %v3810, 4294901760
  %v4139 = vsub.f32 %v3810, %v4138
  %v4140 = vand.u32 %v4139, 4294901760
  %4141 = vmatpush.msra.mxu0 %v4140
  %v4142 = vand.u32 %v3809, 4294901760
  %v4143 = vsub.f32 %v3809, %v4142
  %v4144 = vand.u32 %v4143, 4294901760
  %4145 = vmatpush.msra.mxu0 %v4144
  %v4146 = vand.u32 %v3808, 4294901760
  %v4147 = vsub.f32 %v3808, %v4146
  %v4148 = vand.u32 %v4147, 4294901760
  %4149 = vmatpush.msra.mxu0 %v4148
  %v4150 = vand.u32 %v3807, 4294901760
  %v4151 = vsub.f32 %v3807, %v4150
  %v4152 = vand.u32 %v4151, 4294901760
  %4153 = vmatpush.msra.mxu0 %v4152
  %v4154 = vand.u32 %v3806, 4294901760
  %v4155 = vsub.f32 %v3806, %v4154
  %v4156 = vand.u32 %v4155, 4294901760
  %4157 = vmatpush.msra.mxu0 %v4156
  %4158 = vmatmul.f32.gmra.mxu0 1.0
  %v4159 = vpop.f32.mrf.mxu0
  %v4160 = vadd.f32 %v4092, %v4159
  %4161 = vdwg.mxu0
  %v4162 = vand.u32 %v3821, 4294901760
  %4163 = vmatpush.msra.mxu0 %v4162
  %v4164 = vand.u32 %v3820, 4294901760
  %4165 = vmatpush.msra.mxu0 %v4164
  %v4166 = vand.u32 %v3819, 4294901760
  %4167 = vmatpush.msra.mxu0 %v4166
  %v4168 = vand.u32 %v3818, 4294901760
  %4169 = vmatpush.msra.mxu0 %v4168
  %v4170 = vand.u32 %v3817, 4294901760
  %4171 = vmatpush.msra.mxu0 %v4170
  %v4172 = vand.u32 %v3816, 4294901760
  %4173 = vmatpush.msra.mxu0 %v4172
  %v4174 = vand.u32 %v3815, 4294901760
  %4175 = vmatpush.msra.mxu0 %v4174
  %v4176 = vand.u32 %v3814, 4294901760
  %4177 = vmatpush.msra.mxu0 %v4176
  %v4178 = vand.u32 %v3813, 4294901760
  %4179 = vmatpush.msra.mxu0 %v4178
  %v4180 = vand.u32 %v3812, 4294901760
  %4181 = vmatpush.msra.mxu0 %v4180
  %v4182 = vand.u32 %v3811, 4294901760
  %4183 = vmatpush.msra.mxu0 %v4182
  %v4184 = vand.u32 %v3810, 4294901760
  %4185 = vmatpush.msra.mxu0 %v4184
  %v4186 = vand.u32 %v3809, 4294901760
  %4187 = vmatpush.msra.mxu0 %v4186
  %v4188 = vand.u32 %v3808, 4294901760
  %4189 = vmatpush.msra.mxu0 %v4188
  %v4190 = vand.u32 %v3807, 4294901760
  %4191 = vmatpush.msra.mxu0 %v4190
  %v4192 = vand.u32 %v3806, 4294901760
  %4193 = vmatpush.msra.mxu0 %v4192
  %4194 = vmatmul.f32.gmra.mxu0 1.0
  %v4195 = vpop.f32.mrf.mxu0
  %v4196 = vadd.f32 %v4160, %v4195
  %4197 = vdwg.mxu0
  %v4198 = vand.u32 %v3837, 4294901760
  %4199 = vmatpush.msra.mxu0 %v4198
  %v4200 = vand.u32 %v3836, 4294901760
  %4201 = vmatpush.msra.mxu0 %v4200
  %v4202 = vand.u32 %v3835, 4294901760
  %4203 = vmatpush.msra.mxu0 %v4202
  %v4204 = vand.u32 %v3834, 4294901760
  %4205 = vmatpush.msra.mxu0 %v4204
  %v4206 = vand.u32 %v3833, 4294901760
  %4207 = vmatpush.msra.mxu0 %v4206
  %v4208 = vand.u32 %v3832, 4294901760
  %4209 = vmatpush.msra.mxu0 %v4208
  %v4210 = vand.u32 %v3831, 4294901760
  %4211 = vmatpush.msra.mxu0 %v4210
  %v4212 = vand.u32 %v3830, 4294901760
  %4213 = vmatpush.msra.mxu0 %v4212
  %v4214 = vand.u32 %v3829, 4294901760
  %4215 = vmatpush.msra.mxu0 %v4214
  %v4216 = vand.u32 %v3828, 4294901760
  %4217 = vmatpush.msra.mxu0 %v4216
  %v4218 = vand.u32 %v3827, 4294901760
  %4219 = vmatpush.msra.mxu0 %v4218
  %v4220 = vand.u32 %v3826, 4294901760
  %4221 = vmatpush.msra.mxu0 %v4220
  %v4222 = vand.u32 %v3825, 4294901760
  %4223 = vmatpush.msra.mxu0 %v4222
  %v4224 = vand.u32 %v3824, 4294901760
  %4225 = vmatpush.msra.mxu0 %v4224
  %v4226 = vand.u32 %v3823, 4294901760
  %4227 = vmatpush.msra.mxu0 %v4226
  %v4228 = vand.u32 %v3822, 4294901760
  %4229 = vmatpush.msra.mxu0 %v4228
  %4230 = vmatmul.f32.gmra.mxu0 0.0
  %v4231 = vpop.f32.mrf.mxu0
  %v4232 = vadd.f32 %v4196, %v4231
  %4233 = vdwg.mxu0
  %v4234 = vand.u32 %v3837, 4294901760
  %v4235 = vsub.f32 %v3837, %v4234
  %v4236 = vand.u32 %v4235, 4294901760
  %v4237 = vsub.f32 %v4235, %v4236
  %v4238 = vand.u32 %v4237, 4294901760
  %4239 = vmatpush.msra.mxu0 %v4238
  %v4240 = vand.u32 %v3836, 4294901760
  %v4241 = vsub.f32 %v3836, %v4240
  %v4242 = vand.u32 %v4241, 4294901760
  %v4243 = vsub.f32 %v4241, %v4242
  %v4244 = vand.u32 %v4243, 4294901760
  %4245 = vmatpush.msra.mxu0 %v4244
  %v4246 = vand.u32 %v3835, 4294901760
  %v4247 = vsub.f32 %v3835, %v4246
  %v4248 = vand.u32 %v4247, 4294901760
  %v4249 = vsub.f32 %v4247, %v4248
  %v4250 = vand.u32 %v4249, 4294901760
  %4251 = vmatpush.msra.mxu0 %v4250
  %v4252 = vand.u32 %v3834, 4294901760
  %v4253 = vsub.f32 %v3834, %v4252
  %v4254 = vand.u32 %v4253, 4294901760
  %v4255 = vsub.f32 %v4253, %v4254
  %v4256 = vand.u32 %v4255, 4294901760
  %4257 = vmatpush.msra.mxu0 %v4256
  %v4258 = vand.u32 %v3833, 4294901760
  %v4259 = vsub.f32 %v3833, %v4258
  %v4260 = vand.u32 %v4259, 4294901760
  %v4261 = vsub.f32 %v4259, %v4260
  %v4262 = vand.u32 %v4261, 4294901760
  %4263 = vmatpush.msra.mxu0 %v4262
  %v4264 = vand.u32 %v3832, 4294901760
  %v4265 = vsub.f32 %v3832, %v4264
  %v4266 = vand.u32 %v4265, 4294901760
  %v4267 = vsub.f32 %v4265, %v4266
  %v4268 = vand.u32 %v4267, 4294901760
  %4269 = vmatpush.msra.mxu0 %v4268
  %v4270 = vand.u32 %v3831, 4294901760
  %v4271 = vsub.f32 %v3831, %v4270
  %v4272 = vand.u32 %v4271, 4294901760
  %v4273 = vsub.f32 %v4271, %v4272
  %v4274 = vand.u32 %v4273, 4294901760
  %4275 = vmatpush.msra.mxu0 %v4274
  %v4276 = vand.u32 %v3830, 4294901760
  %v4277 = vsub.f32 %v3830, %v4276
  %v4278 = vand.u32 %v4277, 4294901760
  %v4279 = vsub.f32 %v4277, %v4278
  %v4280 = vand.u32 %v4279, 4294901760
  %4281 = vmatpush.msra.mxu0 %v4280
  %v4282 = vand.u32 %v3829, 4294901760
  %v4283 = vsub.f32 %v3829, %v4282
  %v4284 = vand.u32 %v4283, 4294901760
  %v4285 = vsub.f32 %v4283, %v4284
  %v4286 = vand.u32 %v4285, 4294901760
  %4287 = vmatpush.msra.mxu0 %v4286
  %v4288 = vand.u32 %v3828, 4294901760
  %v4289 = vsub.f32 %v3828, %v4288
  %v4290 = vand.u32 %v4289, 4294901760
  %v4291 = vsub.f32 %v4289, %v4290
  %v4292 = vand.u32 %v4291, 4294901760
  %4293 = vmatpush.msra.mxu0 %v4292
  %v4294 = vand.u32 %v3827, 4294901760
  %v4295 = vsub.f32 %v3827, %v4294
  %v4296 = vand.u32 %v4295, 4294901760
  %v4297 = vsub.f32 %v4295, %v4296
  %v4298 = vand.u32 %v4297, 4294901760
  %4299 = vmatpush.msra.mxu0 %v4298
  %v4300 = vand.u32 %v3826, 4294901760
  %v4301 = vsub.f32 %v3826, %v4300
  %v4302 = vand.u32 %v4301, 4294901760
  %v4303 = vsub.f32 %v4301, %v4302
  %v4304 = vand.u32 %v4303, 4294901760
  %4305 = vmatpush.msra.mxu0 %v4304
  %v4306 = vand.u32 %v3825, 4294901760
  %v4307 = vsub.f32 %v3825, %v4306
  %v4308 = vand.u32 %v4307, 4294901760
  %v4309 = vsub.f32 %v4307, %v4308
  %v4310 = vand.u32 %v4309, 4294901760
  %4311 = vmatpush.msra.mxu0 %v4310
  %v4312 = vand.u32 %v3824, 4294901760
  %v4313 = vsub.f32 %v3824, %v4312
  %v4314 = vand.u32 %v4313, 4294901760
  %v4315 = vsub.f32 %v4313, %v4314
  %v4316 = vand.u32 %v4315, 4294901760
  %4317 = vmatpush.msra.mxu0 %v4316
  %v4318 = vand.u32 %v3823, 4294901760
  %v4319 = vsub.f32 %v3823, %v4318
  %v4320 = vand.u32 %v4319, 4294901760
  %v4321 = vsub.f32 %v4319, %v4320
  %v4322 = vand.u32 %v4321, 4294901760
  %4323 = vmatpush.msra.mxu0 %v4322
  %v4324 = vand.u32 %v3822, 4294901760
  %v4325 = vsub.f32 %v3822, %v4324
  %v4326 = vand.u32 %v4325, 4294901760
  %v4327 = vsub.f32 %v4325, %v4326
  %v4328 = vand.u32 %v4327, 4294901760
  %4329 = vmatpush.msra.mxu0 %v4328
  %4330 = vmatmul.f32.gmra.mxu0 1.0
  %v4331 = vpop.f32.mrf.mxu0
  %v4332 = vadd.f32 %v4232, %v4331
  %4333 = vdwg.mxu0
  %v4334 = vand.u32 %v3837, 4294901760
  %v4335 = vsub.f32 %v3837, %v4334
  %4336 = vmatpush.msra.mxu0 %v4335
  %v4337 = vand.u32 %v3836, 4294901760
  %v4338 = vsub.f32 %v3836, %v4337
  %4339 = vmatpush.msra.mxu0 %v4338
  %v4340 = vand.u32 %v3835, 4294901760
  %v4341 = vsub.f32 %v3835, %v4340
  %4342 = vmatpush.msra.mxu0 %v4341
  %v4343 = vand.u32 %v3834, 4294901760
  %v4344 = vsub.f32 %v3834, %v4343
  %4345 = vmatpush.msra.mxu0 %v4344
  %v4346 = vand.u32 %v3833, 4294901760
  %v4347 = vsub.f32 %v3833, %v4346
  %4348 = vmatpush.msra.mxu0 %v4347
  %v4349 = vand.u32 %v3832, 4294901760
  %v4350 = vsub.f32 %v3832, %v4349
  %4351 = vmatpush.msra.mxu0 %v4350
  %v4352 = vand.u32 %v3831, 4294901760
  %v4353 = vsub.f32 %v3831, %v4352
  %4354 = vmatpush.msra.mxu0 %v4353
  %v4355 = vand.u32 %v3830, 4294901760
  %v4356 = vsub.f32 %v3830, %v4355
  %4357 = vmatpush.msra.mxu0 %v4356
  %v4358 = vand.u32 %v3829, 4294901760
  %v4359 = vsub.f32 %v3829, %v4358
  %4360 = vmatpush.msra.mxu0 %v4359
  %v4361 = vand.u32 %v3828, 4294901760
  %v4362 = vsub.f32 %v3828, %v4361
  %4363 = vmatpush.msra.mxu0 %v4362
  %v4364 = vand.u32 %v3827, 4294901760
  %v4365 = vsub.f32 %v3827, %v4364
  %4366 = vmatpush.msra.mxu0 %v4365
  %v4367 = vand.u32 %v3826, 4294901760
  %v4368 = vsub.f32 %v3826, %v4367
  %4369 = vmatpush.msra.mxu0 %v4368
  %v4370 = vand.u32 %v3825, 4294901760
  %v4371 = vsub.f32 %v3825, %v4370
  %4372 = vmatpush.msra.mxu0 %v4371
  %v4373 = vand.u32 %v3824, 4294901760
  %v4374 = vsub.f32 %v3824, %v4373
  %4375 = vmatpush.msra.mxu0 %v4374
  %v4376 = vand.u32 %v3823, 4294901760
  %v4377 = vsub.f32 %v3823, %v4376
  %4378 = vmatpush.msra.mxu0 %v4377
  %v4379 = vand.u32 %v3822, 4294901760
  %v4380 = vsub.f32 %v3822, %v4379
  %4381 = vmatpush.msra.mxu0 %v4380
  %4382 = vmatmul.f32.gmra.mxu0 0.0
  %v4383 = vpop.f32.mrf.mxu0
  %v4384 = vadd.f32 %v4332, %v4383
  %4385 = vdwg.mxu0
  %v4386 = vand.u32 %v3837, 4294901760
  %4387 = vmatpush.msra.mxu0 %v4386
  %v4388 = vand.u32 %v3836, 4294901760
  %4389 = vmatpush.msra.mxu0 %v4388
  %v4390 = vand.u32 %v3835, 4294901760
  %4391 = vmatpush.msra.mxu0 %v4390
  %v4392 = vand.u32 %v3834, 4294901760
  %4393 = vmatpush.msra.mxu0 %v4392
  %v4394 = vand.u32 %v3833, 4294901760
  %4395 = vmatpush.msra.mxu0 %v4394
  %v4396 = vand.u32 %v3832, 4294901760
  %4397 = vmatpush.msra.mxu0 %v4396
  %v4398 = vand.u32 %v3831, 4294901760
  %4399 = vmatpush.msra.mxu0 %v4398
  %v4400 = vand.u32 %v3830, 4294901760
  %4401 = vmatpush.msra.mxu0 %v4400
  %v4402 = vand.u32 %v3829, 4294901760
  %4403 = vmatpush.msra.mxu0 %v4402
  %v4404 = vand.u32 %v3828, 4294901760
  %4405 = vmatpush.msra.mxu0 %v4404
  %v4406 = vand.u32 %v3827, 4294901760
  %4407 = vmatpush.msra.mxu0 %v4406
  %v4408 = vand.u32 %v3826, 4294901760
  %4409 = vmatpush.msra.mxu0 %v4408
  %v4410 = vand.u32 %v3825, 4294901760
  %4411 = vmatpush.msra.mxu0 %v4410
  %v4412 = vand.u32 %v3824, 4294901760
  %4413 = vmatpush.msra.mxu0 %v4412
  %v4414 = vand.u32 %v3823, 4294901760
  %4415 = vmatpush.msra.mxu0 %v4414
  %v4416 = vand.u32 %v3822, 4294901760
  %4417 = vmatpush.msra.mxu0 %v4416
  %4418 = vmatmul.f32.gmra.mxu0 0.0
  %v4419 = vpop.f32.mrf.mxu0
  %v4420 = vadd.f32 %v4384, %v4419
  %4421 = vdwg.mxu0
  %v4422 = vand.u32 %v3837, 4294901760
  %v4423 = vsub.f32 %v3837, %v4422
  %v4424 = vand.u32 %v4423, 4294901760
  %4425 = vmatpush.msra.mxu0 %v4424
  %v4426 = vand.u32 %v3836, 4294901760
  %v4427 = vsub.f32 %v3836, %v4426
  %v4428 = vand.u32 %v4427, 4294901760
  %4429 = vmatpush.msra.mxu0 %v4428
  %v4430 = vand.u32 %v3835, 4294901760
  %v4431 = vsub.f32 %v3835, %v4430
  %v4432 = vand.u32 %v4431, 4294901760
  %4433 = vmatpush.msra.mxu0 %v4432
  %v4434 = vand.u32 %v3834, 4294901760
  %v4435 = vsub.f32 %v3834, %v4434
  %v4436 = vand.u32 %v4435, 4294901760
  %4437 = vmatpush.msra.mxu0 %v4436
  %v4438 = vand.u32 %v3833, 4294901760
  %v4439 = vsub.f32 %v3833, %v4438
  %v4440 = vand.u32 %v4439, 4294901760
  %4441 = vmatpush.msra.mxu0 %v4440
  %v4442 = vand.u32 %v3832, 4294901760
  %v4443 = vsub.f32 %v3832, %v4442
  %v4444 = vand.u32 %v4443, 4294901760
  %4445 = vmatpush.msra.mxu0 %v4444
  %v4446 = vand.u32 %v3831, 4294901760
  %v4447 = vsub.f32 %v3831, %v4446
  %v4448 = vand.u32 %v4447, 4294901760
  %4449 = vmatpush.msra.mxu0 %v4448
  %v4450 = vand.u32 %v3830, 4294901760
  %v4451 = vsub.f32 %v3830, %v4450
  %v4452 = vand.u32 %v4451, 4294901760
  %4453 = vmatpush.msra.mxu0 %v4452
  %v4454 = vand.u32 %v3829, 4294901760
  %v4455 = vsub.f32 %v3829, %v4454
  %v4456 = vand.u32 %v4455, 4294901760
  %4457 = vmatpush.msra.mxu0 %v4456
  %v4458 = vand.u32 %v3828, 4294901760
  %v4459 = vsub.f32 %v3828, %v4458
  %v4460 = vand.u32 %v4459, 4294901760
  %4461 = vmatpush.msra.mxu0 %v4460
  %v4462 = vand.u32 %v3827, 4294901760
  %v4463 = vsub.f32 %v3827, %v4462
  %v4464 = vand.u32 %v4463, 4294901760
  %4465 = vmatpush.msra.mxu0 %v4464
  %v4466 = vand.u32 %v3826, 4294901760
  %v4467 = vsub.f32 %v3826, %v4466
  %v4468 = vand.u32 %v4467, 4294901760
  %4469 = vmatpush.msra.mxu0 %v4468
  %v4470 = vand.u32 %v3825, 4294901760
  %v4471 = vsub.f32 %v3825, %v4470
  %v4472 = vand.u32 %v4471, 4294901760
  %4473 = vmatpush.msra.mxu0 %v4472
  %v4474 = vand.u32 %v3824, 4294901760
  %v4475 = vsub.f32 %v3824, %v4474
  %v4476 = vand.u32 %v4475, 4294901760
  %4477 = vmatpush.msra.mxu0 %v4476
  %v4478 = vand.u32 %v3823, 4294901760
  %v4479 = vsub.f32 %v3823, %v4478
  %v4480 = vand.u32 %v4479, 4294901760
  %4481 = vmatpush.msra.mxu0 %v4480
  %v4482 = vand.u32 %v3822, 4294901760
  %v4483 = vsub.f32 %v3822, %v4482
  %v4484 = vand.u32 %v4483, 4294901760
  %4485 = vmatpush.msra.mxu0 %v4484
  %4486 = vmatmul.f32.gmra.mxu0 1.0
  %v4487 = vpop.f32.mrf.mxu0
  %v4488 = vadd.f32 %v4420, %v4487
  %4489 = vdwg.mxu0
  %v4490 = vand.u32 %v3837, 4294901760
  %4491 = vmatpush.msra.mxu0 %v4490
  %v4492 = vand.u32 %v3836, 4294901760
  %4493 = vmatpush.msra.mxu0 %v4492
  %v4494 = vand.u32 %v3835, 4294901760
  %4495 = vmatpush.msra.mxu0 %v4494
  %v4496 = vand.u32 %v3834, 4294901760
  %4497 = vmatpush.msra.mxu0 %v4496
  %v4498 = vand.u32 %v3833, 4294901760
  %4499 = vmatpush.msra.mxu0 %v4498
  %v4500 = vand.u32 %v3832, 4294901760
  %4501 = vmatpush.msra.mxu0 %v4500
  %v4502 = vand.u32 %v3831, 4294901760
  %4503 = vmatpush.msra.mxu0 %v4502
  %v4504 = vand.u32 %v3830, 4294901760
  %4505 = vmatpush.msra.mxu0 %v4504
  %v4506 = vand.u32 %v3829, 4294901760
  %4507 = vmatpush.msra.mxu0 %v4506
  %v4508 = vand.u32 %v3828, 4294901760
  %4509 = vmatpush.msra.mxu0 %v4508
  %v4510 = vand.u32 %v3827, 4294901760
  %4511 = vmatpush.msra.mxu0 %v4510
  %v4512 = vand.u32 %v3826, 4294901760
  %4513 = vmatpush.msra.mxu0 %v4512
  %v4514 = vand.u32 %v3825, 4294901760
  %4515 = vmatpush.msra.mxu0 %v4514
  %v4516 = vand.u32 %v3824, 4294901760
  %4517 = vmatpush.msra.mxu0 %v4516
  %v4518 = vand.u32 %v3823, 4294901760
  %4519 = vmatpush.msra.mxu0 %v4518
  %v4520 = vand.u32 %v3822, 4294901760
  %4521 = vmatpush.msra.mxu0 %v4520
  %4522 = vmatmul.f32.gmra.mxu0 1.0
  %v4523 = vpop.f32.mrf.mxu0
  %v4524 = vadd.f32 %v4488, %v4523
  %4525 = vdwg.mxu0
  %v4526 = vand.u32 %v3853, 4294901760
  %4527 = vmatpush.msra.mxu0 %v4526
  %v4528 = vand.u32 %v3852, 4294901760
  %4529 = vmatpush.msra.mxu0 %v4528
  %v4530 = vand.u32 %v3851, 4294901760
  %4531 = vmatpush.msra.mxu0 %v4530
  %v4532 = vand.u32 %v3850, 4294901760
  %4533 = vmatpush.msra.mxu0 %v4532
  %v4534 = vand.u32 %v3849, 4294901760
  %4535 = vmatpush.msra.mxu0 %v4534
  %v4536 = vand.u32 %v3848, 4294901760
  %4537 = vmatpush.msra.mxu0 %v4536
  %v4538 = vand.u32 %v3847, 4294901760
  %4539 = vmatpush.msra.mxu0 %v4538
  %v4540 = vand.u32 %v3846, 4294901760
  %4541 = vmatpush.msra.mxu0 %v4540
  %v4542 = vand.u32 %v3845, 4294901760
  %4543 = vmatpush.msra.mxu0 %v4542
  %v4544 = vand.u32 %v3844, 4294901760
  %4545 = vmatpush.msra.mxu0 %v4544
  %v4546 = vand.u32 %v3843, 4294901760
  %4547 = vmatpush.msra.mxu0 %v4546
  %v4548 = vand.u32 %v3842, 4294901760
  %4549 = vmatpush.msra.mxu0 %v4548
  %v4550 = vand.u32 %v3841, 4294901760
  %4551 = vmatpush.msra.mxu0 %v4550
  %v4552 = vand.u32 %v3840, 4294901760
  %4553 = vmatpush.msra.mxu0 %v4552
  %v4554 = vand.u32 %v3839, 4294901760
  %4555 = vmatpush.msra.mxu0 %v4554
  %v4556 = vand.u32 %v3838, 4294901760
  %4557 = vmatpush.msra.mxu0 %v4556
  %4558 = vmatmul.f32.gmra.mxu0 0.0
  %v4559 = vpop.f32.mrf.mxu0
  %v4560 = vadd.f32 %v4524, %v4559
  %4561 = vdwg.mxu0
  %v4562 = vand.u32 %v3853, 4294901760
  %v4563 = vsub.f32 %v3853, %v4562
  %v4564 = vand.u32 %v4563, 4294901760
  %v4565 = vsub.f32 %v4563, %v4564
  %v4566 = vand.u32 %v4565, 4294901760
  %4567 = vmatpush.msra.mxu0 %v4566
  %v4568 = vand.u32 %v3852, 4294901760
  %v4569 = vsub.f32 %v3852, %v4568
  %v4570 = vand.u32 %v4569, 4294901760
  %v4571 = vsub.f32 %v4569, %v4570
  %v4572 = vand.u32 %v4571, 4294901760
  %4573 = vmatpush.msra.mxu0 %v4572
  %v4574 = vand.u32 %v3851, 4294901760
  %v4575 = vsub.f32 %v3851, %v4574
  %v4576 = vand.u32 %v4575, 4294901760
  %v4577 = vsub.f32 %v4575, %v4576
  %v4578 = vand.u32 %v4577, 4294901760
  %4579 = vmatpush.msra.mxu0 %v4578
  %v4580 = vand.u32 %v3850, 4294901760
  %v4581 = vsub.f32 %v3850, %v4580
  %v4582 = vand.u32 %v4581, 4294901760
  %v4583 = vsub.f32 %v4581, %v4582
  %v4584 = vand.u32 %v4583, 4294901760
  %4585 = vmatpush.msra.mxu0 %v4584
  %v4586 = vand.u32 %v3849, 4294901760
  %v4587 = vsub.f32 %v3849, %v4586
  %v4588 = vand.u32 %v4587, 4294901760
  %v4589 = vsub.f32 %v4587, %v4588
  %v4590 = vand.u32 %v4589, 4294901760
  %4591 = vmatpush.msra.mxu0 %v4590
  %v4592 = vand.u32 %v3848, 4294901760
  %v4593 = vsub.f32 %v3848, %v4592
  %v4594 = vand.u32 %v4593, 4294901760
  %v4595 = vsub.f32 %v4593, %v4594
  %v4596 = vand.u32 %v4595, 4294901760
  %4597 = vmatpush.msra.mxu0 %v4596
  %v4598 = vand.u32 %v3847, 4294901760
  %v4599 = vsub.f32 %v3847, %v4598
  %v4600 = vand.u32 %v4599, 4294901760
  %v4601 = vsub.f32 %v4599, %v4600
  %v4602 = vand.u32 %v4601, 4294901760
  %4603 = vmatpush.msra.mxu0 %v4602
  %v4604 = vand.u32 %v3846, 4294901760
  %v4605 = vsub.f32 %v3846, %v4604
  %v4606 = vand.u32 %v4605, 4294901760
  %v4607 = vsub.f32 %v4605, %v4606
  %v4608 = vand.u32 %v4607, 4294901760
  %4609 = vmatpush.msra.mxu0 %v4608
  %v4610 = vand.u32 %v3845, 4294901760
  %v4611 = vsub.f32 %v3845, %v4610
  %v4612 = vand.u32 %v4611, 4294901760
  %v4613 = vsub.f32 %v4611, %v4612
  %v4614 = vand.u32 %v4613, 4294901760
  %4615 = vmatpush.msra.mxu0 %v4614
  %v4616 = vand.u32 %v3844, 4294901760
  %v4617 = vsub.f32 %v3844, %v4616
  %v4618 = vand.u32 %v4617, 4294901760
  %v4619 = vsub.f32 %v4617, %v4618
  %v4620 = vand.u32 %v4619, 4294901760
  %4621 = vmatpush.msra.mxu0 %v4620
  %v4622 = vand.u32 %v3843, 4294901760
  %v4623 = vsub.f32 %v3843, %v4622
  %v4624 = vand.u32 %v4623, 4294901760
  %v4625 = vsub.f32 %v4623, %v4624
  %v4626 = vand.u32 %v4625, 4294901760
  %4627 = vmatpush.msra.mxu0 %v4626
  %v4628 = vand.u32 %v3842, 4294901760
  %v4629 = vsub.f32 %v3842, %v4628
  %v4630 = vand.u32 %v4629, 4294901760
  %v4631 = vsub.f32 %v4629, %v4630
  %v4632 = vand.u32 %v4631, 4294901760
  %4633 = vmatpush.msra.mxu0 %v4632
  %v4634 = vand.u32 %v3841, 4294901760
  %v4635 = vsub.f32 %v3841, %v4634
  %v4636 = vand.u32 %v4635, 4294901760
  %v4637 = vsub.f32 %v4635, %v4636
  %v4638 = vand.u32 %v4637, 4294901760
  %4639 = vmatpush.msra.mxu0 %v4638
  %v4640 = vand.u32 %v3840, 4294901760
  %v4641 = vsub.f32 %v3840, %v4640
  %v4642 = vand.u32 %v4641, 4294901760
  %v4643 = vsub.f32 %v4641, %v4642
  %v4644 = vand.u32 %v4643, 4294901760
  %4645 = vmatpush.msra.mxu0 %v4644
  %v4646 = vand.u32 %v3839, 4294901760
  %v4647 = vsub.f32 %v3839, %v4646
  %v4648 = vand.u32 %v4647, 4294901760
  %v4649 = vsub.f32 %v4647, %v4648
  %v4650 = vand.u32 %v4649, 4294901760
  %4651 = vmatpush.msra.mxu0 %v4650
  %v4652 = vand.u32 %v3838, 4294901760
  %v4653 = vsub.f32 %v3838, %v4652
  %v4654 = vand.u32 %v4653, 4294901760
  %v4655 = vsub.f32 %v4653, %v4654
  %v4656 = vand.u32 %v4655, 4294901760
  %4657 = vmatpush.msra.mxu0 %v4656
  %4658 = vmatmul.f32.gmra.mxu0 1.0
  %v4659 = vpop.f32.mrf.mxu0
  %v4660 = vadd.f32 %v4560, %v4659
  %4661 = vdwg.mxu0
  %v4662 = vand.u32 %v3853, 4294901760
  %v4663 = vsub.f32 %v3853, %v4662
  %4664 = vmatpush.msra.mxu0 %v4663
  %v4665 = vand.u32 %v3852, 4294901760
  %v4666 = vsub.f32 %v3852, %v4665
  %4667 = vmatpush.msra.mxu0 %v4666
  %v4668 = vand.u32 %v3851, 4294901760
  %v4669 = vsub.f32 %v3851, %v4668
  %4670 = vmatpush.msra.mxu0 %v4669
  %v4671 = vand.u32 %v3850, 4294901760
  %v4672 = vsub.f32 %v3850, %v4671
  %4673 = vmatpush.msra.mxu0 %v4672
  %v4674 = vand.u32 %v3849, 4294901760
  %v4675 = vsub.f32 %v3849, %v4674
  %4676 = vmatpush.msra.mxu0 %v4675
  %v4677 = vand.u32 %v3848, 4294901760
  %v4678 = vsub.f32 %v3848, %v4677
  %4679 = vmatpush.msra.mxu0 %v4678
  %v4680 = vand.u32 %v3847, 4294901760
  %v4681 = vsub.f32 %v3847, %v4680
  %4682 = vmatpush.msra.mxu0 %v4681
  %v4683 = vand.u32 %v3846, 4294901760
  %v4684 = vsub.f32 %v3846, %v4683
  %4685 = vmatpush.msra.mxu0 %v4684
  %v4686 = vand.u32 %v3845, 4294901760
  %v4687 = vsub.f32 %v3845, %v4686
  %4688 = vmatpush.msra.mxu0 %v4687
  %v4689 = vand.u32 %v3844, 4294901760
  %v4690 = vsub.f32 %v3844, %v4689
  %4691 = vmatpush.msra.mxu0 %v4690
  %v4692 = vand.u32 %v3843, 4294901760
  %v4693 = vsub.f32 %v3843, %v4692
  %4694 = vmatpush.msra.mxu0 %v4693
  %v4695 = vand.u32 %v3842, 4294901760
  %v4696 = vsub.f32 %v3842, %v4695
  %4697 = vmatpush.msra.mxu0 %v4696
  %v4698 = vand.u32 %v3841, 4294901760
  %v4699 = vsub.f32 %v3841, %v4698
  %4700 = vmatpush.msra.mxu0 %v4699
  %v4701 = vand.u32 %v3840, 4294901760
  %v4702 = vsub.f32 %v3840, %v4701
  %4703 = vmatpush.msra.mxu0 %v4702
  %v4704 = vand.u32 %v3839, 4294901760
  %v4705 = vsub.f32 %v3839, %v4704
  %4706 = vmatpush.msra.mxu0 %v4705
  %v4707 = vand.u32 %v3838, 4294901760
  %v4708 = vsub.f32 %v3838, %v4707
  %4709 = vmatpush.msra.mxu0 %v4708
  %4710 = vmatmul.f32.gmra.mxu0 0.0
  %v4711 = vpop.f32.mrf.mxu0
  %v4712 = vadd.f32 %v4660, %v4711
  %4713 = vdwg.mxu0
  %v4714 = vand.u32 %v3853, 4294901760
  %4715 = vmatpush.msra.mxu0 %v4714
  %v4716 = vand.u32 %v3852, 4294901760
  %4717 = vmatpush.msra.mxu0 %v4716
  %v4718 = vand.u32 %v3851, 4294901760
  %4719 = vmatpush.msra.mxu0 %v4718
  %v4720 = vand.u32 %v3850, 4294901760
  %4721 = vmatpush.msra.mxu0 %v4720
  %v4722 = vand.u32 %v3849, 4294901760
  %4723 = vmatpush.msra.mxu0 %v4722
  %v4724 = vand.u32 %v3848, 4294901760
  %4725 = vmatpush.msra.mxu0 %v4724
  %v4726 = vand.u32 %v3847, 4294901760
  %4727 = vmatpush.msra.mxu0 %v4726
  %v4728 = vand.u32 %v3846, 4294901760
  %4729 = vmatpush.msra.mxu0 %v4728
  %v4730 = vand.u32 %v3845, 4294901760
  %4731 = vmatpush.msra.mxu0 %v4730
  %v4732 = vand.u32 %v3844, 4294901760
  %4733 = vmatpush.msra.mxu0 %v4732
  %v4734 = vand.u32 %v3843, 4294901760
  %4735 = vmatpush.msra.mxu0 %v4734
  %v4736 = vand.u32 %v3842, 4294901760
  %4737 = vmatpush.msra.mxu0 %v4736
  %v4738 = vand.u32 %v3841, 4294901760
  %4739 = vmatpush.msra.mxu0 %v4738
  %v4740 = vand.u32 %v3840, 4294901760
  %4741 = vmatpush.msra.mxu0 %v4740
  %v4742 = vand.u32 %v3839, 4294901760
  %4743 = vmatpush.msra.mxu0 %v4742
  %v4744 = vand.u32 %v3838, 4294901760
  %4745 = vmatpush.msra.mxu0 %v4744
  %4746 = vmatmul.f32.gmra.mxu0 0.0
  %v4747 = vpop.f32.mrf.mxu0
  %v4748 = vadd.f32 %v4712, %v4747
  %4749 = vdwg.mxu0
  %v4750 = vand.u32 %v3853, 4294901760
  %v4751 = vsub.f32 %v3853, %v4750
  %v4752 = vand.u32 %v4751, 4294901760
  %4753 = vmatpush.msra.mxu0 %v4752
  %v4754 = vand.u32 %v3852, 4294901760
  %v4755 = vsub.f32 %v3852, %v4754
  %v4756 = vand.u32 %v4755, 4294901760
  %4757 = vmatpush.msra.mxu0 %v4756
  %v4758 = vand.u32 %v3851, 4294901760
  %v4759 = vsub.f32 %v3851, %v4758
  %v4760 = vand.u32 %v4759, 4294901760
  %4761 = vmatpush.msra.mxu0 %v4760
  %v4762 = vand.u32 %v3850, 4294901760
  %v4763 = vsub.f32 %v3850, %v4762
  %v4764 = vand.u32 %v4763, 4294901760
  %4765 = vmatpush.msra.mxu0 %v4764
  %v4766 = vand.u32 %v3849, 4294901760
  %v4767 = vsub.f32 %v3849, %v4766
  %v4768 = vand.u32 %v4767, 4294901760
  %4769 = vmatpush.msra.mxu0 %v4768
  %v4770 = vand.u32 %v3848, 4294901760
  %v4771 = vsub.f32 %v3848, %v4770
  %v4772 = vand.u32 %v4771, 4294901760
  %4773 = vmatpush.msra.mxu0 %v4772
  %v4774 = vand.u32 %v3847, 4294901760
  %v4775 = vsub.f32 %v3847, %v4774
  %v4776 = vand.u32 %v4775, 4294901760
  %4777 = vmatpush.msra.mxu0 %v4776
  %v4778 = vand.u32 %v3846, 4294901760
  %v4779 = vsub.f32 %v3846, %v4778
  %v4780 = vand.u32 %v4779, 4294901760
  %4781 = vmatpush.msra.mxu0 %v4780
  %v4782 = vand.u32 %v3845, 4294901760
  %v4783 = vsub.f32 %v3845, %v4782
  %v4784 = vand.u32 %v4783, 4294901760
  %4785 = vmatpush.msra.mxu0 %v4784
  %v4786 = vand.u32 %v3844, 4294901760
  %v4787 = vsub.f32 %v3844, %v4786
  %v4788 = vand.u32 %v4787, 4294901760
  %4789 = vmatpush.msra.mxu0 %v4788
  %v4790 = vand.u32 %v3843, 4294901760
  %v4791 = vsub.f32 %v3843, %v4790
  %v4792 = vand.u32 %v4791, 4294901760
  %4793 = vmatpush.msra.mxu0 %v4792
  %v4794 = vand.u32 %v3842, 4294901760
  %v4795 = vsub.f32 %v3842, %v4794
  %v4796 = vand.u32 %v4795, 4294901760
  %4797 = vmatpush.msra.mxu0 %v4796
  %v4798 = vand.u32 %v3841, 4294901760
  %v4799 = vsub.f32 %v3841, %v4798
  %v4800 = vand.u32 %v4799, 4294901760
  %4801 = vmatpush.msra.mxu0 %v4800
  %v4802 = vand.u32 %v3840, 4294901760
  %v4803 = vsub.f32 %v3840, %v4802
  %v4804 = vand.u32 %v4803, 4294901760
  %4805 = vmatpush.msra.mxu0 %v4804
  %v4806 = vand.u32 %v3839, 4294901760
  %v4807 = vsub.f32 %v3839, %v4806
  %v4808 = vand.u32 %v4807, 4294901760
  %4809 = vmatpush.msra.mxu0 %v4808
  %v4810 = vand.u32 %v3838, 4294901760
  %v4811 = vsub.f32 %v3838, %v4810
  %v4812 = vand.u32 %v4811, 4294901760
  %4813 = vmatpush.msra.mxu0 %v4812
  %4814 = vmatmul.f32.gmra.mxu0 1.0
  %v4815 = vpop.f32.mrf.mxu0
  %v4816 = vadd.f32 %v4748, %v4815
  %4817 = vdwg.mxu0
  %v4818 = vand.u32 %v3853, 4294901760
  %4819 = vmatpush.msra.mxu0 %v4818
  %v4820 = vand.u32 %v3852, 4294901760
  %4821 = vmatpush.msra.mxu0 %v4820
  %v4822 = vand.u32 %v3851, 4294901760
  %4823 = vmatpush.msra.mxu0 %v4822
  %v4824 = vand.u32 %v3850, 4294901760
  %4825 = vmatpush.msra.mxu0 %v4824
  %v4826 = vand.u32 %v3849, 4294901760
  %4827 = vmatpush.msra.mxu0 %v4826
  %v4828 = vand.u32 %v3848, 4294901760
  %4829 = vmatpush.msra.mxu0 %v4828
  %v4830 = vand.u32 %v3847, 4294901760
  %4831 = vmatpush.msra.mxu0 %v4830
  %v4832 = vand.u32 %v3846, 4294901760
  %4833 = vmatpush.msra.mxu0 %v4832
  %v4834 = vand.u32 %v3845, 4294901760
  %4835 = vmatpush.msra.mxu0 %v4834
  %v4836 = vand.u32 %v3844, 4294901760
  %4837 = vmatpush.msra.mxu0 %v4836
  %v4838 = vand.u32 %v3843, 4294901760
  %4839 = vmatpush.msra.mxu0 %v4838
  %v4840 = vand.u32 %v3842, 4294901760
  %4841 = vmatpush.msra.mxu0 %v4840
  %v4842 = vand.u32 %v3841, 4294901760
  %4843 = vmatpush.msra.mxu0 %v4842
  %v4844 = vand.u32 %v3840, 4294901760
  %4845 = vmatpush.msra.mxu0 %v4844
  %v4846 = vand.u32 %v3839, 4294901760
  %4847 = vmatpush.msra.mxu0 %v4846
  %v4848 = vand.u32 %v3838, 4294901760
  %4849 = vmatpush.msra.mxu0 %v4848
  %4850 = vmatmul.f32.gmra.mxu0 1.0
  %v4851 = vpop.f32.mrf.mxu0
  %v4852 = vadd.f32 %v4816, %v4851
  %4853 = vdwg.mxu0
  %v4854 = vand.u32 %v3869, 4294901760
  %4855 = vmatpush.msra.mxu0 %v4854
  %v4856 = vand.u32 %v3868, 4294901760
  %4857 = vmatpush.msra.mxu0 %v4856
  %v4858 = vand.u32 %v3867, 4294901760
  %4859 = vmatpush.msra.mxu0 %v4858
  %v4860 = vand.u32 %v3866, 4294901760
  %4861 = vmatpush.msra.mxu0 %v4860
  %v4862 = vand.u32 %v3865, 4294901760
  %4863 = vmatpush.msra.mxu0 %v4862
  %v4864 = vand.u32 %v3864, 4294901760
  %4865 = vmatpush.msra.mxu0 %v4864
  %v4866 = vand.u32 %v3863, 4294901760
  %4867 = vmatpush.msra.mxu0 %v4866
  %v4868 = vand.u32 %v3862, 4294901760
  %4869 = vmatpush.msra.mxu0 %v4868
  %v4870 = vand.u32 %v3861, 4294901760
  %4871 = vmatpush.msra.mxu0 %v4870
  %v4872 = vand.u32 %v3860, 4294901760
  %4873 = vmatpush.msra.mxu0 %v4872
  %v4874 = vand.u32 %v3859, 4294901760
  %4875 = vmatpush.msra.mxu0 %v4874
  %v4876 = vand.u32 %v3858, 4294901760
  %4877 = vmatpush.msra.mxu0 %v4876
  %v4878 = vand.u32 %v3857, 4294901760
  %4879 = vmatpush.msra.mxu0 %v4878
  %v4880 = vand.u32 %v3856, 4294901760
  %4881 = vmatpush.msra.mxu0 %v4880
  %v4882 = vand.u32 %v3855, 4294901760
  %4883 = vmatpush.msra.mxu0 %v4882
  %v4884 = vand.u32 %v3854, 4294901760
  %4885 = vmatpush.msra.mxu0 %v4884
  %4886 = vmatmul.f32.gmra.mxu0 0.0
  %v4887 = vpop.f32.mrf.mxu0
  %v4888 = vadd.f32 %v4852, %v4887
  %4889 = vdwg.mxu0
  %v4890 = vand.u32 %v3869, 4294901760
  %v4891 = vsub.f32 %v3869, %v4890
  %v4892 = vand.u32 %v4891, 4294901760
  %v4893 = vsub.f32 %v4891, %v4892
  %v4894 = vand.u32 %v4893, 4294901760
  %4895 = vmatpush.msra.mxu0 %v4894
  %v4896 = vand.u32 %v3868, 4294901760
  %v4897 = vsub.f32 %v3868, %v4896
  %v4898 = vand.u32 %v4897, 4294901760
  %v4899 = vsub.f32 %v4897, %v4898
  %v4900 = vand.u32 %v4899, 4294901760
  %4901 = vmatpush.msra.mxu0 %v4900
  %v4902 = vand.u32 %v3867, 4294901760
  %v4903 = vsub.f32 %v3867, %v4902
  %v4904 = vand.u32 %v4903, 4294901760
  %v4905 = vsub.f32 %v4903, %v4904
  %v4906 = vand.u32 %v4905, 4294901760
  %4907 = vmatpush.msra.mxu0 %v4906
  %v4908 = vand.u32 %v3866, 4294901760
  %v4909 = vsub.f32 %v3866, %v4908
  %v4910 = vand.u32 %v4909, 4294901760
  %v4911 = vsub.f32 %v4909, %v4910
  %v4912 = vand.u32 %v4911, 4294901760
  %4913 = vmatpush.msra.mxu0 %v4912
  %v4914 = vand.u32 %v3865, 4294901760
  %v4915 = vsub.f32 %v3865, %v4914
  %v4916 = vand.u32 %v4915, 4294901760
  %v4917 = vsub.f32 %v4915, %v4916
  %v4918 = vand.u32 %v4917, 4294901760
  %4919 = vmatpush.msra.mxu0 %v4918
  %v4920 = vand.u32 %v3864, 4294901760
  %v4921 = vsub.f32 %v3864, %v4920
  %v4922 = vand.u32 %v4921, 4294901760
  %v4923 = vsub.f32 %v4921, %v4922
  %v4924 = vand.u32 %v4923, 4294901760
  %4925 = vmatpush.msra.mxu0 %v4924
  %v4926 = vand.u32 %v3863, 4294901760
  %v4927 = vsub.f32 %v3863, %v4926
  %v4928 = vand.u32 %v4927, 4294901760
  %v4929 = vsub.f32 %v4927, %v4928
  %v4930 = vand.u32 %v4929, 4294901760
  %4931 = vmatpush.msra.mxu0 %v4930
  %v4932 = vand.u32 %v3862, 4294901760
  %v4933 = vsub.f32 %v3862, %v4932
  %v4934 = vand.u32 %v4933, 4294901760
  %v4935 = vsub.f32 %v4933, %v4934
  %v4936 = vand.u32 %v4935, 4294901760
  %4937 = vmatpush.msra.mxu0 %v4936
  %v4938 = vand.u32 %v3861, 4294901760
  %v4939 = vsub.f32 %v3861, %v4938
  %v4940 = vand.u32 %v4939, 4294901760
  %v4941 = vsub.f32 %v4939, %v4940
  %v4942 = vand.u32 %v4941, 4294901760
  %4943 = vmatpush.msra.mxu0 %v4942
  %v4944 = vand.u32 %v3860, 4294901760
  %v4945 = vsub.f32 %v3860, %v4944
  %v4946 = vand.u32 %v4945, 4294901760
  %v4947 = vsub.f32 %v4945, %v4946
  %v4948 = vand.u32 %v4947, 4294901760
  %4949 = vmatpush.msra.mxu0 %v4948
  %v4950 = vand.u32 %v3859, 4294901760
  %v4951 = vsub.f32 %v3859, %v4950
  %v4952 = vand.u32 %v4951, 4294901760
  %v4953 = vsub.f32 %v4951, %v4952
  %v4954 = vand.u32 %v4953, 4294901760
  %4955 = vmatpush.msra.mxu0 %v4954
  %v4956 = vand.u32 %v3858, 4294901760
  %v4957 = vsub.f32 %v3858, %v4956
  %v4958 = vand.u32 %v4957, 4294901760
  %v4959 = vsub.f32 %v4957, %v4958
  %v4960 = vand.u32 %v4959, 4294901760
  %4961 = vmatpush.msra.mxu0 %v4960
  %v4962 = vand.u32 %v3857, 4294901760
  %v4963 = vsub.f32 %v3857, %v4962
  %v4964 = vand.u32 %v4963, 4294901760
  %v4965 = vsub.f32 %v4963, %v4964
  %v4966 = vand.u32 %v4965, 4294901760
  %4967 = vmatpush.msra.mxu0 %v4966
  %v4968 = vand.u32 %v3856, 4294901760
  %v4969 = vsub.f32 %v3856, %v4968
  %v4970 = vand.u32 %v4969, 4294901760
  %v4971 = vsub.f32 %v4969, %v4970
  %v4972 = vand.u32 %v4971, 4294901760
  %4973 = vmatpush.msra.mxu0 %v4972
  %v4974 = vand.u32 %v3855, 4294901760
  %v4975 = vsub.f32 %v3855, %v4974
  %v4976 = vand.u32 %v4975, 4294901760
  %v4977 = vsub.f32 %v4975, %v4976
  %v4978 = vand.u32 %v4977, 4294901760
  %4979 = vmatpush.msra.mxu0 %v4978
  %v4980 = vand.u32 %v3854, 4294901760
  %v4981 = vsub.f32 %v3854, %v4980
  %v4982 = vand.u32 %v4981, 4294901760
  %v4983 = vsub.f32 %v4981, %v4982
  %v4984 = vand.u32 %v4983, 4294901760
  %4985 = vmatpush.msra.mxu0 %v4984
  %4986 = vmatmul.f32.gmra.mxu0 1.0
  %v4987 = vpop.f32.mrf.mxu0
  %v4988 = vadd.f32 %v4888, %v4987
  %4989 = vdwg.mxu0
  %v4990 = vand.u32 %v3869, 4294901760
  %v4991 = vsub.f32 %v3869, %v4990
  %4992 = vmatpush.msra.mxu0 %v4991
  %v4993 = vand.u32 %v3868, 4294901760
  %v4994 = vsub.f32 %v3868, %v4993
  %4995 = vmatpush.msra.mxu0 %v4994
  %v4996 = vand.u32 %v3867, 4294901760
  %v4997 = vsub.f32 %v3867, %v4996
  %4998 = vmatpush.msra.mxu0 %v4997
  %v4999 = vand.u32 %v3866, 4294901760
  %v5000 = vsub.f32 %v3866, %v4999
  %5001 = vmatpush.msra.mxu0 %v5000
  %v5002 = vand.u32 %v3865, 4294901760
  %v5003 = vsub.f32 %v3865, %v5002
  %5004 = vmatpush.msra.mxu0 %v5003
  %v5005 = vand.u32 %v3864, 4294901760
  %v5006 = vsub.f32 %v3864, %v5005
  %5007 = vmatpush.msra.mxu0 %v5006
  %v5008 = vand.u32 %v3863, 4294901760
  %v5009 = vsub.f32 %v3863, %v5008
  %5010 = vmatpush.msra.mxu0 %v5009
  %v5011 = vand.u32 %v3862, 4294901760
  %v5012 = vsub.f32 %v3862, %v5011
  %5013 = vmatpush.msra.mxu0 %v5012
  %v5014 = vand.u32 %v3861, 4294901760
  %v5015 = vsub.f32 %v3861, %v5014
  %5016 = vmatpush.msra.mxu0 %v5015
  %v5017 = vand.u32 %v3860, 4294901760
  %v5018 = vsub.f32 %v3860, %v5017
  %5019 = vmatpush.msra.mxu0 %v5018
  %v5020 = vand.u32 %v3859, 4294901760
  %v5021 = vsub.f32 %v3859, %v5020
  %5022 = vmatpush.msra.mxu0 %v5021
  %v5023 = vand.u32 %v3858, 4294901760
  %v5024 = vsub.f32 %v3858, %v5023
  %5025 = vmatpush.msra.mxu0 %v5024
  %v5026 = vand.u32 %v3857, 4294901760
  %v5027 = vsub.f32 %v3857, %v5026
  %5028 = vmatpush.msra.mxu0 %v5027
  %v5029 = vand.u32 %v3856, 4294901760
  %v5030 = vsub.f32 %v3856, %v5029
  %5031 = vmatpush.msra.mxu0 %v5030
  %v5032 = vand.u32 %v3855, 4294901760
  %v5033 = vsub.f32 %v3855, %v5032
  %5034 = vmatpush.msra.mxu0 %v5033
  %v5035 = vand.u32 %v3854, 4294901760
  %v5036 = vsub.f32 %v3854, %v5035
  %5037 = vmatpush.msra.mxu0 %v5036
  %5038 = vmatmul.f32.gmra.mxu0 0.0
  %v5039 = vpop.f32.mrf.mxu0
  %v5040 = vadd.f32 %v4988, %v5039
  %5041 = vdwg.mxu0
  %v5042 = vand.u32 %v3869, 4294901760
  %5043 = vmatpush.msra.mxu0 %v5042
  %v5044 = vand.u32 %v3868, 4294901760
  %5045 = vmatpush.msra.mxu0 %v5044
  %v5046 = vand.u32 %v3867, 4294901760
  %5047 = vmatpush.msra.mxu0 %v5046
  %v5048 = vand.u32 %v3866, 4294901760
  %5049 = vmatpush.msra.mxu0 %v5048
  %v5050 = vand.u32 %v3865, 4294901760
  %5051 = vmatpush.msra.mxu0 %v5050
  %v5052 = vand.u32 %v3864, 4294901760
  %5053 = vmatpush.msra.mxu0 %v5052
  %v5054 = vand.u32 %v3863, 4294901760
  %5055 = vmatpush.msra.mxu0 %v5054
  %v5056 = vand.u32 %v3862, 4294901760
  %5057 = vmatpush.msra.mxu0 %v5056
  %v5058 = vand.u32 %v3861, 4294901760
  %5059 = vmatpush.msra.mxu0 %v5058
  %v5060 = vand.u32 %v3860, 4294901760
  %5061 = vmatpush.msra.mxu0 %v5060
  %v5062 = vand.u32 %v3859, 4294901760
  %5063 = vmatpush.msra.mxu0 %v5062
  %v5064 = vand.u32 %v3858, 4294901760
  %5065 = vmatpush.msra.mxu0 %v5064
  %v5066 = vand.u32 %v3857, 4294901760
  %5067 = vmatpush.msra.mxu0 %v5066
  %v5068 = vand.u32 %v3856, 4294901760
  %5069 = vmatpush.msra.mxu0 %v5068
  %v5070 = vand.u32 %v3855, 4294901760
  %5071 = vmatpush.msra.mxu0 %v5070
  %v5072 = vand.u32 %v3854, 4294901760
  %5073 = vmatpush.msra.mxu0 %v5072
  %5074 = vmatmul.f32.gmra.mxu0 0.0
  %v5075 = vpop.f32.mrf.mxu0
  %v5076 = vadd.f32 %v5040, %v5075
  %5077 = vdwg.mxu0
  %v5078 = vand.u32 %v3869, 4294901760
  %v5079 = vsub.f32 %v3869, %v5078
  %v5080 = vand.u32 %v5079, 4294901760
  %5081 = vmatpush.msra.mxu0 %v5080
  %v5082 = vand.u32 %v3868, 4294901760
  %v5083 = vsub.f32 %v3868, %v5082
  %v5084 = vand.u32 %v5083, 4294901760
  %5085 = vmatpush.msra.mxu0 %v5084
  %v5086 = vand.u32 %v3867, 4294901760
  %v5087 = vsub.f32 %v3867, %v5086
  %v5088 = vand.u32 %v5087, 4294901760
  %5089 = vmatpush.msra.mxu0 %v5088
  %v5090 = vand.u32 %v3866, 4294901760
  %v5091 = vsub.f32 %v3866, %v5090
  %v5092 = vand.u32 %v5091, 4294901760
  %5093 = vmatpush.msra.mxu0 %v5092
  %v5094 = vand.u32 %v3865, 4294901760
  %v5095 = vsub.f32 %v3865, %v5094
  %v5096 = vand.u32 %v5095, 4294901760
  %5097 = vmatpush.msra.mxu0 %v5096
  %v5098 = vand.u32 %v3864, 4294901760
  %v5099 = vsub.f32 %v3864, %v5098
  %v5100 = vand.u32 %v5099, 4294901760
  %5101 = vmatpush.msra.mxu0 %v5100
  %v5102 = vand.u32 %v3863, 4294901760
  %v5103 = vsub.f32 %v3863, %v5102
  %v5104 = vand.u32 %v5103, 4294901760
  %5105 = vmatpush.msra.mxu0 %v5104
  %v5106 = vand.u32 %v3862, 4294901760
  %v5107 = vsub.f32 %v3862, %v5106
  %v5108 = vand.u32 %v5107, 4294901760
  %5109 = vmatpush.msra.mxu0 %v5108
  %v5110 = vand.u32 %v3861, 4294901760
  %v5111 = vsub.f32 %v3861, %v5110
  %v5112 = vand.u32 %v5111, 4294901760
  %5113 = vmatpush.msra.mxu0 %v5112
  %v5114 = vand.u32 %v3860, 4294901760
  %v5115 = vsub.f32 %v3860, %v5114
  %v5116 = vand.u32 %v5115, 4294901760
  %5117 = vmatpush.msra.mxu0 %v5116
  %v5118 = vand.u32 %v3859, 4294901760
  %v5119 = vsub.f32 %v3859, %v5118
  %v5120 = vand.u32 %v5119, 4294901760
  %5121 = vmatpush.msra.mxu0 %v5120
  %v5122 = vand.u32 %v3858, 4294901760
  %v5123 = vsub.f32 %v3858, %v5122
  %v5124 = vand.u32 %v5123, 4294901760
  %5125 = vmatpush.msra.mxu0 %v5124
  %v5126 = vand.u32 %v3857, 4294901760
  %v5127 = vsub.f32 %v3857, %v5126
  %v5128 = vand.u32 %v5127, 4294901760
  %5129 = vmatpush.msra.mxu0 %v5128
  %v5130 = vand.u32 %v3856, 4294901760
  %v5131 = vsub.f32 %v3856, %v5130
  %v5132 = vand.u32 %v5131, 4294901760
  %5133 = vmatpush.msra.mxu0 %v5132
  %v5134 = vand.u32 %v3855, 4294901760
  %v5135 = vsub.f32 %v3855, %v5134
  %v5136 = vand.u32 %v5135, 4294901760
  %5137 = vmatpush.msra.mxu0 %v5136
  %v5138 = vand.u32 %v3854, 4294901760
  %v5139 = vsub.f32 %v3854, %v5138
  %v5140 = vand.u32 %v5139, 4294901760
  %5141 = vmatpush.msra.mxu0 %v5140
  %5142 = vmatmul.f32.gmra.mxu0 1.0
  %v5143 = vpop.f32.mrf.mxu0
  %v5144 = vadd.f32 %v5076, %v5143
  %5145 = vdwg.mxu0
  %v5146 = vand.u32 %v3869, 4294901760
  %5147 = vmatpush.msra.mxu0 %v5146
  %v5148 = vand.u32 %v3868, 4294901760
  %5149 = vmatpush.msra.mxu0 %v5148
  %v5150 = vand.u32 %v3867, 4294901760
  %5151 = vmatpush.msra.mxu0 %v5150
  %v5152 = vand.u32 %v3866, 4294901760
  %5153 = vmatpush.msra.mxu0 %v5152
  %v5154 = vand.u32 %v3865, 4294901760
  %5155 = vmatpush.msra.mxu0 %v5154
  %v5156 = vand.u32 %v3864, 4294901760
  %5157 = vmatpush.msra.mxu0 %v5156
  %v5158 = vand.u32 %v3863, 4294901760
  %5159 = vmatpush.msra.mxu0 %v5158
  %v5160 = vand.u32 %v3862, 4294901760
  %5161 = vmatpush.msra.mxu0 %v5160
  %v5162 = vand.u32 %v3861, 4294901760
  %5163 = vmatpush.msra.mxu0 %v5162
  %v5164 = vand.u32 %v3860, 4294901760
  %5165 = vmatpush.msra.mxu0 %v5164
  %v5166 = vand.u32 %v3859, 4294901760
  %5167 = vmatpush.msra.mxu0 %v5166
  %v5168 = vand.u32 %v3858, 4294901760
  %5169 = vmatpush.msra.mxu0 %v5168
  %v5170 = vand.u32 %v3857, 4294901760
  %5171 = vmatpush.msra.mxu0 %v5170
  %v5172 = vand.u32 %v3856, 4294901760
  %5173 = vmatpush.msra.mxu0 %v5172
  %v5174 = vand.u32 %v3855, 4294901760
  %5175 = vmatpush.msra.mxu0 %v5174
  %v5176 = vand.u32 %v3854, 4294901760
  %5177 = vmatpush.msra.mxu0 %v5176
  %5178 = vmatmul.f32.gmra.mxu0 1.0
  %v5179 = vpop.f32.mrf.mxu0
  %v5180 = vadd.f32 %v5144, %v5179
  %5181 = vdwg.mxu0
  %p5182 = scmp.eq.s32.totalorder 0, 0
  // Predicated region
  $region10: #{dilation_conv_module_forward.2} parent=0 // pred_check
    %p5183 = pneg %p5182
  $region11: #{dilation_conv_module_forward.2} parent=0 // pred_check_branch
    %5185 = sbr.rel (%p5183) target = $region13
  $region12: #{dilation_conv_module_forward.2} parent=0 // pred_region
    %5186 = vst [vmem:[%s3] sm:$0x3] 0.0
  $region13: #{dilation_conv_module_forward.2} parent=0 // pred_fallthru
    _
  %v5187 = vld [vmem:[%s3] sm:$0x1]
  %v5188 = vadd.f32 %v5187, %v3804
  %5189 = vst [vmem:[%s3] sm:$0x1] %v5188
  %v5190 = vld [vmem:[%s3 + $0x1] sm:$0x1]
  %v5191 = vadd.f32 %v5190, %v5180
  %5192 = vst [vmem:[%s3 + $0x1] sm:$0x1] %v5191
  // Predicated region
  $region14: #{dilation_conv_module_forward.2} parent=0 // pred_check
    _
  $region15: #{dilation_conv_module_forward.2} parent=0 // pred_check_branch
    %5194 = sbr.rel (0) target = $region17
  $region16: #{dilation_conv_module_forward.2} parent=0 // pred_region
    _
  $region17: #{dilation_conv_module_forward.2} parent=0 // pred_fallthru
    _
  // Predicated region
  $region18: #{dilation_conv_module_forward.2} parent=0 // pred_check
    _
  $region19: #{dilation_conv_module_forward.2} parent=0 // pred_check_branch
    %5196 = sbr.rel (0) target = $region21
  $region20: #{dilation_conv_module_forward.2} parent=0 // pred_region
    _
  $region21: #{dilation_conv_module_forward.2} parent=0 // pred_fallthru
    _
  // Predicated region
  $region22: #{dilation_conv_module_forward.2} parent=0 // pred_check
    _
  $region23: #{dilation_conv_module_forward.2} parent=0 // pred_check_branch
    %5198 = sbr.rel (0) target = $region25
  $region24: #{dilation_conv_module_forward.2} parent=0 // pred_region
    _
  $region25: #{dilation_conv_module_forward.2} parent=0 // pred_fallthru
    _
  // Predicated region
  $region26: #{dilation_conv_module_forward.2} parent=0 // pred_check
    _
  $region27: #{dilation_conv_module_forward.2} parent=0 // pred_check_branch
    %5200 = sbr.rel (0) target = $region29
  $region28: #{dilation_conv_module_forward.2} parent=0 // pred_region
    _
  $region29: #{dilation_conv_module_forward.2} parent=0 // pred_fallthru
    _

</llo_original>
